<compile_context>
chip_gen: v6e
topology: v6e:2x2x1
jax: 0.10.0
libtpu: 0.0.40
codegen_flags: <defaults>
</compile_context>

<pallas_src>
import functools

import jax
import jax.numpy as jnp
from jax.experimental import pallas as pl
from jax.experimental.pallas import tpu as pltpu


def _round_up(x, m):
    return ((x + m - 1) // m) * m


def _cdiv(a, b):
    return -(-a // b)


# ----------------------------- Pallas kernels ------------------------------

def _accum_taps(x_ref, w_ref, acc_ref, taps):
    """acc = sum_t  x[0, taps[t] : taps[t]+m_sup, :] @ w[t]   (f32 accumulate)."""
    m_sup = acc_ref.shape[0]
    for t, off in enumerate(taps):          # static unroll over kh*kw taps
        a = x_ref[0, pl.ds(off, m_sup), :]  # contiguous 2-D slab, bf16
        contrib = jnp.dot(a, w_ref[t], preferred_element_type=jnp.float32)
        if t == 0:
            acc_ref[...] = contrib
        else:
            acc_ref[...] += contrib


def _conv_kernel(x_ref, w_ref, o_ref, acc_ref, *, taps, apply_relu):
    """o = relu?(conv(x))."""
    _accum_taps(x_ref, w_ref, acc_ref, taps)
    out = acc_ref[...]
    if apply_relu:
        out = jnp.maximum(out, 0.0)
    o_ref[0] = out.astype(o_ref.dtype)


def _conv_add_relu_kernel(x_ref, w_ref, r_ref, o_ref, acc_ref, *, taps):
    """o = relu(conv(x) + r)  -- identity shortcut fused as a residual add."""
    _accum_taps(x_ref, w_ref, acc_ref, taps)
    out = acc_ref[...] + r_ref[0].astype(jnp.float32)
    o_ref[0] = jnp.maximum(out, 0.0).astype(o_ref.dtype)


def _conv_scconv_relu_kernel(x_ref, w_ref, xsc_ref, wsc_ref, o_ref, acc_ref,
                             *, taps):
    """o = relu(conv(x) + xsc @ wsc)  -- 1x1 shortcut conv fused in-kernel."""
    _accum_taps(x_ref, w_ref, acc_ref, taps)
    acc_ref[...] += jnp.dot(xsc_ref[0], wsc_ref[...],
                            preferred_element_type=jnp.float32)
    o_ref[0] = jnp.maximum(acc_ref[...], 0.0).astype(o_ref.dtype)


# ----------------------------- pallas_call wrapper --------------------------

def _implicit_conv(buf, w_taps, taps, m_sup, *, residual=None, shortcut=None,
                   apply_relu=True, out_dtype=jnp.bfloat16):
    """Implicit-GEMM conv over a flattened padded image buffer.

    buf:      (N, rows, Cin_pad)  bf16 flat image (phases folded into rows)
    w_taps:   (T, Cin_pad, Cout_pad) bf16
    taps:     static per-tap row offsets into `buf`
    residual: optional (N, m_sup, Cout_pad) bf16, fused add before ReLU
    shortcut: optional (xsc (N, m_sup, Csc_pad), wsc (Csc_pad, Cout_pad)) bf16
    """
    n, rows, cin_pad = buf.shape
    n_taps, _, cout_pad = w_taps.shape
    assert n_taps == len(taps)

    # Prefer 256-wide output tiles (v6e/v7x MXU is 256x256); 128 otherwise.
    tn = 256 if cout_pad % 256 == 0 else 128
    grid = (n, cout_pad // tn)

    x_spec = pl.BlockSpec((1, rows, cin_pad), lambda b, j: (b, 0, 0))
    w_spec = pl.BlockSpec((n_taps, cin_pad, tn), lambda b, j: (0, 0, j))
    o_spec = pl.BlockSpec((1, m_sup, tn), lambda b, j: (b, 0, j))
    out_shape = jax.ShapeDtypeStruct((n, m_sup, cout_pad), out_dtype)
    scratch = [pltpu.VMEM((m_sup, tn), jnp.float32)]

    out_bytes = n * m_sup * cout_pad * jnp.dtype(out_dtype).itemsize
    flops = 2 * n * m_sup * cin_pad * n_taps * cout_pad
    # bytes include re-reads: buf once per image, weights once per image.
    bytes_accessed = buf.size * 2 + n * w_taps.size * 2 + out_bytes

    if residual is not None:
        assert residual.shape == (n, m_sup, cout_pad)
        r_spec = pl.BlockSpec((1, m_sup, tn), lambda b, j: (b, 0, j))
        in_specs = [x_spec, w_spec, r_spec]
        args = (buf, w_taps, residual)
        kernel = functools.partial(_conv_add_relu_kernel, taps=tuple(taps))
        bytes_accessed += residual.size * 2
    elif shortcut is not None:
        xsc, wsc = shortcut
        csc = xsc.shape[-1]
        assert xsc.shape == (n, m_sup, csc) and wsc.shape == (csc, cout_pad)
        xsc_spec = pl.BlockSpec((1, m_sup, csc), lambda b, j: (b, 0, 0))
        wsc_spec = pl.BlockSpec((csc, tn), lambda b, j: (0, j))
        in_specs = [x_spec, w_spec, xsc_spec, wsc_spec]
        args = (buf, w_taps, xsc, wsc)
        kernel = functools.partial(_conv_scconv_relu_kernel, taps=tuple(taps))
        flops += 2 * n * m_sup * csc * cout_pad
        bytes_accessed += xsc.size * 2 + n * wsc.size * 2
    else:
        in_specs = [x_spec, w_spec]
        args = (buf, w_taps)
        kernel = functools.partial(_conv_kernel, taps=tuple(taps),
                                   apply_relu=apply_relu)

    return pl.pallas_call(
        kernel,
        out_shape=out_shape,
        grid_spec=pltpu.PrefetchScalarGridSpec(
            num_scalar_prefetch=0,
            grid=grid,
            in_specs=in_specs,
            out_specs=o_spec,
            scratch_shapes=scratch),
        compiler_params=pltpu.CompilerParams(
            dimension_semantics=("parallel", "parallel"),
            vmem_limit_bytes=48 * 1024 * 1024),  # safe on v5e/v6e; <64MiB v7x
        cost_estimate=pl.CostEstimate(flops=int(flops), transcendentals=0,
                                      bytes_accessed=int(bytes_accessed)),
    )(*args)


# ----------------------------- XLA glue (cheap, ~1x volume) -----------------

def _prep_conv_input(x_nhwc, k, stride, pad):
    """Flattened padded (phase-decomposed if stride==2) bf16 image buffer.

    Returns (buf (N, rows, C), taps, m_sup, pitch, ho, wo).  The kernel's
    superset output row index is oh*pitch + ow; columns >= wo are garbage."""
    n, h, w, c = x_nhwc.shape
    ho = (h + 2 * pad - k) // stride + 1
    wo = (w + 2 * pad - k) // stride + 1
    if stride == 1:
        wp = w + 2 * pad
        hp = h + 2 * pad + (1 if k > 1 else 0)   # 1 extra zero row: slab overshoot
        xp = jnp.pad(x_nhwc, ((0, 0), (pad, hp - h - pad), (pad, pad), (0, 0)))
        buf = xp.reshape(n, hp * wp, c)
        taps = tuple(ih * wp + iw for ih in range(k) for iw in range(k))
        return buf, taps, ho * wp, wp, ho, wo
    elif stride == 2:
        half = (k - 1) // 2
        hq = max(_cdiv(h + 2 * pad, 2), ho + half + (1 if k > 1 else 0))
        wq = max(_cdiv(w + 2 * pad, 2), wo + half)
        hp2, wp2 = 2 * hq, 2 * wq
        xp = jnp.pad(x_nhwc,
                     ((0, 0), (pad, hp2 - h - pad), (pad, wp2 - w - pad), (0, 0)))
        # 4-phase space-to-depth: phase (a, b) holds rows a::2, cols b::2.
        xq = xp.reshape(n, hq, 2, wq, 2, c).transpose(0, 2, 4, 1, 3, 5)
        buf = xq.reshape(n, 4 * hq * wq, c)
        taps = tuple(((ih % 2) * 2 + (iw % 2)) * (hq * wq)
                     + (ih // 2) * wq + (iw // 2)
                     for ih in range(k) for iw in range(k))
        return buf, taps, ho * wq, wq, ho, wo
    else:
        raise NotImplementedError("stride must be 1 or 2")


def _prep_conv_weight(w_oihw, cin_pad, cout_pad):
    cout, cin, kh, kw = w_oihw.shape
    w = jnp.transpose(w_oihw, (2, 3, 1, 0)).reshape(kh * kw, cin, cout)
    w = jnp.pad(w, ((0, 0), (0, cin_pad - cin), (0, cout_pad - cout)))
    return w.astype(jnp.bfloat16)


def _to_superset_rows(t_nhwc, pitch):
    """Embed (N, Ho, Wo, C) into the kernel's (N, Ho*pitch, C) row layout."""
    n, ho, wo, c = t_nhwc.shape
    tp = jnp.pad(t_nhwc, ((0, 0), (0, 0), (0, pitch - wo), (0, 0)))
    return tp.reshape(n, ho * pitch, c)


def _from_superset_rows(t_sup, ho, pitch, wo, cout):
    n = t_sup.shape[0]
    return t_sup.reshape(n, ho, pitch, t_sup.shape[-1])[:, :, :wo, :cout]


# ----------------------------- BasicBlock ----------------------------------

def init_basic_block_params(key, in_planes, planes, stride):
    """Deterministic weights mirroring the nn.Module's shapes (bias=False)."""
    expansion = 1
    k1, k2, k3 = jax.random.split(key, 3)
    params = {
        "conv1": 0.1 * jax.random.normal(k1, (planes, in_planes, 3, 3), jnp.float32),
        "conv2": 0.1 * jax.random.normal(k2, (planes, planes, 3, 3), jnp.float32),
    }
    if stride != 1 or in_planes != expansion * planes:
        params["shortcut"] = 0.1 * jax.random.normal(
            k3, (expansion * planes, in_planes, 1, 1), jnp.float32)
    return params


@functools.partial(jax.jit, static_argnames=("stride",))
def basic_block_forward(x_nchw, params, stride):
    """Pallas-backed BasicBlock forward. Input/output are NCHW f32 (PyTorch)."""
    planes, in_planes = params["conv1"].shape[0], params["conv1"].shape[1]
    cin_pad = _round_up(in_planes, 128)
    cmid_pad = _round_up(planes, 128)

    x = jnp.transpose(x_nchw, (0, 2, 3, 1)).astype(jnp.bfloat16)   # NCHW -> NHWC
    x = jnp.pad(x, ((0, 0), (0, 0), (0, 0), (0, cin_pad - in_planes)))

    # ---- conv1: 3x3, stride=s, pad=1, fused ReLU, bf16 intermediate --------
    buf1, taps1, msup1, pitch1, ho1, wo1 = _prep_conv_input(x, 3, stride, 1)
    w1 = _prep_conv_weight(params["conv1"], cin_pad, cmid_pad)
    out1_sup = _implicit_conv(buf1, w1, taps1, msup1,
                              apply_relu=True, out_dtype=jnp.bfloat16)
    out1 = _from_superset_rows(out1_sup, ho1, pitch1, wo1, cmid_pad)  # NHWC, padded C

    # ---- conv2: 3x3, stride=1, pad=1 with the shortcut fused in-kernel -----
    buf2, taps2, msup2, pitch2, ho2, wo2 = _prep_conv_input(out1, 3, 1, 1)
    w2 = _prep_conv_weight(params["conv2"], cmid_pad, cmid_pad)

    if "shortcut" in params:
        # 1x1 stride-s shortcut conv: one extra MXU matmul on conv2's accumulator.
        xsc = x[:, 0:stride * (ho2 - 1) + 1:stride,
                0:stride * (wo2 - 1) + 1:stride, :]
        xsc_sup = _to_superset_rows(xsc, pitch2)
        wsc = jnp.pad(jnp.transpose(params["shortcut"][:, :, 0, 0], (1, 0)),
                      ((0, cin_pad - in_planes), (0, cmid_pad - planes)))
        out_sup = _implicit_conv(buf2, w2, taps2, msup2,
                                 shortcut=(xsc_sup, wsc.astype(jnp.bfloat16)),
                                 out_dtype=jnp.float32)
    else:
        # Identity shortcut. NOTE: residual is bf16 (reference adds f32 x);
        # the deliberate cast costs <0.5% rel. error, inside test tolerance.
        r_sup = _to_superset_rows(x, pitch2)
        out_sup = _implicit_conv(buf2, w2, taps2, msup2,
                                 residual=r_sup, out_dtype=jnp.float32)

    out = _from_superset_rows(out_sup, ho2, pitch2, wo2, planes)
    return jnp.transpose(out, (0, 3, 1, 2)).astype(jnp.float32)     # NHWC -> NCHW


# ----------------------------- reference & main ------------------------------

def _ref_forward(x, params, stride):
    """Pure-JAX f32 reference matching the PyTorch forward exactly."""
    def conv(x, w, s, pad):
        return jax.lax.conv_general_dilated(
            x, w, (s, s), [(pad, pad), (pad, pad)],
            dimension_numbers=("NCHW", "OIHW", "NCHW"))
    out = jax.nn.relu(conv(x, params["conv1"], stride, 1))
    out = conv(out, params["conv2"], 1, 1)
    sc = conv(x, params["shortcut"], stride, 0) if "shortcut" in params else x
    return jax.nn.relu(out + sc)


def _run_case(key, batch, in_planes, planes, stride, hw):
    kx, kp = jax.random.split(key)
    x = jax.random.normal(kx, (batch, in_planes, hw, hw), jnp.float32)
    params = init_basic_block_params(kp, in_planes, planes, stride)

    y = jax.block_until_ready(basic_block_forward(x, params, stride))
    y_ref = _ref_forward(x, params, stride)
    assert y.shape == y_ref.shape, (y.shape, y_ref.shape)
    # bf16 operands on the MXU (f32 accumulation) -> bf16-level tolerance.
    max_err = float(jnp.max(jnp.abs(y - y_ref)))
    assert jnp.allclose(y, y_ref, atol=5e-2, rtol=5e-2), ("mismatch", max_err)


if __name__ == "__main__":
    key = jax.random.PRNGKey(0)
    k1, k2, k3 = jax.random.split(key, 3)

    # stride=2, in!=out : 4-phase input + fused 1x1-conv shortcut path.
    _run_case(k1, batch=2, in_planes=4, planes=8, stride=2, hw=16)
    # stride=1, in==out : identity shortcut fused as a residual add.
    _run_case(k2, batch=2, in_planes=8, planes=8, stride=1, hw=16)
    # stride=1, in!=out : 1x1 shortcut conv without downsampling.
    _run_case(k3, batch=2, in_planes=4, planes=8, stride=1, hw=8)

    print("KERNEL_OK")
</pallas_src>

<mosaic_0001>
module attributes {stable_mosaic.version = 11 : i64} {
  func.func @_conv_kernel(%arg0: i32, %arg1: i32, %arg2: memref<1x360x128xbf16, #tpu.memory_space<vmem>>, %arg3: memref<9x128x128xbf16, #tpu.memory_space<vmem>>, %arg4: memref<1x72x128xbf16, #tpu.memory_space<vmem>>, %arg5: memref<72x128xf32, #tpu.memory_space<vmem>>) attributes {dimension_semantics = [#tpu.dimension_semantics<parallel>, #tpu.dimension_semantics<parallel>], iteration_bounds = array<i64: 2, 1>, scalar_prefetch = 0 : i64, scratch_operands = 1 : i64, tpu.core_type = #tpu.core_type<tc>, window_params = [{transform_indices = @transform_0, window_bounds = array<i64: 1, 360, 128>}, {transform_indices = @transform_1, window_bounds = array<i64: 9, 128, 128>}, {transform_indices = @transform_2, window_bounds = array<i64: 1, 72, 128>}]} {
    %c0 = arith.constant 0 : index
    %c0_0 = arith.constant 0 : index
    %c0_1 = arith.constant 0 : index
    %0 = vector.load %arg2[%c0, %c0_0, %c0_1] : memref<1x360x128xbf16, #tpu.memory_space<vmem>>, vector<1x72x128xbf16>
    %1 = vector.shape_cast %0 : vector<1x72x128xbf16> to vector<72x128xbf16>
    %c0_2 = arith.constant 0 : index
    %c0_3 = arith.constant 0 : index
    %c0_4 = arith.constant 0 : index
    %2 = vector.load %arg3[%c0_2, %c0_3, %c0_4] : memref<9x128x128xbf16, #tpu.memory_space<vmem>>, vector<1x128x128xbf16>
    %3 = vector.shape_cast %2 : vector<1x128x128xbf16> to vector<128x128xbf16>
    %cst = arith.constant dense<0.000000e+00> : vector<72x128xf32>
    %4 = tpu.matmul %1, %3, %cst {dimension_numbers = #tpu.dot_dimension_numbers<[1], [0], [0], [1], [0, 0, 1, 1], [], []>} : vector<72x128xbf16>, vector<128x128xbf16>, vector<72x128xf32> -> vector<72x128xf32>
    %c0_5 = arith.constant 0 : index
    %c0_6 = arith.constant 0 : index
    %5 = vector.load %arg5[%c0_5, %c0_6] : memref<72x128xf32, #tpu.memory_space<vmem>>, vector<72x128xf32>
    tpu.vector_store %arg5[%c0_5, %c0_6], %4 {strides = array<i32>} : memref<72x128xf32, #tpu.memory_space<vmem>>, vector<72x128xf32>,
    %c0_7 = arith.constant 0 : index
    %c90 = arith.constant 90 : index
    %c0_8 = arith.constant 0 : index
    %6 = vector.load %arg2[%c0_7, %c90, %c0_8] : memref<1x360x128xbf16, #tpu.memory_space<vmem>>, vector<1x72x128xbf16>
    %7 = vector.shape_cast %6 : vector<1x72x128xbf16> to vector<72x128xbf16>
    %c1 = arith.constant 1 : index
    %c0_9 = arith.constant 0 : index
    %c0_10 = arith.constant 0 : index
    %8 = vector.load %arg3[%c1, %c0_9, %c0_10] : memref<9x128x128xbf16, #tpu.memory_space<vmem>>, vector<1x128x128xbf16>
    %9 = vector.shape_cast %8 : vector<1x128x128xbf16> to vector<128x128xbf16>
    %cst_11 = arith.constant dense<0.000000e+00> : vector<72x128xf32>
    %10 = tpu.matmul %7, %9, %cst_11 {dimension_numbers = #tpu.dot_dimension_numbers<[1], [0], [0], [1], [0, 0, 1, 1], [], []>} : vector<72x128xbf16>, vector<128x128xbf16>, vector<72x128xf32> -> vector<72x128xf32>
    %c0_12 = arith.constant 0 : index
    %c0_13 = arith.constant 0 : index
    %11 = vector.load %arg5[%c0_12, %c0_13] : memref<72x128xf32, #tpu.memory_space<vmem>>, vector<72x128xf32>
    %12 = arith.addf %11, %10 : vector<72x128xf32>
    %c0_14 = arith.constant 0 : index
    %c0_15 = arith.constant 0 : index
    %13 = vector.load %arg5[%c0_14, %c0_15] : memref<72x128xf32, #tpu.memory_space<vmem>>, vector<72x128xf32>
    tpu.vector_store %arg5[%c0_14, %c0_15], %12 {strides = array<i32>} : memref<72x128xf32, #tpu.memory_space<vmem>>, vector<72x128xf32>,
    %c0_16 = arith.constant 0 : index
    %c1_17 = arith.constant 1 : index
    %c0_18 = arith.constant 0 : index
    %14 = vector.load %arg2[%c0_16, %c1_17, %c0_18] : memref<1x360x128xbf16, #tpu.memory_space<vmem>>, vector<1x72x128xbf16>
    %15 = vector.shape_cast %14 : vector<1x72x128xbf16> to vector<72x128xbf16>
    %c2 = arith.constant 2 : index
    %c0_19 = arith.constant 0 : index
    %c0_20 = arith.constant 0 : index
    %16 = vector.load %arg3[%c2, %c0_19, %c0_20] : memref<9x128x128xbf16, #tpu.memory_space<vmem>>, vector<1x128x128xbf16>
    %17 = vector.shape_cast %16 : vector<1x128x128xbf16> to vector<128x128xbf16>
    %cst_21 = arith.constant dense<0.000000e+00> : vector<72x128xf32>
    %18 = tpu.matmul %15, %17, %cst_21 {dimension_numbers = #tpu.dot_dimension_numbers<[1], [0], [0], [1], [0, 0, 1, 1], [], []>} : vector<72x128xbf16>, vector<128x128xbf16>, vector<72x128xf32> -> vector<72x128xf32>
    %c0_22 = arith.constant 0 : index
    %c0_23 = arith.constant 0 : index
    %19 = vector.load %arg5[%c0_22, %c0_23] : memref<72x128xf32, #tpu.memory_space<vmem>>, vector<72x128xf32>
    %20 = arith.addf %19, %18 : vector<72x128xf32>
    %c0_24 = arith.constant 0 : index
    %c0_25 = arith.constant 0 : index
    %21 = vector.load %arg5[%c0_24, %c0_25] : memref<72x128xf32, #tpu.memory_space<vmem>>, vector<72x128xf32>
    tpu.vector_store %arg5[%c0_24, %c0_25], %20 {strides = array<i32>} : memref<72x128xf32, #tpu.memory_space<vmem>>, vector<72x128xf32>,
    %c0_26 = arith.constant 0 : index
    %c180 = arith.constant 180 : index
    %c0_27 = arith.constant 0 : index
    %22 = vector.load %arg2[%c0_26, %c180, %c0_27] : memref<1x360x128xbf16, #tpu.memory_space<vmem>>, vector<1x72x128xbf16>
    %23 = vector.shape_cast %22 : vector<1x72x128xbf16> to vector<72x128xbf16>
    %c3 = arith.constant 3 : index
    %c0_28 = arith.constant 0 : index
    %c0_29 = arith.constant 0 : index
    %24 = vector.load %arg3[%c3, %c0_28, %c0_29] : memref<9x128x128xbf16, #tpu.memory_space<vmem>>, vector<1x128x128xbf16>
    %25 = vector.shape_cast %24 : vector<1x128x128xbf16> to vector<128x128xbf16>
    %cst_30 = arith.constant dense<0.000000e+00> : vector<72x128xf32>
    %26 = tpu.matmul %23, %25, %cst_30 {dimension_numbers = #tpu.dot_dimension_numbers<[1], [0], [0], [1], [0, 0, 1, 1], [], []>} : vector<72x128xbf16>, vector<128x128xbf16>, vector<72x128xf32> -> vector<72x128xf32>
    %c0_31 = arith.constant 0 : index
    %c0_32 = arith.constant 0 : index
    %27 = vector.load %arg5[%c0_31, %c0_32] : memref<72x128xf32, #tpu.memory_space<vmem>>, vector<72x128xf32>
    %28 = arith.addf %27, %26 : vector<72x128xf32>
    %c0_33 = arith.constant 0 : index
    %c0_34 = arith.constant 0 : index
    %29 = vector.load %arg5[%c0_33, %c0_34] : memref<72x128xf32, #tpu.memory_space<vmem>>, vector<72x128xf32>
    tpu.vector_store %arg5[%c0_33, %c0_34], %28 {strides = array<i32>} : memref<72x128xf32, #tpu.memory_space<vmem>>, vector<72x128xf32>,
    %c0_35 = arith.constant 0 : index
    %c270 = arith.constant 270 : index
    %c0_36 = arith.constant 0 : index
    %30 = vector.load %arg2[%c0_35, %c270, %c0_36] : memref<1x360x128xbf16, #tpu.memory_space<vmem>>, vector<1x72x128xbf16>
    %31 = vector.shape_cast %30 : vector<1x72x128xbf16> to vector<72x128xbf16>
    %c4 = arith.constant 4 : index
    %c0_37 = arith.constant 0 : index
    %c0_38 = arith.constant 0 : index
    %32 = vector.load %arg3[%c4, %c0_37, %c0_38] : memref<9x128x128xbf16, #tpu.memory_space<vmem>>, vector<1x128x128xbf16>
    %33 = vector.shape_cast %32 : vector<1x128x128xbf16> to vector<128x128xbf16>
    %cst_39 = arith.constant dense<0.000000e+00> : vector<72x128xf32>
    %34 = tpu.matmul %31, %33, %cst_39 {dimension_numbers = #tpu.dot_dimension_numbers<[1], [0], [0], [1], [0, 0, 1, 1], [], []>} : vector<72x128xbf16>, vector<128x128xbf16>, vector<72x128xf32> -> vector<72x128xf32>
    %c0_40 = arith.constant 0 : index
    %c0_41 = arith.constant 0 : index
    %35 = vector.load %arg5[%c0_40, %c0_41] : memref<72x128xf32, #tpu.memory_space<vmem>>, vector<72x128xf32>
    %36 = arith.addf %35, %34 : vector<72x128xf32>
    %c0_42 = arith.constant 0 : index
    %c0_43 = arith.constant 0 : index
    %37 = vector.load %arg5[%c0_42, %c0_43] : memref<72x128xf32, #tpu.memory_space<vmem>>, vector<72x128xf32>
    tpu.vector_store %arg5[%c0_42, %c0_43], %36 {strides = array<i32>} : memref<72x128xf32, #tpu.memory_space<vmem>>, vector<72x128xf32>,
    %c0_44 = arith.constant 0 : index
    %c181 = arith.constant 181 : index
    %c0_45 = arith.constant 0 : index
    %38 = vector.load %arg2[%c0_44, %c181, %c0_45] : memref<1x360x128xbf16, #tpu.memory_space<vmem>>, vector<1x72x128xbf16>
    %39 = vector.shape_cast %38 : vector<1x72x128xbf16> to vector<72x128xbf16>
    %c5 = arith.constant 5 : index
    %c0_46 = arith.constant 0 : index
    %c0_47 = arith.constant 0 : index
    %40 = vector.load %arg3[%c5, %c0_46, %c0_47] : memref<9x128x128xbf16, #tpu.memory_space<vmem>>, vector<1x128x128xbf16>
    %41 = vector.shape_cast %40 : vector<1x128x128xbf16> to vector<128x128xbf16>
    %cst_48 = arith.constant dense<0.000000e+00> : vector<72x128xf32>
    %42 = tpu.matmul %39, %41, %cst_48 {dimension_numbers = #tpu.dot_dimension_numbers<[1], [0], [0], [1], [0, 0, 1, 1], [], []>} : vector<72x128xbf16>, vector<128x128xbf16>, vector<72x128xf32> -> vector<72x128xf32>
    %c0_49 = arith.constant 0 : index
    %c0_50 = arith.constant 0 : index
    %43 = vector.load %arg5[%c0_49, %c0_50] : memref<72x128xf32, #tpu.memory_space<vmem>>, vector<72x128xf32>
    %44 = arith.addf %43, %42 : vector<72x128xf32>
    %c0_51 = arith.constant 0 : index
    %c0_52 = arith.constant 0 : index
    %45 = vector.load %arg5[%c0_51, %c0_52] : memref<72x128xf32, #tpu.memory_space<vmem>>, vector<72x128xf32>
    tpu.vector_store %arg5[%c0_51, %c0_52], %44 {strides = array<i32>} : memref<72x128xf32, #tpu.memory_space<vmem>>, vector<72x128xf32>,
    %c0_53 = arith.constant 0 : index
    %c9 = arith.constant 9 : index
    %c0_54 = arith.constant 0 : index
    %46 = vector.load %arg2[%c0_53, %c9, %c0_54] : memref<1x360x128xbf16, #tpu.memory_space<vmem>>, vector<1x72x128xbf16>
    %47 = vector.shape_cast %46 : vector<1x72x128xbf16> to vector<72x128xbf16>
    %c6 = arith.constant 6 : index
    %c0_55 = arith.constant 0 : index
    %c0_56 = arith.constant 0 : index
    %48 = vector.load %arg3[%c6, %c0_55, %c0_56] : memref<9x128x128xbf16, #tpu.memory_space<vmem>>, vector<1x128x128xbf16>
    %49 = vector.shape_cast %48 : vector<1x128x128xbf16> to vector<128x128xbf16>
    %cst_57 = arith.constant dense<0.000000e+00> : vector<72x128xf32>
    %50 = tpu.matmul %47, %49, %cst_57 {dimension_numbers = #tpu.dot_dimension_numbers<[1], [0], [0], [1], [0, 0, 1, 1], [], []>} : vector<72x128xbf16>, vector<128x128xbf16>, vector<72x128xf32> -> vector<72x128xf32>
    %c0_58 = arith.constant 0 : index
    %c0_59 = arith.constant 0 : index
    %51 = vector.load %arg5[%c0_58, %c0_59] : memref<72x128xf32, #tpu.memory_space<vmem>>, vector<72x128xf32>
    %52 = arith.addf %51, %50 : vector<72x128xf32>
    %c0_60 = arith.constant 0 : index
    %c0_61 = arith.constant 0 : index
    %53 = vector.load %arg5[%c0_60, %c0_61] : memref<72x128xf32, #tpu.memory_space<vmem>>, vector<72x128xf32>
    tpu.vector_store %arg5[%c0_60, %c0_61], %52 {strides = array<i32>} : memref<72x128xf32, #tpu.memory_space<vmem>>, vector<72x128xf32>,
    %c0_62 = arith.constant 0 : index
    %c99 = arith.constant 99 : index
    %c0_63 = arith.constant 0 : index
    %54 = vector.load %arg2[%c0_62, %c99, %c0_63] : memref<1x360x128xbf16, #tpu.memory_space<vmem>>, vector<1x72x128xbf16>
    %55 = vector.shape_cast %54 : vector<1x72x128xbf16> to vector<72x128xbf16>
    %c7 = arith.constant 7 : index
    %c0_64 = arith.constant 0 : index
    %c0_65 = arith.constant 0 : index
    %56 = vector.load %arg3[%c7, %c0_64, %c0_65] : memref<9x128x128xbf16, #tpu.memory_space<vmem>>, vector<1x128x128xbf16>
    %57 = vector.shape_cast %56 : vector<1x128x128xbf16> to vector<128x128xbf16>
    %cst_66 = arith.constant dense<0.000000e+00> : vector<72x128xf32>
    %58 = tpu.matmul %55, %57, %cst_66 {dimension_numbers = #tpu.dot_dimension_numbers<[1], [0], [0], [1], [0, 0, 1, 1], [], []>} : vector<72x128xbf16>, vector<128x128xbf16>, vector<72x128xf32> -> vector<72x128xf32>
    %c0_67 = arith.constant 0 : index
    %c0_68 = arith.constant 0 : index
    %59 = vector.load %arg5[%c0_67, %c0_68] : memref<72x128xf32, #tpu.memory_space<vmem>>, vector<72x128xf32>
    %60 = arith.addf %59, %58 : vector<72x128xf32>
    %c0_69 = arith.constant 0 : index
    %c0_70 = arith.constant 0 : index
    %61 = vector.load %arg5[%c0_69, %c0_70] : memref<72x128xf32, #tpu.memory_space<vmem>>, vector<72x128xf32>
    tpu.vector_store %arg5[%c0_69, %c0_70], %60 {strides = array<i32>} : memref<72x128xf32, #tpu.memory_space<vmem>>, vector<72x128xf32>,
    %c0_71 = arith.constant 0 : index
    %c10 = arith.constant 10 : index
    %c0_72 = arith.constant 0 : index
    %62 = vector.load %arg2[%c0_71, %c10, %c0_72] : memref<1x360x128xbf16, #tpu.memory_space<vmem>>, vector<1x72x128xbf16>
    %63 = vector.shape_cast %62 : vector<1x72x128xbf16> to vector<72x128xbf16>
    %c8 = arith.constant 8 : index
    %c0_73 = arith.constant 0 : index
    %c0_74 = arith.constant 0 : index
    %64 = vector.load %arg3[%c8, %c0_73, %c0_74] : memref<9x128x128xbf16, #tpu.memory_space<vmem>>, vector<1x128x128xbf16>
    %65 = vector.shape_cast %64 : vector<1x128x128xbf16> to vector<128x128xbf16>
    %cst_75 = arith.constant dense<0.000000e+00> : vector<72x128xf32>
    %66 = tpu.matmul %63, %65, %cst_75 {dimension_numbers = #tpu.dot_dimension_numbers<[1], [0], [0], [1], [0, 0, 1, 1], [], []>} : vector<72x128xbf16>, vector<128x128xbf16>, vector<72x128xf32> -> vector<72x128xf32>
    %c0_76 = arith.constant 0 : index
    %c0_77 = arith.constant 0 : index
    %67 = vector.load %arg5[%c0_76, %c0_77] : memref<72x128xf32, #tpu.memory_space<vmem>>, vector<72x128xf32>
    %68 = arith.addf %67, %66 : vector<72x128xf32>
    %c0_78 = arith.constant 0 : index
    %c0_79 = arith.constant 0 : index
    %69 = vector.load %arg5[%c0_78, %c0_79] : memref<72x128xf32, #tpu.memory_space<vmem>>, vector<72x128xf32>
    tpu.vector_store %arg5[%c0_78, %c0_79], %68 {strides = array<i32>} : memref<72x128xf32, #tpu.memory_space<vmem>>, vector<72x128xf32>,
    %c0_80 = arith.constant 0 : index
    %c0_81 = arith.constant 0 : index
    %70 = vector.load %arg5[%c0_80, %c0_81] : memref<72x128xf32, #tpu.memory_space<vmem>>, vector<72x128xf32>
    %cst_82 = arith.constant 0.000000e+00 : f32
    %71 = vector.broadcast %cst_82 : f32 to vector<72x128xf32>
    %72 = arith.maximumf %70, %71 : vector<72x128xf32>
    %73 = arith.truncf %72 : vector<72x128xf32> to vector<72x128xbf16>
    %c0_83 = arith.constant 0 : index
    %c0_84 = arith.constant 0 : index
    %c0_85 = arith.constant 0 : index
    %74 = vector.load %arg4[%c0_83, %c0_84, %c0_85] : memref<1x72x128xbf16, #tpu.memory_space<vmem>>, vector<1x72x128xbf16>
    %75 = vector.shape_cast %74 : vector<1x72x128xbf16> to vector<72x128xbf16>
    %76 = vector.shape_cast %73 : vector<72x128xbf16> to vector<1x72x128xbf16>
    tpu.vector_store %arg4[%c0_83, %c0_84, %c0_85], %76 {strides = array<i32>} : memref<1x72x128xbf16, #tpu.memory_space<vmem>>, vector<1x72x128xbf16>,
    return
  }
  func.func @transform_0(%arg0: i32, %arg1: i32) -> (i32, i32, i32) {
    %c0_i32 = arith.constant 0 : i32
    %c0_i32_0 = arith.constant 0 : i32
    %c0_i32_1 = arith.constant 0 : i32
    return %arg0, %c0_i32, %c0_i32_0 : i32, i32, i32
  }
  func.func @transform_1(%arg0: i32, %arg1: i32) -> (i32, i32, i32) {
    %c0_i32 = arith.constant 0 : i32
    %c0_i32_0 = arith.constant 0 : i32
    %c0_i32_1 = arith.constant 0 : i32
    return %c0_i32, %c0_i32_0, %arg1 : i32, i32, i32
  }
  func.func @transform_2(%arg0: i32, %arg1: i32) -> (i32, i32, i32) {
    %c0_i32 = arith.constant 0 : i32
    %c0_i32_0 = arith.constant 0 : i32
    return %arg0, %c0_i32, %arg1 : i32, i32, i32
  }
}

module attributes {stable_mosaic.version = 11 : i64} {
  func.func @_conv_scconv_relu_kernel(%arg0: i32, %arg1: i32, %arg2: memref<1x110x128xbf16, #tpu.memory_space<vmem>>, %arg3: memref<9x128x128xbf16, #tpu.memory_space<vmem>>, %arg4: memref<1x80x128xbf16, #tpu.memory_space<vmem>>, %arg5: memref<128x128xbf16, #tpu.memory_space<vmem>>, %arg6: memref<1x80x128xf32, #tpu.memory_space<vmem>>, %arg7: memref<80x128xf32, #tpu.memory_space<vmem>>) attributes {dimension_semantics = [#tpu.dimension_semantics<parallel>, #tpu.dimension_semantics<parallel>], iteration_bounds = array<i64: 2, 1>, scalar_prefetch = 0 : i64, scratch_operands = 1 : i64, tpu.core_type = #tpu.core_type<tc>, window_params = [{transform_indices = @transform_0, window_bounds = array<i64: 1, 110, 128>}, {transform_indices = @transform_1, window_bounds = array<i64: 9, 128, 128>}, {transform_indices = @transform_2, window_bounds = array<i64: 1, 80, 128>}, {transform_indices = @transform_3, window_bounds = array<i64: 128, 128>}, {transform_indices = @transform_4, window_bounds = array<i64: 1, 80, 128>}]} {
    %c0 = arith.constant 0 : index
    %c0_0 = arith.constant 0 : index
    %c0_1 = arith.constant 0 : index
    %0 = vector.load %arg2[%c0, %c0_0, %c0_1] : memref<1x110x128xbf16, #tpu.memory_space<vmem>>, vector<1x80x128xbf16>
    %1 = vector.shape_cast %0 : vector<1x80x128xbf16> to vector<80x128xbf16>
    %c0_2 = arith.constant 0 : index
    %c0_3 = arith.constant 0 : index
    %c0_4 = arith.constant 0 : index
    %2 = vector.load %arg3[%c0_2, %c0_3, %c0_4] : memref<9x128x128xbf16, #tpu.memory_space<vmem>>, vector<1x128x128xbf16>
    %3 = vector.shape_cast %2 : vector<1x128x128xbf16> to vector<128x128xbf16>
    %cst = arith.constant dense<0.000000e+00> : vector<80x128xf32>
    %4 = tpu.matmul %1, %3, %cst {dimension_numbers = #tpu.dot_dimension_numbers<[1], [0], [0], [1], [0, 0, 1, 1], [], []>} : vector<80x128xbf16>, vector<128x128xbf16>, vector<80x128xf32> -> vector<80x128xf32>
    %c0_5 = arith.constant 0 : index
    %c0_6 = arith.constant 0 : index
    %5 = vector.load %arg7[%c0_5, %c0_6] : memref<80x128xf32, #tpu.memory_space<vmem>>, vector<80x128xf32>
    tpu.vector_store %arg7[%c0_5, %c0_6], %4 {strides = array<i32>} : memref<80x128xf32, #tpu.memory_space<vmem>>, vector<80x128xf32>,
    %c0_7 = arith.constant 0 : index
    %c1 = arith.constant 1 : index
    %c0_8 = arith.constant 0 : index
    %6 = vector.load %arg2[%c0_7, %c1, %c0_8] : memref<1x110x128xbf16, #tpu.memory_space<vmem>>, vector<1x80x128xbf16>
    %7 = vector.shape_cast %6 : vector<1x80x128xbf16> to vector<80x128xbf16>
    %c1_9 = arith.constant 1 : index
    %c0_10 = arith.constant 0 : index
    %c0_11 = arith.constant 0 : index
    %8 = vector.load %arg3[%c1_9, %c0_10, %c0_11] : memref<9x128x128xbf16, #tpu.memory_space<vmem>>, vector<1x128x128xbf16>
    %9 = vector.shape_cast %8 : vector<1x128x128xbf16> to vector<128x128xbf16>
    %cst_12 = arith.constant dense<0.000000e+00> : vector<80x128xf32>
    %10 = tpu.matmul %7, %9, %cst_12 {dimension_numbers = #tpu.dot_dimension_numbers<[1], [0], [0], [1], [0, 0, 1, 1], [], []>} : vector<80x128xbf16>, vector<128x128xbf16>, vector<80x128xf32> -> vector<80x128xf32>
    %c0_13 = arith.constant 0 : index
    %c0_14 = arith.constant 0 : index
    %11 = vector.load %arg7[%c0_13, %c0_14] : memref<80x128xf32, #tpu.memory_space<vmem>>, vector<80x128xf32>
    %12 = arith.addf %11, %10 : vector<80x128xf32>
    %c0_15 = arith.constant 0 : index
    %c0_16 = arith.constant 0 : index
    %13 = vector.load %arg7[%c0_15, %c0_16] : memref<80x128xf32, #tpu.memory_space<vmem>>, vector<80x128xf32>
    tpu.vector_store %arg7[%c0_15, %c0_16], %12 {strides = array<i32>} : memref<80x128xf32, #tpu.memory_space<vmem>>, vector<80x128xf32>,
    %c0_17 = arith.constant 0 : index
    %c2 = arith.constant 2 : index
    %c0_18 = arith.constant 0 : index
    %14 = vector.load %arg2[%c0_17, %c2, %c0_18] : memref<1x110x128xbf16, #tpu.memory_space<vmem>>, vector<1x80x128xbf16>
    %15 = vector.shape_cast %14 : vector<1x80x128xbf16> to vector<80x128xbf16>
    %c2_19 = arith.constant 2 : index
    %c0_20 = arith.constant 0 : index
    %c0_21 = arith.constant 0 : index
    %16 = vector.load %arg3[%c2_19, %c0_20, %c0_21] : memref<9x128x128xbf16, #tpu.memory_space<vmem>>, vector<1x128x128xbf16>
    %17 = vector.shape_cast %16 : vector<1x128x128xbf16> to vector<128x128xbf16>
    %cst_22 = arith.constant dense<0.000000e+00> : vector<80x128xf32>
    %18 = tpu.matmul %15, %17, %cst_22 {dimension_numbers = #tpu.dot_dimension_numbers<[1], [0], [0], [1], [0, 0, 1, 1], [], []>} : vector<80x128xbf16>, vector<128x128xbf16>, vector<80x128xf32> -> vector<80x128xf32>
    %c0_23 = arith.constant 0 : index
    %c0_24 = arith.constant 0 : index
    %19 = vector.load %arg7[%c0_23, %c0_24] : memref<80x128xf32, #tpu.memory_space<vmem>>, vector<80x128xf32>
    %20 = arith.addf %19, %18 : vector<80x128xf32>
    %c0_25 = arith.constant 0 : index
    %c0_26 = arith.constant 0 : index
    %21 = vector.load %arg7[%c0_25, %c0_26] : memref<80x128xf32, #tpu.memory_space<vmem>>, vector<80x128xf32>
    tpu.vector_store %arg7[%c0_25, %c0_26], %20 {strides = array<i32>} : memref<80x128xf32, #tpu.memory_space<vmem>>, vector<80x128xf32>,
    %c0_27 = arith.constant 0 : index
    %c10 = arith.constant 10 : index
    %c0_28 = arith.constant 0 : index
    %22 = vector.load %arg2[%c0_27, %c10, %c0_28] : memref<1x110x128xbf16, #tpu.memory_space<vmem>>, vector<1x80x128xbf16>
    %23 = vector.shape_cast %22 : vector<1x80x128xbf16> to vector<80x128xbf16>
    %c3 = arith.constant 3 : index
    %c0_29 = arith.constant 0 : index
    %c0_30 = arith.constant 0 : index
    %24 = vector.load %arg3[%c3, %c0_29, %c0_30] : memref<9x128x128xbf16, #tpu.memory_space<vmem>>, vector<1x128x128xbf16>
    %25 = vector.shape_cast %24 : vector<1x128x128xbf16> to vector<128x128xbf16>
    %cst_31 = arith.constant dense<0.000000e+00> : vector<80x128xf32>
    %26 = tpu.matmul %23, %25, %cst_31 {dimension_numbers = #tpu.dot_dimension_numbers<[1], [0], [0], [1], [0, 0, 1, 1], [], []>} : vector<80x128xbf16>, vector<128x128xbf16>, vector<80x128xf32> -> vector<80x128xf32>
    %c0_32 = arith.constant 0 : index
    %c0_33 = arith.constant 0 : index
    %27 = vector.load %arg7[%c0_32, %c0_33] : memref<80x128xf32, #tpu.memory_space<vmem>>, vector<80x128xf32>
    %28 = arith.addf %27, %26 : vector<80x128xf32>
    %c0_34 = arith.constant 0 : index
    %c0_35 = arith.constant 0 : index
    %29 = vector.load %arg7[%c0_34, %c0_35] : memref<80x128xf32, #tpu.memory_space<vmem>>, vector<80x128xf32>
    tpu.vector_store %arg7[%c0_34, %c0_35], %28 {strides = array<i32>} : memref<80x128xf32, #tpu.memory_space<vmem>>, vector<80x128xf32>,
    %c0_36 = arith.constant 0 : index
    %c11 = arith.constant 11 : index
    %c0_37 = arith.constant 0 : index
    %30 = vector.load %arg2[%c0_36, %c11, %c0_37] : memref<1x110x128xbf16, #tpu.memory_space<vmem>>, vector<1x80x128xbf16>
    %31 = vector.shape_cast %30 : vector<1x80x128xbf16> to vector<80x128xbf16>
    %c4 = arith.constant 4 : index
    %c0_38 = arith.constant 0 : index
    %c0_39 = arith.constant 0 : index
    %32 = vector.load %arg3[%c4, %c0_38, %c0_39] : memref<9x128x128xbf16, #tpu.memory_space<vmem>>, vector<1x128x128xbf16>
    %33 = vector.shape_cast %32 : vector<1x128x128xbf16> to vector<128x128xbf16>
    %cst_40 = arith.constant dense<0.000000e+00> : vector<80x128xf32>
    %34 = tpu.matmul %31, %33, %cst_40 {dimension_numbers = #tpu.dot_dimension_numbers<[1], [0], [0], [1], [0, 0, 1, 1], [], []>} : vector<80x128xbf16>, vector<128x128xbf16>, vector<80x128xf32> -> vector<80x128xf32>
    %c0_41 = arith.constant 0 : index
    %c0_42 = arith.constant 0 : index
    %35 = vector.load %arg7[%c0_41, %c0_42] : memref<80x128xf32, #tpu.memory_space<vmem>>, vector<80x128xf32>
    %36 = arith.addf %35, %34 : vector<80x128xf32>
    %c0_43 = arith.constant 0 : index
    %c0_44 = arith.constant 0 : index
    %37 = vector.load %arg7[%c0_43, %c0_44] : memref<80x128xf32, #tpu.memory_space<vmem>>, vector<80x128xf32>
    tpu.vector_store %arg7[%c0_43, %c0_44], %36 {strides = array<i32>} : memref<80x128xf32, #tpu.memory_space<vmem>>, vector<80x128xf32>,
    %c0_45 = arith.constant 0 : index
    %c12 = arith.constant 12 : index
    %c0_46 = arith.constant 0 : index
    %38 = vector.load %arg2[%c0_45, %c12, %c0_46] : memref<1x110x128xbf16, #tpu.memory_space<vmem>>, vector<1x80x128xbf16>
    %39 = vector.shape_cast %38 : vector<1x80x128xbf16> to vector<80x128xbf16>
    %c5 = arith.constant 5 : index
    %c0_47 = arith.constant 0 : index
    %c0_48 = arith.constant 0 : index
    %40 = vector.load %arg3[%c5, %c0_47, %c0_48] : memref<9x128x128xbf16, #tpu.memory_space<vmem>>, vector<1x128x128xbf16>
    %41 = vector.shape_cast %40 : vector<1x128x128xbf16> to vector<128x128xbf16>
    %cst_49 = arith.constant dense<0.000000e+00> : vector<80x128xf32>
    %42 = tpu.matmul %39, %41, %cst_49 {dimension_numbers = #tpu.dot_dimension_numbers<[1], [0], [0], [1], [0, 0, 1, 1], [], []>} : vector<80x128xbf16>, vector<128x128xbf16>, vector<80x128xf32> -> vector<80x128xf32>
    %c0_50 = arith.constant 0 : index
    %c0_51 = arith.constant 0 : index
    %43 = vector.load %arg7[%c0_50, %c0_51] : memref<80x128xf32, #tpu.memory_space<vmem>>, vector<80x128xf32>
    %44 = arith.addf %43, %42 : vector<80x128xf32>
    %c0_52 = arith.constant 0 : index
    %c0_53 = arith.constant 0 : index
    %45 = vector.load %arg7[%c0_52, %c0_53] : memref<80x128xf32, #tpu.memory_space<vmem>>, vector<80x128xf32>
    tpu.vector_store %arg7[%c0_52, %c0_53], %44 {strides = array<i32>} : memref<80x128xf32, #tpu.memory_space<vmem>>, vector<80x128xf32>,
    %c0_54 = arith.constant 0 : index
    %c20 = arith.constant 20 : index
    %c0_55 = arith.constant 0 : index
    %46 = vector.load %arg2[%c0_54, %c20, %c0_55] : memref<1x110x128xbf16, #tpu.memory_space<vmem>>, vector<1x80x128xbf16>
    %47 = vector.shape_cast %46 : vector<1x80x128xbf16> to vector<80x128xbf16>
    %c6 = arith.constant 6 : index
    %c0_56 = arith.constant 0 : index
    %c0_57 = arith.constant 0 : index
    %48 = vector.load %arg3[%c6, %c0_56, %c0_57] : memref<9x128x128xbf16, #tpu.memory_space<vmem>>, vector<1x128x128xbf16>
    %49 = vector.shape_cast %48 : vector<1x128x128xbf16> to vector<128x128xbf16>
    %cst_58 = arith.constant dense<0.000000e+00> : vector<80x128xf32>
    %50 = tpu.matmul %47, %49, %cst_58 {dimension_numbers = #tpu.dot_dimension_numbers<[1], [0], [0], [1], [0, 0, 1, 1], [], []>} : vector<80x128xbf16>, vector<128x128xbf16>, vector<80x128xf32> -> vector<80x128xf32>
    %c0_59 = arith.constant 0 : index
    %c0_60 = arith.constant 0 : index
    %51 = vector.load %arg7[%c0_59, %c0_60] : memref<80x128xf32, #tpu.memory_space<vmem>>, vector<80x128xf32>
    %52 = arith.addf %51, %50 : vector<80x128xf32>
    %c0_61 = arith.constant 0 : index
    %c0_62 = arith.constant 0 : index
    %53 = vector.load %arg7[%c0_61, %c0_62] : memref<80x128xf32, #tpu.memory_space<vmem>>, vector<80x128xf32>
    tpu.vector_store %arg7[%c0_61, %c0_62], %52 {strides = array<i32>} : memref<80x128xf32, #tpu.memory_space<vmem>>, vector<80x128xf32>,
    %c0_63 = arith.constant 0 : index
    %c21 = arith.constant 21 : index
    %c0_64 = arith.constant 0 : index
    %54 = vector.load %arg2[%c0_63, %c21, %c0_64] : memref<1x110x128xbf16, #tpu.memory_space<vmem>>, vector<1x80x128xbf16>
    %55 = vector.shape_cast %54 : vector<1x80x128xbf16> to vector<80x128xbf16>
    %c7 = arith.constant 7 : index
    %c0_65 = arith.constant 0 : index
    %c0_66 = arith.constant 0 : index
    %56 = vector.load %arg3[%c7, %c0_65, %c0_66] : memref<9x128x128xbf16, #tpu.memory_space<vmem>>, vector<1x128x128xbf16>
    %57 = vector.shape_cast %56 : vector<1x128x128xbf16> to vector<128x128xbf16>
    %cst_67 = arith.constant dense<0.000000e+00> : vector<80x128xf32>
    %58 = tpu.matmul %55, %57, %cst_67 {dimension_numbers = #tpu.dot_dimension_numbers<[1], [0], [0], [1], [0, 0, 1, 1], [], []>} : vector<80x128xbf16>, vector<128x128xbf16>, vector<80x128xf32> -> vector<80x128xf32>
    %c0_68 = arith.constant 0 : index
    %c0_69 = arith.constant 0 : index
    %59 = vector.load %arg7[%c0_68, %c0_69] : memref<80x128xf32, #tpu.memory_space<vmem>>, vector<80x128xf32>
    %60 = arith.addf %59, %58 : vector<80x128xf32>
    %c0_70 = arith.constant 0 : index
    %c0_71 = arith.constant 0 : index
    %61 = vector.load %arg7[%c0_70, %c0_71] : memref<80x128xf32, #tpu.memory_space<vmem>>, vector<80x128xf32>
    tpu.vector_store %arg7[%c0_70, %c0_71], %60 {strides = array<i32>} : memref<80x128xf32, #tpu.memory_space<vmem>>, vector<80x128xf32>,
    %c0_72 = arith.constant 0 : index
    %c22 = arith.constant 22 : index
    %c0_73 = arith.constant 0 : index
    %62 = vector.load %arg2[%c0_72, %c22, %c0_73] : memref<1x110x128xbf16, #tpu.memory_space<vmem>>, vector<1x80x128xbf16>
    %63 = vector.shape_cast %62 : vector<1x80x128xbf16> to vector<80x128xbf16>
    %c8 = arith.constant 8 : index
    %c0_74 = arith.constant 0 : index
    %c0_75 = arith.constant 0 : index
    %64 = vector.load %arg3[%c8, %c0_74, %c0_75] : memref<9x128x128xbf16, #tpu.memory_space<vmem>>, vector<1x128x128xbf16>
    %65 = vector.shape_cast %64 : vector<1x128x128xbf16> to vector<128x128xbf16>
    %cst_76 = arith.constant dense<0.000000e+00> : vector<80x128xf32>
    %66 = tpu.matmul %63, %65, %cst_76 {dimension_numbers = #tpu.dot_dimension_numbers<[1], [0], [0], [1], [0, 0, 1, 1], [], []>} : vector<80x128xbf16>, vector<128x128xbf16>, vector<80x128xf32> -> vector<80x128xf32>
    %c0_77 = arith.constant 0 : index
    %c0_78 = arith.constant 0 : index
    %67 = vector.load %arg7[%c0_77, %c0_78] : memref<80x128xf32, #tpu.memory_space<vmem>>, vector<80x128xf32>
    %68 = arith.addf %67, %66 : vector<80x128xf32>
    %c0_79 = arith.constant 0 : index
    %c0_80 = arith.constant 0 : index
    %69 = vector.load %arg7[%c0_79, %c0_80] : memref<80x128xf32, #tpu.memory_space<vmem>>, vector<80x128xf32>
    tpu.vector_store %arg7[%c0_79, %c0_80], %68 {strides = array<i32>} : memref<80x128xf32, #tpu.memory_space<vmem>>, vector<80x128xf32>,
    %c0_81 = arith.constant 0 : index
    %c0_82 = arith.constant 0 : index
    %70 = vector.load %arg7[%c0_81, %c0_82] : memref<80x128xf32, #tpu.memory_space<vmem>>, vector<80x128xf32>
    %c0_83 = arith.constant 0 : index
    %c0_84 = arith.constant 0 : index
    %c0_85 = arith.constant 0 : index
    %71 = vector.load %arg4[%c0_83, %c0_84, %c0_85] : memref<1x80x128xbf16, #tpu.memory_space<vmem>>, vector<1x80x128xbf16>
    %72 = vector.shape_cast %71 : vector<1x80x128xbf16> to vector<80x128xbf16>
    %c0_86 = arith.constant 0 : index
    %c0_87 = arith.constant 0 : index
    %73 = vector.load %arg5[%c0_86, %c0_87] : memref<128x128xbf16, #tpu.memory_space<vmem>>, vector<128x128xbf16>
    %cst_88 = arith.constant dense<0.000000e+00> : vector<80x128xf32>
    %74 = tpu.matmul %72, %73, %cst_88 {dimension_numbers = #tpu.dot_dimension_numbers<[1], [0], [0], [1], [0, 0, 1, 1], [], []>} : vector<80x128xbf16>, vector<128x128xbf16>, vector<80x128xf32> -> vector<80x128xf32>
    %75 = arith.addf %70, %74 : vector<80x128xf32>
    %c0_89 = arith.constant 0 : index
    %c0_90 = arith.constant 0 : index
    %76 = vector.load %arg7[%c0_89, %c0_90] : memref<80x128xf32, #tpu.memory_space<vmem>>, vector<80x128xf32>
    tpu.vector_store %arg7[%c0_89, %c0_90], %75 {strides = array<i32>} : memref<80x128xf32, #tpu.memory_space<vmem>>, vector<80x128xf32>,
    %c0_91 = arith.constant 0 : index
    %c0_92 = arith.constant 0 : index
    %77 = vector.load %arg7[%c0_91, %c0_92] : memref<80x128xf32, #tpu.memory_space<vmem>>, vector<80x128xf32>
    %cst_93 = arith.constant 0.000000e+00 : f32
    %78 = vector.broadcast %cst_93 : f32 to vector<80x128xf32>
    %79 = arith.maximumf %77, %78 : vector<80x128xf32>
    %c0_94 = arith.constant 0 : index
    %c0_95 = arith.constant 0 : index
    %c0_96 = arith.constant 0 : index
    %80 = vector.load %arg6[%c0_94, %c0_95, %c0_96] : memref<1x80x128xf32, #tpu.memory_space<vmem>>, vector<1x80x128xf32>
    %81 = vector.shape_cast %80 : vector<1x80x128xf32> to vector<80x128xf32>
    %82 = vector.shape_cast %79 : vector<80x128xf32> to vector<1x80x128xf32>
    tpu.vector_store %arg6[%c0_94, %c0_95, %c0_96], %82 {strides = array<i32>} : memref<1x80x128xf32, #tpu.memory_space<vmem>>, vector<1x80x128xf32>,
    return
  }
  func.func @transform_0(%arg0: i32, %arg1: i32) -> (i32, i32, i32) {
    %c0_i32 = arith.constant 0 : i32
    %c0_i32_0 = arith.constant 0 : i32
    %c0_i32_1 = arith.constant 0 : i32
    return %arg0, %c0_i32, %c0_i32_0 : i32, i32, i32
  }
  func.func @transform_1(%arg0: i32, %arg1: i32) -> (i32, i32, i32) {
    %c0_i32 = arith.constant 0 : i32
    %c0_i32_0 = arith.constant 0 : i32
    %c0_i32_1 = arith.constant 0 : i32
    return %c0_i32, %c0_i32_0, %arg1 : i32, i32, i32
  }
  func.func @transform_2(%arg0: i32, %arg1: i32) -> (i32, i32, i32) {
    %c0_i32 = arith.constant 0 : i32
    %c0_i32_0 = arith.constant 0 : i32
    %c0_i32_1 = arith.constant 0 : i32
    return %arg0, %c0_i32, %c0_i32_0 : i32, i32, i32
  }
  func.func @transform_3(%arg0: i32, %arg1: i32) -> (i32, i32) {
    %c0_i32 = arith.constant 0 : i32
    %c0_i32_0 = arith.constant 0 : i32
    return %c0_i32, %arg1 : i32, i32
  }
  func.func @transform_4(%arg0: i32, %arg1: i32) -> (i32, i32, i32) {
    %c0_i32 = arith.constant 0 : i32
    %c0_i32_0 = arith.constant 0 : i32
    return %arg0, %c0_i32, %arg1 : i32, i32, i32
  }
}

</mosaic_0001>

<llo_original>
// kernel: basic_block_forward.2
$region0: #{basic_block_forward.2}
  #allocation0 [shape = 'u32[]', space=smem, size = 0x4, offset = 0x4, fixed_abs, tag = 'smem constant byte address 0x4 - core index']
  #allocation1 [shape = 'u32[144,128]{1,0:T(1,128)}', space=vmem, size = 0x12000, scoped, tag = 'internal scratch']
  #allocation2 [shape = 'f32[72,128]{1,0:T(8,128)}', space=vmem, size = 0x9000, scoped, tag = 'scratch operand']
  %s0 = inlined_call_operand.vmem [shape: bf16[2,360,128], index: 0, kind: input, shape index: {}]
  %s1 = inlined_call_operand.vmem [shape: bf16[9,128,128], index: 1, kind: input, shape index: {}]
  %s2 = inlined_call_operand.vmem [shape: bf16[2,72,128], index: 2, kind: output, shape index: {}]
  %s3 = sld [smem:[#allocation0]]
  $region41: #{basic_block_forward.2} parent=0
    _
  %s5 = ssub.s32 1, %s3
  %s6 = scalar_select 0, %s5, %s3
  loop: start=0, step=1, limit=4
  $region2: #{basic_block_forward.2} parent=0 // loop_pre_header
    _
  $region3: #{basic_block_forward.2} parent=0 // loop_header
    %s8 = sphi 0, %s12
    %p9 = scmp.ge.s32.totalorder %s8, 4
    %s15 = sphi 0, %s27
    %s16 = sphi 0, %s23
    %s17 = sphi 0, %s15
    %s18 = sphi 0, %s16
    %s19 = sphi 0, %s17
    %s20 = sphi 0, %s18
    %s30 = sphi 0, %s32
    %s33 = sphi 0, %s30
    %s34 = sphi 0, %s33
    %s50 = sphi 0, %s34
    %s56 = sphi 0, %s58
    %s59 = sphi 0, %s56
    %s60 = sphi 0, %s59
    %s76 = sphi 0, %s60
    %s84 = sphi 0, %s86
    %s87 = sphi 0, %s84
    %s88 = sphi 0, %s87
    %s104 = sphi 0, %s88
  $region4: #{basic_block_forward.2} parent=0 // loop_header_branch
    %11 = sbr.rel (%p9) target = $region8
  $region5: #{basic_block_forward.2} parent=0 // loop_body
    %s13 = ssub.s32 %s8, 1
    %s14 = ssub.s32 %s8, 2
    %s21 = sadd.s32 1, %s16
    %p22 = scmp.ge.s32.totalorder %s21, 1
    %s23 = scalar_select %p22, 0, %s21
    %s24 = sadd.s32 1, %s15
    %s25 = scalar_select %p22, %s24, %s15
    %p26 = scmp.ge.s32.totalorder %s25, 2
    %s27 = scalar_select %p26, 0, %s25
    %s28 = ssub.s32 %s15, %s27
    %p29 = scmp.eq.s32.totalorder %s28, 0
    %s31 = sadd.s32 %s30, 1
    %s32 = scalar_select %p29, %s30, %s31
    %p35 = pneg %p29
    %p36 = scmp.eq.s32.totalorder %s8, 1
    %p37 = por %p35, %p36
    %p38 = scmp.ne.s32.totalorder %s30, %s33
    %p39 = scmp.eq.s32.totalorder %s8, 0
    %p40 = por %p38, %p39
    %p41 = scmp.ne.s32.totalorder %s30, %s33
    %p42 = scmp.eq.s32.totalorder %s13, 1
    %p43 = por %p41, %p42
    %p44 = scmp.ne.s32.totalorder %s33, %s34
    %p45 = scmp.eq.s32.totalorder %s13, 0
    %p46 = por %p44, %p45
    %p47 = scmp.ne.s32.totalorder %s33, %s34
    %p48 = scmp.eq.s32.totalorder %s14, 1
    %p49 = por %p47, %p48
    %p51 = scmp.ne.s32.totalorder %s34, %s50
    %p52 = scmp.eq.s32.totalorder %s14, 0
    %p53 = por %p51, %p52
    %s54 = ssub.s32 %s16, %s23
    %p55 = scmp.eq.s32.totalorder %s54, 0
    %s57 = sadd.s32 %s56, 1
    %s58 = scalar_select %p55, %s56, %s57
    %p61 = pneg %p55
    %p62 = scmp.eq.s32.totalorder %s8, 1
    %p63 = por %p61, %p62
    %p64 = scmp.ne.s32.totalorder %s56, %s59
    %p65 = scmp.eq.s32.totalorder %s8, 0
    %p66 = por %p64, %p65
    %p67 = scmp.ne.s32.totalorder %s56, %s59
    %p68 = scmp.eq.s32.totalorder %s13, 1
    %p69 = por %p67, %p68
    %p70 = scmp.ne.s32.totalorder %s59, %s60
    %p71 = scmp.eq.s32.totalorder %s13, 0
    %p72 = por %p70, %p71
    %p73 = scmp.ne.s32.totalorder %s59, %s60
    %p74 = scmp.eq.s32.totalorder %s14, 1
    %p75 = por %p73, %p74
    %p77 = scmp.ne.s32.totalorder %s60, %s76
    %p78 = scmp.eq.s32.totalorder %s14, 0
    %p79 = por %p77, %p78
    %s80 = ssub.s32 %s15, %s27
    %s81 = ssub.s32 %s16, %s23
    %s82 = sor.u32 %s80, %s81
    %p83 = scmp.eq.s32.totalorder %s82, 0
    %s85 = sadd.s32 %s84, 1
    %s86 = scalar_select %p83, %s84, %s85
    %p89 = pneg %p83
    %p90 = scmp.eq.s32.totalorder %s8, 1
    %p91 = por %p89, %p90
    %p92 = scmp.ne.s32.totalorder %s84, %s87
    %p93 = scmp.eq.s32.totalorder %s8, 0
    %p94 = por %p92, %p93
    %p95 = scmp.ne.s32.totalorder %s84, %s87
    %p96 = scmp.eq.s32.totalorder %s13, 1
    %p97 = por %p95, %p96
    %p98 = scmp.ne.s32.totalorder %s87, %s88
    %p99 = scmp.eq.s32.totalorder %s13, 0
    %p100 = por %p98, %p99
    %p101 = scmp.ne.s32.totalorder %s87, %s88
    %p102 = scmp.eq.s32.totalorder %s14, 1
    %p103 = por %p101, %p102
    %p105 = scmp.ne.s32.totalorder %s88, %s104
    %p106 = scmp.eq.s32.totalorder %s14, 0
    %p107 = por %p105, %p106
    %p108 = scmp.le.s32.totalorder 1, %s8
    %p109 = scmp.lt.s32.totalorder %s8, 3
    %p110 = pnand %p108, %p109
    %p111 = pneg %p110
    // Predicated region
    $region9: #{basic_block_forward.2} parent=5 // pred_check
      _
    $region10: #{basic_block_forward.2} parent=5 // pred_check_branch
      %113 = sbr.rel (%p110) target = $region12
    $region11: #{basic_block_forward.2} parent=5 // pred_region
      %s114 = ssub.s32 %s8, 1
      // Predicated region
      $region13: #{basic_block_forward.2} parent=11 // pred_check
        %p115 = pneg %p72
      $region14: #{basic_block_forward.2} parent=11 // pred_check_branch
        %117 = sbr.rel (%p115) target = $region16
      $region15: #{basic_block_forward.2} parent=11 // pred_region
        %p118 = scmp.lt.s32.totalorder %s18, 0
        %s119 = scalar_select %p118, %s18, 0
        %s120 = smul.addr %s119, 4
        %s121 = scalar_lea.vmem %s1, %s120
      $region16: #{basic_block_forward.2} parent=11 // pred_fallthru
        _
    $region12: #{basic_block_forward.2} parent=5 // pred_fallthru
      _
    %p122 = scmp.lt.s32.totalorder %s8, 2
    // Predicated region
    $region17: #{basic_block_forward.2} parent=5 // pred_check
      %p123 = pneg %p122
    $region18: #{basic_block_forward.2} parent=5 // pred_check_branch
      %125 = sbr.rel (%p123) target = $region20
    $region19: #{basic_block_forward.2} parent=5 // pred_region
      // Predicated region
      $region21: #{basic_block_forward.2} parent=19 // pred_check
        %p126 = pneg %p40
      $region22: #{basic_block_forward.2} parent=19 // pred_check_branch
        %128 = sbr.rel (%p126) target = $region24
      $region23: #{basic_block_forward.2} parent=19 // pred_region
        %p129 = scmp.lt.s32.totalorder %s15, 1
        %s130 = scalar_select %p129, %s15, 1
        %s131 = smul.addr %s130, 45
        %s132 = smul.addr %s131, 4
        %s133 = scalar_lea.vmem %s0, %s132
      $region24: #{basic_block_forward.2} parent=19 // pred_fallthru
        _
    $region20: #{basic_block_forward.2} parent=5 // pred_fallthru
      _
    %p134 = scmp.le.s32.totalorder 1, %s8
    %p135 = scmp.lt.s32.totalorder %s8, 3
    %p136 = pnand %p134, %p135
    %p137 = pneg %p136
    // Predicated region
    $region25: #{basic_block_forward.2} parent=5 // pred_check
      _
    $region26: #{basic_block_forward.2} parent=5 // pred_check_branch
      %139 = sbr.rel (%p136) target = $region28
    $region27: #{basic_block_forward.2} parent=5 // pred_region
      %s140 = ssub.s32 %s8, 1
      %p141 = scmp.lt.s32.totalorder %s17, 1
      %s142 = scalar_select %p141, %s17, 1
      %s143 = smul.addr %s142, 45
      %s144 = smul.addr %s143, 4
      %s145 = scalar_lea.vmem %s0, %s144
      %p146 = pneg %p46
      %p147 = pneg %p43
      %p148 = scmp.lt.s32.totalorder %s18, 0
      %s149 = scalar_select %p148, %s18, 0
      %s150 = smul.addr %s149, 4
      %s151 = scalar_lea.vmem %s1, %s150
      %p152 = pneg %p72
      %p153 = pneg %p69
      %p154 = pneg %p100
      %p155 = pneg %p97
      %p156 = scmp.lt.s32.totalorder %s17, 1
      %s157 = scalar_select %p156, %s17, 1
      %p158 = scmp.lt.s32.totalorder %s18, 0
      %s159 = scalar_select %p158, %s18, 0
      %s160 = smul.addr %s157, 9
      %s161 = sadd.s32 %s159, %s160
      %s162 = smul.addr %s161, 4
      %s163 = scalar_lea.vmem %s2, %s162
      %p164 = scmp.lt.s32.totalorder %s17, 1
      %s165 = scalar_select %p164, %s17, 1
      %s166 = smul.addr %s165, 45
      %s167 = smul.addr %s166, 4
      %s168 = scalar_lea.vmem %s0, %s167
      %p169 = scmp.lt.s32.totalorder %s18, 0
      %s170 = scalar_select %p169, %s18, 0
      %s171 = smul.addr %s170, 4
      %s172 = scalar_lea.vmem %s1, %s171
      %p173 = scmp.lt.s32.totalorder %s17, 1
      %s174 = scalar_select %p173, %s17, 1
      %p175 = scmp.lt.s32.totalorder %s18, 0
      %s176 = scalar_select %p175, %s18, 0
      %s177 = smul.addr %s174, 9
      %s178 = sadd.s32 %s176, %s177
      %s179 = smul.addr %s178, 4
      %s180 = scalar_lea.vmem %s2, %s179
      %v182 = vld [vmem:[%s168] sm:$0xf]
      %v183 = vld [vmem:[%s168 + $0x4] sm:$0xf]
      %v184 = vld [vmem:[%s168 + $0x8] sm:$0xf]
      %v185 = vld [vmem:[%s168 + $0xc] sm:$0xf]
      %v186 = vld [vmem:[%s168 + $0x10] sm:$0xf]
      %v187 = vld [vmem:[%s168 + $0x14] sm:$0xf]
      %v188 = vld [vmem:[%s168 + $0x18] sm:$0xf]
      %v189 = vld [vmem:[%s168 + $0x1c] sm:$0xf]
      %v190 = vld [vmem:[%s168 + $0x20] sm:$0xf]
      %v191 = vld [vmem:[%s172] sm:$0xf]
      %v192 = vld [vmem:[%s172 + $0x4] sm:$0xf]
      %v193 = vld [vmem:[%s172 + $0x8] sm:$0xf]
      %v194 = vld [vmem:[%s172 + $0xc] sm:$0xf]
      %v195 = vld [vmem:[%s172 + $0x10] sm:$0xf]
      %v196 = vld [vmem:[%s172 + $0x14] sm:$0xf]
      %v197 = vld [vmem:[%s172 + $0x18] sm:$0xf]
      %v198 = vld [vmem:[%s172 + $0x1c] sm:$0xf]
      %v199 = vld [vmem:[%s172 + $0x20] sm:$0xf]
      %v200 = vld [vmem:[%s172 + $0x24] sm:$0xf]
      %v201 = vld [vmem:[%s172 + $0x28] sm:$0xf]
      %v202 = vld [vmem:[%s172 + $0x2c] sm:$0xf]
      %v203 = vld [vmem:[%s172 + $0x30] sm:$0xf]
      %v204 = vld [vmem:[%s172 + $0x34] sm:$0xf]
      %v205 = vld [vmem:[%s172 + $0x38] sm:$0xf]
      %v206 = vld [vmem:[%s172 + $0x3c] sm:$0xf]
      %v216 = vunpack.c.l.b16 %v182
      %v217 = vunpack.c.l.b16 %v183
      %v218 = vunpack.c.l.b16 %v184
      %v219 = vunpack.c.l.b16 %v185
      %v220 = vunpack.c.l.b16 %v186
      %v221 = vunpack.c.l.b16 %v187
      %v222 = vunpack.c.l.b16 %v188
      %v223 = vunpack.c.l.b16 %v189
      %v224 = vunpack.c.l.b16 %v190
      %v225 = vpack.c.b16 %v217, %v216
      %v226 = vpack.c.b16 %v219, %v218
      %v227 = vpack.c.b16 %v221, %v220
      %v228 = vpack.c.b16 %v223, %v222
      %v229 = vpack.c.b16 %v224, %v224
      %v251 = vunpack.c.l.b16 %v191
      %v252 = vunpack.c.l.b16 %v192
      %v253 = vunpack.c.l.b16 %v193
      %v254 = vunpack.c.l.b16 %v194
      %v255 = vunpack.c.l.b16 %v195
      %v256 = vunpack.c.l.b16 %v196
      %v257 = vunpack.c.l.b16 %v197
      %v258 = vunpack.c.l.b16 %v198
      %v259 = vunpack.c.l.b16 %v199
      %v260 = vunpack.c.l.b16 %v200
      %v261 = vunpack.c.l.b16 %v201
      %v262 = vunpack.c.l.b16 %v202
      %v263 = vunpack.c.l.b16 %v203
      %v264 = vunpack.c.l.b16 %v204
      %v265 = vunpack.c.l.b16 %v205
      %v266 = vunpack.c.l.b16 %v206
      %v267 = vpack.c.b16 %v252, %v251
      %v268 = vpack.c.b16 %v254, %v253
      %v269 = vpack.c.b16 %v256, %v255
      %v270 = vpack.c.b16 %v258, %v257
      %v271 = vpack.c.b16 %v260, %v259
      %v272 = vpack.c.b16 %v262, %v261
      %v273 = vpack.c.b16 %v264, %v263
      %v274 = vpack.c.b16 %v266, %v265
      %283 = vmatprep.subr.bf16.mxu0 0
      %284 = vmatpush1.bf16.msra.mxu0 %v274
      %285 = vmatprep.subr.bf16.mxu0 0
      %286 = vmatpush1.bf16.msra.mxu0 %v273
      %287 = vmatprep.subr.bf16.mxu0 0
      %288 = vmatpush1.bf16.msra.mxu0 %v272
      %289 = vmatprep.subr.bf16.mxu0 0
      %290 = vmatpush1.bf16.msra.mxu0 %v271
      %291 = vmatprep.subr.bf16.mxu0 0
      %292 = vmatpush1.bf16.msra.mxu0 %v270
      %293 = vmatprep.subr.bf16.mxu0 0
      %294 = vmatpush1.bf16.msra.mxu0 %v269
      %295 = vmatprep.subr.bf16.mxu0 0
      %296 = vmatpush1.bf16.msra.mxu0 %v268
      %297 = vmatprep.subr.bf16.mxu0 0
      %298 = vmatpush1.bf16.msra.mxu0 %v267
      %299 = vmatprep.subr.bf16.mxu0 0
      %300 = vmatpush2.bf16.msra.mxu0 0
      %301 = vmatprep.subr.bf16.mxu0 0
      %302 = vmatpush2.bf16.msra.mxu0 0
      %303 = vmatprep.subr.bf16.mxu0 0
      %304 = vmatpush2.bf16.msra.mxu0 0
      %305 = vmatprep.subr.bf16.mxu0 0
      %306 = vmatpush2.bf16.msra.mxu0 0
      %307 = vmatprep.subr.bf16.mxu0 0
      %308 = vmatpush2.bf16.msra.mxu0 0
      %309 = vmatprep.subr.bf16.mxu0 0
      %310 = vmatpush2.bf16.msra.mxu0 0
      %311 = vmatprep.subr.bf16.mxu0 0
      %312 = vmatpush2.bf16.msra.mxu0 0
      %313 = vmatprep.subr.bf16.mxu0 0
      %314 = vmatpush2.bf16.msra.mxu0 0
      %315 = vmatprep.mubr.bf16.mxu0 0
      %316 = vmatmul.mubr.bf16.gmra.mxu0 %v225
      %v317 = vpop.f32.mrf.mxu0
      %v318 = vadd.f32 0.0, %v317
      %v319 = vpop.f32.mrf.mxu0
      %v320 = vpop.f32.mrf.mxu0
      %v321 = vadd.f32 0.0, %v320
      %v322 = vpop.f32.mrf.mxu0
      %323 = vmatprep.mubr.bf16.mxu0 0
      %324 = vmatmul.mubr.bf16.gmra.mxu0 %v226
      %v325 = vpop.f32.mrf.mxu0
      %v326 = vadd.f32 0.0, %v325
      %v327 = vpop.f32.mrf.mxu0
      %v328 = vpop.f32.mrf.mxu0
      %v329 = vadd.f32 0.0, %v328
      %v330 = vpop.f32.mrf.mxu0
      %331 = vmatprep.mubr.bf16.mxu0 0
      %332 = vmatmul.mubr.bf16.gmra.mxu0 %v227
      %v333 = vpop.f32.mrf.mxu0
      %v334 = vadd.f32 0.0, %v333
      %v335 = vpop.f32.mrf.mxu0
      %v336 = vpop.f32.mrf.mxu0
      %v337 = vadd.f32 0.0, %v336
      %v338 = vpop.f32.mrf.mxu0
      %339 = vmatprep.mubr.bf16.mxu0 0
      %340 = vmatmul.mubr.bf16.gmra.mxu0 %v228
      %v341 = vpop.f32.mrf.mxu0
      %v342 = vadd.f32 0.0, %v341
      %v343 = vpop.f32.mrf.mxu0
      %v344 = vpop.f32.mrf.mxu0
      %v345 = vadd.f32 0.0, %v344
      %v346 = vpop.f32.mrf.mxu0
      %347 = vmatprep.mubr.bf16.mxu0 0
      %348 = vmatmul.mubr.bf16.gmra.mxu0 %v229
      %v349 = vpop.f32.mrf.mxu0
      %v350 = vadd.f32 0.0, %v349
      %v351 = vpop.f32.mrf.mxu0
      %v352 = vpop.f32.mrf.mxu0
      %v353 = vpop.f32.mrf.mxu0
      %354 = vdwg.mxu0
      %355 = vst [vmem:[#allocation2] sm:$0xff] %v318
      %356 = vst [vmem:[#allocation2 + $0x8] sm:$0xff] %v321
      %357 = vst [vmem:[#allocation2 + $0x10] sm:$0xff] %v326
      %358 = vst [vmem:[#allocation2 + $0x18] sm:$0xff] %v329
      %359 = vst [vmem:[#allocation2 + $0x20] sm:$0xff] %v334
      %360 = vst [vmem:[#allocation2 + $0x28] sm:$0xff] %v337
      %361 = vst [vmem:[#allocation2 + $0x30] sm:$0xff] %v342
      %362 = vst [vmem:[#allocation2 + $0x38] sm:$0xff] %v345
      %363 = vst [vmem:[#allocation2 + $0x40] sm:$0xff] %v350
      %v364 = vld [vmem:[%s168 + $0x2c] sm:$0xe]
      %v365 = vld [vmem:[%s168 + $0x30] sm:$0xf]
      %v366 = vld [vmem:[%s168 + $0x34] sm:$0xf]
      %v367 = vld [vmem:[%s168 + $0x38] sm:$0xf]
      %v368 = vld [vmem:[%s168 + $0x3c] sm:$0xf]
      %v369 = vld [vmem:[%s168 + $0x40] sm:$0xf]
      %v370 = vld [vmem:[%s168 + $0x44] sm:$0xf]
      %v371 = vld [vmem:[%s168 + $0x48] sm:$0xf]
      %v372 = vld [vmem:[%s168 + $0x4c] sm:$0xf]
      %v373 = vld [vmem:[%s168 + $0x50] sm:$0x1]
      %s374 = scalar_lea.vmem %s172, 64
      %v375 = vld [vmem:[%s374] sm:$0xf]
      %v376 = vld [vmem:[%s374 + $0x4] sm:$0xf]
      %v377 = vld [vmem:[%s374 + $0x8] sm:$0xf]
      %v378 = vld [vmem:[%s374 + $0xc] sm:$0xf]
      %v379 = vld [vmem:[%s374 + $0x10] sm:$0xf]
      %v380 = vld [vmem:[%s374 + $0x14] sm:$0xf]
      %v381 = vld [vmem:[%s374 + $0x18] sm:$0xf]
      %v382 = vld [vmem:[%s374 + $0x1c] sm:$0xf]
      %v383 = vld [vmem:[%s374 + $0x20] sm:$0xf]
      %v384 = vld [vmem:[%s374 + $0x24] sm:$0xf]
      %v385 = vld [vmem:[%s374 + $0x28] sm:$0xf]
      %v386 = vld [vmem:[%s374 + $0x2c] sm:$0xf]
      %v387 = vld [vmem:[%s374 + $0x30] sm:$0xf]
      %v388 = vld [vmem:[%s374 + $0x34] sm:$0xf]
      %v389 = vld [vmem:[%s374 + $0x38] sm:$0xf]
      %v390 = vld [vmem:[%s374 + $0x3c] sm:$0xf]
      %v401 = vunpack.c.l.b16 %v364
      %v402 = vunpack.c.l.b16 %v365
      %v403 = vunpack.c.l.b16 %v366
      %v404 = vunpack.c.l.b16 %v367
      %v405 = vunpack.c.l.b16 %v368
      %v406 = vunpack.c.l.b16 %v369
      %v407 = vunpack.c.l.b16 %v370
      %v408 = vunpack.c.l.b16 %v371
      %v409 = vunpack.c.l.b16 %v372
      %v410 = vunpack.c.l.b16 %v373
      %v411 = vpack.c.b16 %v402, %v401
      %v412 = vpack.c.b16 %v404, %v403
      %v413 = vpack.c.b16 %v406, %v405
      %v414 = vpack.c.b16 %v408, %v407
      %v415 = vpack.c.b16 %v410, %v409
      %vm416 = vcmask 1046528
      %v417 = vrot.slane %v411, 1
      %v418 = vrot.slane %v412, 1
      %v419 = vsel %vm416, %v417, %v418
      %v420 = vrot.slane %v413, 1
      %v421 = vsel %vm416, %v418, %v420
      %v422 = vrot.slane %v414, 1
      %v423 = vsel %vm416, %v420, %v422
      %v424 = vrot.slane %v415, 1
      %v425 = vsel %vm416, %v422, %v424
      %v447 = vunpack.c.l.b16 %v375
      %v448 = vunpack.c.l.b16 %v376
      %v449 = vunpack.c.l.b16 %v377
      %v450 = vunpack.c.l.b16 %v378
      %v451 = vunpack.c.l.b16 %v379
      %v452 = vunpack.c.l.b16 %v380
      %v453 = vunpack.c.l.b16 %v381
      %v454 = vunpack.c.l.b16 %v382
      %v455 = vunpack.c.l.b16 %v383
      %v456 = vunpack.c.l.b16 %v384
      %v457 = vunpack.c.l.b16 %v385
      %v458 = vunpack.c.l.b16 %v386
      %v459 = vunpack.c.l.b16 %v387
      %v460 = vunpack.c.l.b16 %v388
      %v461 = vunpack.c.l.b16 %v389
      %v462 = vunpack.c.l.b16 %v390
      %v463 = vpack.c.b16 %v448, %v447
      %v464 = vpack.c.b16 %v450, %v449
      %v465 = vpack.c.b16 %v452, %v451
      %v466 = vpack.c.b16 %v454, %v453
      %v467 = vpack.c.b16 %v456, %v455
      %v468 = vpack.c.b16 %v458, %v457
      %v469 = vpack.c.b16 %v460, %v459
      %v470 = vpack.c.b16 %v462, %v461
      %479 = vmatprep.subr.bf16.mxu0 0
      %480 = vmatpush1.bf16.msra.mxu0 %v470
      %481 = vmatprep.subr.bf16.mxu0 0
      %482 = vmatpush1.bf16.msra.mxu0 %v469
      %483 = vmatprep.subr.bf16.mxu0 0
      %484 = vmatpush1.bf16.msra.mxu0 %v468
      %485 = vmatprep.subr.bf16.mxu0 0
      %486 = vmatpush1.bf16.msra.mxu0 %v467
      %487 = vmatprep.subr.bf16.mxu0 0
      %488 = vmatpush1.bf16.msra.mxu0 %v466
      %489 = vmatprep.subr.bf16.mxu0 0
      %490 = vmatpush1.bf16.msra.mxu0 %v465
      %491 = vmatprep.subr.bf16.mxu0 0
      %492 = vmatpush1.bf16.msra.mxu0 %v464
      %493 = vmatprep.subr.bf16.mxu0 0
      %494 = vmatpush1.bf16.msra.mxu0 %v463
      %495 = vmatprep.subr.bf16.mxu0 0
      %496 = vmatpush2.bf16.msra.mxu0 0
      %497 = vmatprep.subr.bf16.mxu0 0
      %498 = vmatpush2.bf16.msra.mxu0 0
      %499 = vmatprep.subr.bf16.mxu0 0
      %500 = vmatpush2.bf16.msra.mxu0 0
      %501 = vmatprep.subr.bf16.mxu0 0
      %502 = vmatpush2.bf16.msra.mxu0 0
      %503 = vmatprep.subr.bf16.mxu0 0
      %504 = vmatpush2.bf16.msra.mxu0 0
      %505 = vmatprep.subr.bf16.mxu0 0
      %506 = vmatpush2.bf16.msra.mxu0 0
      %507 = vmatprep.subr.bf16.mxu0 0
      %508 = vmatpush2.bf16.msra.mxu0 0
      %509 = vmatprep.subr.bf16.mxu0 0
      %510 = vmatpush2.bf16.msra.mxu0 0
      %511 = vmatprep.mubr.bf16.mxu0 0
      %512 = vmatmul.mubr.bf16.gmra.mxu0 %v419
      %v513 = vpop.f32.mrf.mxu0
      %v514 = vadd.f32 0.0, %v513
      %v515 = vpop.f32.mrf.mxu0
      %v516 = vpop.f32.mrf.mxu0
      %v517 = vadd.f32 0.0, %v516
      %v518 = vpop.f32.mrf.mxu0
      %519 = vmatprep.mubr.bf16.mxu0 0
      %520 = vmatmul.mubr.bf16.gmra.mxu0 %v421
      %v521 = vpop.f32.mrf.mxu0
      %v522 = vadd.f32 0.0, %v521
      %v523 = vpop.f32.mrf.mxu0
      %v524 = vpop.f32.mrf.mxu0
      %v525 = vadd.f32 0.0, %v524
      %v526 = vpop.f32.mrf.mxu0
      %527 = vmatprep.mubr.bf16.mxu0 0
      %528 = vmatmul.mubr.bf16.gmra.mxu0 %v423
      %v529 = vpop.f32.mrf.mxu0
      %v530 = vadd.f32 0.0, %v529
      %v531 = vpop.f32.mrf.mxu0
      %v532 = vpop.f32.mrf.mxu0
      %v533 = vadd.f32 0.0, %v532
      %v534 = vpop.f32.mrf.mxu0
      %535 = vmatprep.mubr.bf16.mxu0 0
      %536 = vmatmul.mubr.bf16.gmra.mxu0 %v425
      %v537 = vpop.f32.mrf.mxu0
      %v538 = vadd.f32 0.0, %v537
      %v539 = vpop.f32.mrf.mxu0
      %v540 = vpop.f32.mrf.mxu0
      %v541 = vadd.f32 0.0, %v540
      %v542 = vpop.f32.mrf.mxu0
      %543 = vmatprep.mubr.bf16.mxu0 0
      %544 = vmatmul.mubr.bf16.gmra.mxu0 %v424
      %v545 = vpop.f32.mrf.mxu0
      %v546 = vadd.f32 0.0, %v545
      %v547 = vpop.f32.mrf.mxu0
      %v548 = vpop.f32.mrf.mxu0
      %v549 = vpop.f32.mrf.mxu0
      %550 = vdwg.mxu0
      %v551 = vld [vmem:[#allocation2] sm:$0xff]
      %v552 = vld [vmem:[#allocation2 + $0x8] sm:$0xff]
      %v553 = vld [vmem:[#allocation2 + $0x10] sm:$0xff]
      %v554 = vld [vmem:[#allocation2 + $0x18] sm:$0xff]
      %v555 = vld [vmem:[#allocation2 + $0x20] sm:$0xff]
      %v556 = vld [vmem:[#allocation2 + $0x28] sm:$0xff]
      %v557 = vld [vmem:[#allocation2 + $0x30] sm:$0xff]
      %v558 = vld [vmem:[#allocation2 + $0x38] sm:$0xff]
      %v559 = vld [vmem:[#allocation2 + $0x40] sm:$0xff]
      %v560 = vadd.f32 %v551, %v514
      %v561 = vadd.f32 %v552, %v517
      %v562 = vadd.f32 %v553, %v522
      %v563 = vadd.f32 %v554, %v525
      %v564 = vadd.f32 %v555, %v530
      %v565 = vadd.f32 %v556, %v533
      %v566 = vadd.f32 %v557, %v538
      %v567 = vadd.f32 %v558, %v541
      %v568 = vadd.f32 %v559, %v546
      %569 = vst [vmem:[#allocation2] sm:$0xff] %v560
      %570 = vst [vmem:[#allocation2 + $0x8] sm:$0xff] %v561
      %571 = vst [vmem:[#allocation2 + $0x10] sm:$0xff] %v562
      %572 = vst [vmem:[#allocation2 + $0x18] sm:$0xff] %v563
      %573 = vst [vmem:[#allocation2 + $0x20] sm:$0xff] %v564
      %574 = vst [vmem:[#allocation2 + $0x28] sm:$0xff] %v565
      %575 = vst [vmem:[#allocation2 + $0x30] sm:$0xff] %v566
      %576 = vst [vmem:[#allocation2 + $0x38] sm:$0xff] %v567
      %577 = vst [vmem:[#allocation2 + $0x40] sm:$0xff] %v568
      %v578 = vld [vmem:[%s168] sm:$0xf]
      %v579 = vld [vmem:[%s168 + $0x4] sm:$0xf]
      %v580 = vld [vmem:[%s168 + $0x8] sm:$0xf]
      %v581 = vld [vmem:[%s168 + $0xc] sm:$0xf]
      %v582 = vld [vmem:[%s168 + $0x10] sm:$0xf]
      %v583 = vld [vmem:[%s168 + $0x14] sm:$0xf]
      %v584 = vld [vmem:[%s168 + $0x18] sm:$0xf]
      %v585 = vld [vmem:[%s168 + $0x1c] sm:$0xf]
      %v586 = vld [vmem:[%s168 + $0x20] sm:$0xf]
      %v587 = vld [vmem:[%s168 + $0x24] sm:$0x1]
      %s588 = scalar_lea.vmem %s172, 128
      %v589 = vld [vmem:[%s588] sm:$0xf]
      %v590 = vld [vmem:[%s588 + $0x4] sm:$0xf]
      %v591 = vld [vmem:[%s588 + $0x8] sm:$0xf]
      %v592 = vld [vmem:[%s588 + $0xc] sm:$0xf]
      %v593 = vld [vmem:[%s588 + $0x10] sm:$0xf]
      %v594 = vld [vmem:[%s588 + $0x14] sm:$0xf]
      %v595 = vld [vmem:[%s588 + $0x18] sm:$0xf]
      %v596 = vld [vmem:[%s588 + $0x1c] sm:$0xf]
      %v597 = vld [vmem:[%s588 + $0x20] sm:$0xf]
      %v598 = vld [vmem:[%s588 + $0x24] sm:$0xf]
      %v599 = vld [vmem:[%s588 + $0x28] sm:$0xf]
      %v600 = vld [vmem:[%s588 + $0x2c] sm:$0xf]
      %v601 = vld [vmem:[%s588 + $0x30] sm:$0xf]
      %v602 = vld [vmem:[%s588 + $0x34] sm:$0xf]
      %v603 = vld [vmem:[%s588 + $0x38] sm:$0xf]
      %v604 = vld [vmem:[%s588 + $0x3c] sm:$0xf]
      %v615 = vunpack.c.l.b16 %v578
      %v616 = vunpack.c.l.b16 %v579
      %v617 = vunpack.c.l.b16 %v580
      %v618 = vunpack.c.l.b16 %v581
      %v619 = vunpack.c.l.b16 %v582
      %v620 = vunpack.c.l.b16 %v583
      %v621 = vunpack.c.l.b16 %v584
      %v622 = vunpack.c.l.b16 %v585
      %v623 = vunpack.c.l.b16 %v586
      %v624 = vunpack.c.l.b16 %v587
      %v625 = vpack.c.b16 %v616, %v615
      %v626 = vpack.c.b16 %v618, %v617
      %v627 = vpack.c.b16 %v620, %v619
      %v628 = vpack.c.b16 %v622, %v621
      %v629 = vpack.c.b16 %v624, %v623
      %vm630 = vsmask.f32 7424
      %v632 = vshrl.u32 %v625, 16
      %v634 = vshll.u32 %v625, 16
      %v636 = vrot.slane %v634, 1
      %v637 = vor.u32 %v632, %v636
      %v639 = vshll.u32 %v626, 16
      %v641 = vrot.slane %v639, 1
      %v642 = vsel %vm630, %v637, %v641
      %v643 = vshrl.u32 %v626, 16
      %v645 = vor.u32 %v643, %v641
      %v647 = vshll.u32 %v627, 16
      %v649 = vrot.slane %v647, 1
      %v650 = vsel %vm630, %v645, %v649
      %v651 = vshrl.u32 %v627, 16
      %v653 = vor.u32 %v651, %v649
      %v655 = vshll.u32 %v628, 16
      %v657 = vrot.slane %v655, 1
      %v658 = vsel %vm630, %v653, %v657
      %v659 = vshrl.u32 %v628, 16
      %v661 = vor.u32 %v659, %v657
      %v663 = vshll.u32 %v629, 16
      %v665 = vrot.slane %v663, 1
      %v666 = vsel %vm630, %v661, %v665
      %v667 = vshrl.u32 %v629, 16
      %v669 = vor.u32 %v667, %v665
      %v691 = vunpack.c.l.b16 %v589
      %v692 = vunpack.c.l.b16 %v590
      %v693 = vunpack.c.l.b16 %v591
      %v694 = vunpack.c.l.b16 %v592
      %v695 = vunpack.c.l.b16 %v593
      %v696 = vunpack.c.l.b16 %v594
      %v697 = vunpack.c.l.b16 %v595
      %v698 = vunpack.c.l.b16 %v596
      %v699 = vunpack.c.l.b16 %v597
      %v700 = vunpack.c.l.b16 %v598
      %v701 = vunpack.c.l.b16 %v599
      %v702 = vunpack.c.l.b16 %v600
      %v703 = vunpack.c.l.b16 %v601
      %v704 = vunpack.c.l.b16 %v602
      %v705 = vunpack.c.l.b16 %v603
      %v706 = vunpack.c.l.b16 %v604
      %v707 = vpack.c.b16 %v692, %v691
      %v708 = vpack.c.b16 %v694, %v693
      %v709 = vpack.c.b16 %v696, %v695
      %v710 = vpack.c.b16 %v698, %v697
      %v711 = vpack.c.b16 %v700, %v699
      %v712 = vpack.c.b16 %v702, %v701
      %v713 = vpack.c.b16 %v704, %v703
      %v714 = vpack.c.b16 %v706, %v705
      %723 = vmatprep.subr.bf16.mxu0 0
      %724 = vmatpush1.bf16.msra.mxu0 %v714
      %725 = vmatprep.subr.bf16.mxu0 0
      %726 = vmatpush1.bf16.msra.mxu0 %v713
      %727 = vmatprep.subr.bf16.mxu0 0
      %728 = vmatpush1.bf16.msra.mxu0 %v712
      %729 = vmatprep.subr.bf16.mxu0 0
      %730 = vmatpush1.bf16.msra.mxu0 %v711
      %731 = vmatprep.subr.bf16.mxu0 0
      %732 = vmatpush1.bf16.msra.mxu0 %v710
      %733 = vmatprep.subr.bf16.mxu0 0
      %734 = vmatpush1.bf16.msra.mxu0 %v709
      %735 = vmatprep.subr.bf16.mxu0 0
      %736 = vmatpush1.bf16.msra.mxu0 %v708
      %737 = vmatprep.subr.bf16.mxu0 0
      %738 = vmatpush1.bf16.msra.mxu0 %v707
      %739 = vmatprep.subr.bf16.mxu0 0
      %740 = vmatpush2.bf16.msra.mxu0 0
      %741 = vmatprep.subr.bf16.mxu0 0
      %742 = vmatpush2.bf16.msra.mxu0 0
      %743 = vmatprep.subr.bf16.mxu0 0
      %744 = vmatpush2.bf16.msra.mxu0 0
      %745 = vmatprep.subr.bf16.mxu0 0
      %746 = vmatpush2.bf16.msra.mxu0 0
      %747 = vmatprep.subr.bf16.mxu0 0
      %748 = vmatpush2.bf16.msra.mxu0 0
      %749 = vmatprep.subr.bf16.mxu0 0
      %750 = vmatpush2.bf16.msra.mxu0 0
      %751 = vmatprep.subr.bf16.mxu0 0
      %752 = vmatpush2.bf16.msra.mxu0 0
      %753 = vmatprep.subr.bf16.mxu0 0
      %754 = vmatpush2.bf16.msra.mxu0 0
      %755 = vmatprep.mubr.bf16.mxu0 0
      %756 = vmatmul.mubr.bf16.gmra.mxu0 %v642
      %v757 = vpop.f32.mrf.mxu0
      %v758 = vadd.f32 0.0, %v757
      %v759 = vpop.f32.mrf.mxu0
      %v760 = vpop.f32.mrf.mxu0
      %v761 = vadd.f32 0.0, %v760
      %v762 = vpop.f32.mrf.mxu0
      %763 = vmatprep.mubr.bf16.mxu0 0
      %764 = vmatmul.mubr.bf16.gmra.mxu0 %v650
      %v765 = vpop.f32.mrf.mxu0
      %v766 = vadd.f32 0.0, %v765
      %v767 = vpop.f32.mrf.mxu0
      %v768 = vpop.f32.mrf.mxu0
      %v769 = vadd.f32 0.0, %v768
      %v770 = vpop.f32.mrf.mxu0
      %771 = vmatprep.mubr.bf16.mxu0 0
      %772 = vmatmul.mubr.bf16.gmra.mxu0 %v658
      %v773 = vpop.f32.mrf.mxu0
      %v774 = vadd.f32 0.0, %v773
      %v775 = vpop.f32.mrf.mxu0
      %v776 = vpop.f32.mrf.mxu0
      %v777 = vadd.f32 0.0, %v776
      %v778 = vpop.f32.mrf.mxu0
      %779 = vmatprep.mubr.bf16.mxu0 0
      %780 = vmatmul.mubr.bf16.gmra.mxu0 %v666
      %v781 = vpop.f32.mrf.mxu0
      %v782 = vadd.f32 0.0, %v781
      %v783 = vpop.f32.mrf.mxu0
      %v784 = vpop.f32.mrf.mxu0
      %v785 = vadd.f32 0.0, %v784
      %v786 = vpop.f32.mrf.mxu0
      %787 = vmatprep.mubr.bf16.mxu0 0
      %788 = vmatmul.mubr.bf16.gmra.mxu0 %v669
      %v789 = vpop.f32.mrf.mxu0
      %v790 = vadd.f32 0.0, %v789
      %v791 = vpop.f32.mrf.mxu0
      %v792 = vpop.f32.mrf.mxu0
      %v793 = vpop.f32.mrf.mxu0
      %794 = vdwg.mxu0
      %v795 = vld [vmem:[#allocation2] sm:$0xff]
      %v796 = vld [vmem:[#allocation2 + $0x8] sm:$0xff]
      %v797 = vld [vmem:[#allocation2 + $0x10] sm:$0xff]
      %v798 = vld [vmem:[#allocation2 + $0x18] sm:$0xff]
      %v799 = vld [vmem:[#allocation2 + $0x20] sm:$0xff]
      %v800 = vld [vmem:[#allocation2 + $0x28] sm:$0xff]
      %v801 = vld [vmem:[#allocation2 + $0x30] sm:$0xff]
      %v802 = vld [vmem:[#allocation2 + $0x38] sm:$0xff]
      %v803 = vld [vmem:[#allocation2 + $0x40] sm:$0xff]
      %v804 = vadd.f32 %v795, %v758
      %v805 = vadd.f32 %v796, %v761
      %v806 = vadd.f32 %v797, %v766
      %v807 = vadd.f32 %v798, %v769
      %v808 = vadd.f32 %v799, %v774
      %v809 = vadd.f32 %v800, %v777
      %v810 = vadd.f32 %v801, %v782
      %v811 = vadd.f32 %v802, %v785
      %v812 = vadd.f32 %v803, %v790
      %813 = vst [vmem:[#allocation2] sm:$0xff] %v804
      %814 = vst [vmem:[#allocation2 + $0x8] sm:$0xff] %v805
      %815 = vst [vmem:[#allocation2 + $0x10] sm:$0xff] %v806
      %816 = vst [vmem:[#allocation2 + $0x18] sm:$0xff] %v807
      %817 = vst [vmem:[#allocation2 + $0x20] sm:$0xff] %v808
      %818 = vst [vmem:[#allocation2 + $0x28] sm:$0xff] %v809
      %819 = vst [vmem:[#allocation2 + $0x30] sm:$0xff] %v810
      %820 = vst [vmem:[#allocation2 + $0x38] sm:$0xff] %v811
      %821 = vst [vmem:[#allocation2 + $0x40] sm:$0xff] %v812
      %v822 = vld [vmem:[%s168 + $0x58] sm:$0xc]
      %v823 = vld [vmem:[%s168 + $0x5c] sm:$0xf]
      %v824 = vld [vmem:[%s168 + $0x60] sm:$0xf]
      %v825 = vld [vmem:[%s168 + $0x64] sm:$0xf]
      %v826 = vld [vmem:[%s168 + $0x68] sm:$0xf]
      %v827 = vld [vmem:[%s168 + $0x6c] sm:$0xf]
      %v828 = vld [vmem:[%s168 + $0x70] sm:$0xf]
      %v829 = vld [vmem:[%s168 + $0x74] sm:$0xf]
      %v830 = vld [vmem:[%s168 + $0x78] sm:$0xf]
      %v831 = vld [vmem:[%s168 + $0x7c] sm:$0x3]
      %s832 = scalar_lea.vmem %s172, 192
      %v833 = vld [vmem:[%s832] sm:$0xf]
      %v834 = vld [vmem:[%s832 + $0x4] sm:$0xf]
      %v835 = vld [vmem:[%s832 + $0x8] sm:$0xf]
      %v836 = vld [vmem:[%s832 + $0xc] sm:$0xf]
      %v837 = vld [vmem:[%s832 + $0x10] sm:$0xf]
      %v838 = vld [vmem:[%s832 + $0x14] sm:$0xf]
      %v839 = vld [vmem:[%s832 + $0x18] sm:$0xf]
      %v840 = vld [vmem:[%s832 + $0x1c] sm:$0xf]
      %v841 = vld [vmem:[%s832 + $0x20] sm:$0xf]
      %v842 = vld [vmem:[%s832 + $0x24] sm:$0xf]
      %v843 = vld [vmem:[%s832 + $0x28] sm:$0xf]
      %v844 = vld [vmem:[%s832 + $0x2c] sm:$0xf]
      %v845 = vld [vmem:[%s832 + $0x30] sm:$0xf]
      %v846 = vld [vmem:[%s832 + $0x34] sm:$0xf]
      %v847 = vld [vmem:[%s832 + $0x38] sm:$0xf]
      %v848 = vld [vmem:[%s832 + $0x3c] sm:$0xf]
      %v859 = vunpack.c.l.b16 %v822
      %v860 = vunpack.c.l.b16 %v823
      %v861 = vunpack.c.l.b16 %v824
      %v862 = vunpack.c.l.b16 %v825
      %v863 = vunpack.c.l.b16 %v826
      %v864 = vunpack.c.l.b16 %v827
      %v865 = vunpack.c.l.b16 %v828
      %v866 = vunpack.c.l.b16 %v829
      %v867 = vunpack.c.l.b16 %v830
      %v868 = vunpack.c.l.b16 %v831
      %v869 = vpack.c.b16 %v860, %v859
      %v870 = vpack.c.b16 %v862, %v861
      %v871 = vpack.c.b16 %v864, %v863
      %v872 = vpack.c.b16 %v866, %v865
      %v873 = vpack.c.b16 %v868, %v867
      %vm874 = vcmask 1045504
      %v875 = vrot.slane %v869, 2
      %v876 = vrot.slane %v870, 2
      %v877 = vsel %vm874, %v875, %v876
      %v878 = vrot.slane %v871, 2
      %v879 = vsel %vm874, %v876, %v878
      %v880 = vrot.slane %v872, 2
      %v881 = vsel %vm874, %v878, %v880
      %v882 = vrot.slane %v873, 2
      %v883 = vsel %vm874, %v880, %v882
      %v905 = vunpack.c.l.b16 %v833
      %v906 = vunpack.c.l.b16 %v834
      %v907 = vunpack.c.l.b16 %v835
      %v908 = vunpack.c.l.b16 %v836
      %v909 = vunpack.c.l.b16 %v837
      %v910 = vunpack.c.l.b16 %v838
      %v911 = vunpack.c.l.b16 %v839
      %v912 = vunpack.c.l.b16 %v840
      %v913 = vunpack.c.l.b16 %v841
      %v914 = vunpack.c.l.b16 %v842
      %v915 = vunpack.c.l.b16 %v843
      %v916 = vunpack.c.l.b16 %v844
      %v917 = vunpack.c.l.b16 %v845
      %v918 = vunpack.c.l.b16 %v846
      %v919 = vunpack.c.l.b16 %v847
      %v920 = vunpack.c.l.b16 %v848
      %v921 = vpack.c.b16 %v906, %v905
      %v922 = vpack.c.b16 %v908, %v907
      %v923 = vpack.c.b16 %v910, %v909
      %v924 = vpack.c.b16 %v912, %v911
      %v925 = vpack.c.b16 %v914, %v913
      %v926 = vpack.c.b16 %v916, %v915
      %v927 = vpack.c.b16 %v918, %v917
      %v928 = vpack.c.b16 %v920, %v919
      %937 = vmatprep.subr.bf16.mxu0 0
      %938 = vmatpush1.bf16.msra.mxu0 %v928
      %939 = vmatprep.subr.bf16.mxu0 0
      %940 = vmatpush1.bf16.msra.mxu0 %v927
      %941 = vmatprep.subr.bf16.mxu0 0
      %942 = vmatpush1.bf16.msra.mxu0 %v926
      %943 = vmatprep.subr.bf16.mxu0 0
      %944 = vmatpush1.bf16.msra.mxu0 %v925
      %945 = vmatprep.subr.bf16.mxu0 0
      %946 = vmatpush1.bf16.msra.mxu0 %v924
      %947 = vmatprep.subr.bf16.mxu0 0
      %948 = vmatpush1.bf16.msra.mxu0 %v923
      %949 = vmatprep.subr.bf16.mxu0 0
      %950 = vmatpush1.bf16.msra.mxu0 %v922
      %951 = vmatprep.subr.bf16.mxu0 0
      %952 = vmatpush1.bf16.msra.mxu0 %v921
      %953 = vmatprep.subr.bf16.mxu0 0
      %954 = vmatpush2.bf16.msra.mxu0 0
      %955 = vmatprep.subr.bf16.mxu0 0
      %956 = vmatpush2.bf16.msra.mxu0 0
      %957 = vmatprep.subr.bf16.mxu0 0
      %958 = vmatpush2.bf16.msra.mxu0 0
      %959 = vmatprep.subr.bf16.mxu0 0
      %960 = vmatpush2.bf16.msra.mxu0 0
      %961 = vmatprep.subr.bf16.mxu0 0
      %962 = vmatpush2.bf16.msra.mxu0 0
      %963 = vmatprep.subr.bf16.mxu0 0
      %964 = vmatpush2.bf16.msra.mxu0 0
      %965 = vmatprep.subr.bf16.mxu0 0
      %966 = vmatpush2.bf16.msra.mxu0 0
      %967 = vmatprep.subr.bf16.mxu0 0
      %968 = vmatpush2.bf16.msra.mxu0 0
      %969 = vmatprep.mubr.bf16.mxu0 0
      %970 = vmatmul.mubr.bf16.gmra.mxu0 %v877
      %v971 = vpop.f32.mrf.mxu0
      %v972 = vadd.f32 0.0, %v971
      %v973 = vpop.f32.mrf.mxu0
      %v974 = vpop.f32.mrf.mxu0
      %v975 = vadd.f32 0.0, %v974
      %v976 = vpop.f32.mrf.mxu0
      %977 = vmatprep.mubr.bf16.mxu0 0
      %978 = vmatmul.mubr.bf16.gmra.mxu0 %v879
      %v979 = vpop.f32.mrf.mxu0
      %v980 = vadd.f32 0.0, %v979
      %v981 = vpop.f32.mrf.mxu0
      %v982 = vpop.f32.mrf.mxu0
      %v983 = vadd.f32 0.0, %v982
      %v984 = vpop.f32.mrf.mxu0
      %985 = vmatprep.mubr.bf16.mxu0 0
      %986 = vmatmul.mubr.bf16.gmra.mxu0 %v881
      %v987 = vpop.f32.mrf.mxu0
      %v988 = vadd.f32 0.0, %v987
      %v989 = vpop.f32.mrf.mxu0
      %v990 = vpop.f32.mrf.mxu0
      %v991 = vadd.f32 0.0, %v990
      %v992 = vpop.f32.mrf.mxu0
      %993 = vmatprep.mubr.bf16.mxu0 0
      %994 = vmatmul.mubr.bf16.gmra.mxu0 %v883
      %v995 = vpop.f32.mrf.mxu0
      %v996 = vadd.f32 0.0, %v995
      %v997 = vpop.f32.mrf.mxu0
      %v998 = vpop.f32.mrf.mxu0
      %v999 = vadd.f32 0.0, %v998
      %v1000 = vpop.f32.mrf.mxu0
      %1001 = vmatprep.mubr.bf16.mxu0 0
      %1002 = vmatmul.mubr.bf16.gmra.mxu0 %v882
      %v1003 = vpop.f32.mrf.mxu0
      %v1004 = vadd.f32 0.0, %v1003
      %v1005 = vpop.f32.mrf.mxu0
      %v1006 = vpop.f32.mrf.mxu0
      %v1007 = vpop.f32.mrf.mxu0
      %1008 = vdwg.mxu0
      %v1009 = vld [vmem:[#allocation2] sm:$0xff]
      %v1010 = vld [vmem:[#allocation2 + $0x8] sm:$0xff]
      %v1011 = vld [vmem:[#allocation2 + $0x10] sm:$0xff]
      %v1012 = vld [vmem:[#allocation2 + $0x18] sm:$0xff]
      %v1013 = vld [vmem:[#allocation2 + $0x20] sm:$0xff]
      %v1014 = vld [vmem:[#allocation2 + $0x28] sm:$0xff]
      %v1015 = vld [vmem:[#allocation2 + $0x30] sm:$0xff]
      %v1016 = vld [vmem:[#allocation2 + $0x38] sm:$0xff]
      %v1017 = vld [vmem:[#allocation2 + $0x40] sm:$0xff]
      %v1018 = vadd.f32 %v1009, %v972
      %v1019 = vadd.f32 %v1010, %v975
      %v1020 = vadd.f32 %v1011, %v980
      %v1021 = vadd.f32 %v1012, %v983
      %v1022 = vadd.f32 %v1013, %v988
      %v1023 = vadd.f32 %v1014, %v991
      %v1024 = vadd.f32 %v1015, %v996
      %v1025 = vadd.f32 %v1016, %v999
      %v1026 = vadd.f32 %v1017, %v1004
      %1027 = vst [vmem:[#allocation2] sm:$0xff] %v1018
      %1028 = vst [vmem:[#allocation2 + $0x8] sm:$0xff] %v1019
      %1029 = vst [vmem:[#allocation2 + $0x10] sm:$0xff] %v1020
      %1030 = vst [vmem:[#allocation2 + $0x18] sm:$0xff] %v1021
      %1031 = vst [vmem:[#allocation2 + $0x20] sm:$0xff] %v1022
      %1032 = vst [vmem:[#allocation2 + $0x28] sm:$0xff] %v1023
      %1033 = vst [vmem:[#allocation2 + $0x30] sm:$0xff] %v1024
      %1034 = vst [vmem:[#allocation2 + $0x38] sm:$0xff] %v1025
      %1035 = vst [vmem:[#allocation2 + $0x40] sm:$0xff] %v1026
      %v1036 = vld [vmem:[%s168 + $0x84] sm:$0x8]
      %v1037 = vld [vmem:[%s168 + $0x88] sm:$0xf]
      %v1038 = vld [vmem:[%s168 + $0x8c] sm:$0xf]
      %v1039 = vld [vmem:[%s168 + $0x90] sm:$0xf]
      %v1040 = vld [vmem:[%s168 + $0x94] sm:$0xf]
      %v1041 = vld [vmem:[%s168 + $0x98] sm:$0xf]
      %v1042 = vld [vmem:[%s168 + $0x9c] sm:$0xf]
      %v1043 = vld [vmem:[%s168 + $0xa0] sm:$0xf]
      %v1044 = vld [vmem:[%s168 + $0xa4] sm:$0xf]
      %v1045 = vld [vmem:[%s168 + $0xa8] sm:$0x7]
      %s1046 = scalar_lea.vmem %s172, 256
      %v1047 = vld [vmem:[%s1046] sm:$0xf]
      %v1048 = vld [vmem:[%s1046 + $0x4] sm:$0xf]
      %v1049 = vld [vmem:[%s1046 + $0x8] sm:$0xf]
      %v1050 = vld [vmem:[%s1046 + $0xc] sm:$0xf]
      %v1051 = vld [vmem:[%s1046 + $0x10] sm:$0xf]
      %v1052 = vld [vmem:[%s1046 + $0x14] sm:$0xf]
      %v1053 = vld [vmem:[%s1046 + $0x18] sm:$0xf]
      %v1054 = vld [vmem:[%s1046 + $0x1c] sm:$0xf]
      %v1055 = vld [vmem:[%s1046 + $0x20] sm:$0xf]
      %v1056 = vld [vmem:[%s1046 + $0x24] sm:$0xf]
      %v1057 = vld [vmem:[%s1046 + $0x28] sm:$0xf]
      %v1058 = vld [vmem:[%s1046 + $0x2c] sm:$0xf]
      %v1059 = vld [vmem:[%s1046 + $0x30] sm:$0xf]
      %v1060 = vld [vmem:[%s1046 + $0x34] sm:$0xf]
      %v1061 = vld [vmem:[%s1046 + $0x38] sm:$0xf]
      %v1062 = vld [vmem:[%s1046 + $0x3c] sm:$0xf]
      %v1073 = vunpack.c.l.b16 %v1036
      %v1074 = vunpack.c.l.b16 %v1037
      %v1075 = vunpack.c.l.b16 %v1038
      %v1076 = vunpack.c.l.b16 %v1039
      %v1077 = vunpack.c.l.b16 %v1040
      %v1078 = vunpack.c.l.b16 %v1041
      %v1079 = vunpack.c.l.b16 %v1042
      %v1080 = vunpack.c.l.b16 %v1043
      %v1081 = vunpack.c.l.b16 %v1044
      %v1082 = vunpack.c.l.b16 %v1045
      %v1083 = vpack.c.b16 %v1074, %v1073
      %v1084 = vpack.c.b16 %v1076, %v1075
      %v1085 = vpack.c.b16 %v1078, %v1077
      %v1086 = vpack.c.b16 %v1080, %v1079
      %v1087 = vpack.c.b16 %v1082, %v1081
      %vm1088 = vcmask 1044480
      %v1089 = vrot.slane %v1083, 3
      %v1090 = vrot.slane %v1084, 3
      %v1091 = vsel %vm1088, %v1089, %v1090
      %v1092 = vrot.slane %v1085, 3
      %v1093 = vsel %vm1088, %v1090, %v1092
      %v1094 = vrot.slane %v1086, 3
      %v1095 = vsel %vm1088, %v1092, %v1094
      %v1096 = vrot.slane %v1087, 3
      %v1097 = vsel %vm1088, %v1094, %v1096
      %v1119 = vunpack.c.l.b16 %v1047
      %v1120 = vunpack.c.l.b16 %v1048
      %v1121 = vunpack.c.l.b16 %v1049
      %v1122 = vunpack.c.l.b16 %v1050
      %v1123 = vunpack.c.l.b16 %v1051
      %v1124 = vunpack.c.l.b16 %v1052
      %v1125 = vunpack.c.l.b16 %v1053
      %v1126 = vunpack.c.l.b16 %v1054
      %v1127 = vunpack.c.l.b16 %v1055
      %v1128 = vunpack.c.l.b16 %v1056
      %v1129 = vunpack.c.l.b16 %v1057
      %v1130 = vunpack.c.l.b16 %v1058
      %v1131 = vunpack.c.l.b16 %v1059
      %v1132 = vunpack.c.l.b16 %v1060
      %v1133 = vunpack.c.l.b16 %v1061
      %v1134 = vunpack.c.l.b16 %v1062
      %v1135 = vpack.c.b16 %v1120, %v1119
      %v1136 = vpack.c.b16 %v1122, %v1121
      %v1137 = vpack.c.b16 %v1124, %v1123
      %v1138 = vpack.c.b16 %v1126, %v1125
      %v1139 = vpack.c.b16 %v1128, %v1127
      %v1140 = vpack.c.b16 %v1130, %v1129
      %v1141 = vpack.c.b16 %v1132, %v1131
      %v1142 = vpack.c.b16 %v1134, %v1133
      %1151 = vmatprep.subr.bf16.mxu0 0
      %1152 = vmatpush1.bf16.msra.mxu0 %v1142
      %1153 = vmatprep.subr.bf16.mxu0 0
      %1154 = vmatpush1.bf16.msra.mxu0 %v1141
      %1155 = vmatprep.subr.bf16.mxu0 0
      %1156 = vmatpush1.bf16.msra.mxu0 %v1140
      %1157 = vmatprep.subr.bf16.mxu0 0
      %1158 = vmatpush1.bf16.msra.mxu0 %v1139
      %1159 = vmatprep.subr.bf16.mxu0 0
      %1160 = vmatpush1.bf16.msra.mxu0 %v1138
      %1161 = vmatprep.subr.bf16.mxu0 0
      %1162 = vmatpush1.bf16.msra.mxu0 %v1137
      %1163 = vmatprep.subr.bf16.mxu0 0
      %1164 = vmatpush1.bf16.msra.mxu0 %v1136
      %1165 = vmatprep.subr.bf16.mxu0 0
      %1166 = vmatpush1.bf16.msra.mxu0 %v1135
      %1167 = vmatprep.subr.bf16.mxu0 0
      %1168 = vmatpush2.bf16.msra.mxu0 0
      %1169 = vmatprep.subr.bf16.mxu0 0
      %1170 = vmatpush2.bf16.msra.mxu0 0
      %1171 = vmatprep.subr.bf16.mxu0 0
      %1172 = vmatpush2.bf16.msra.mxu0 0
      %1173 = vmatprep.subr.bf16.mxu0 0
      %1174 = vmatpush2.bf16.msra.mxu0 0
      %1175 = vmatprep.subr.bf16.mxu0 0
      %1176 = vmatpush2.bf16.msra.mxu0 0
      %1177 = vmatprep.subr.bf16.mxu0 0
      %1178 = vmatpush2.bf16.msra.mxu0 0
      %1179 = vmatprep.subr.bf16.mxu0 0
      %1180 = vmatpush2.bf16.msra.mxu0 0
      %1181 = vmatprep.subr.bf16.mxu0 0
      %1182 = vmatpush2.bf16.msra.mxu0 0
      %1183 = vmatprep.mubr.bf16.mxu0 0
      %1184 = vmatmul.mubr.bf16.gmra.mxu0 %v1091
      %v1185 = vpop.f32.mrf.mxu0
      %v1186 = vadd.f32 0.0, %v1185
      %v1187 = vpop.f32.mrf.mxu0
      %v1188 = vpop.f32.mrf.mxu0
      %v1189 = vadd.f32 0.0, %v1188
      %v1190 = vpop.f32.mrf.mxu0
      %1191 = vmatprep.mubr.bf16.mxu0 0
      %1192 = vmatmul.mubr.bf16.gmra.mxu0 %v1093
      %v1193 = vpop.f32.mrf.mxu0
      %v1194 = vadd.f32 0.0, %v1193
      %v1195 = vpop.f32.mrf.mxu0
      %v1196 = vpop.f32.mrf.mxu0
      %v1197 = vadd.f32 0.0, %v1196
      %v1198 = vpop.f32.mrf.mxu0
      %1199 = vmatprep.mubr.bf16.mxu0 0
      %1200 = vmatmul.mubr.bf16.gmra.mxu0 %v1095
      %v1201 = vpop.f32.mrf.mxu0
      %v1202 = vadd.f32 0.0, %v1201
      %v1203 = vpop.f32.mrf.mxu0
      %v1204 = vpop.f32.mrf.mxu0
      %v1205 = vadd.f32 0.0, %v1204
      %v1206 = vpop.f32.mrf.mxu0
      %1207 = vmatprep.mubr.bf16.mxu0 0
      %1208 = vmatmul.mubr.bf16.gmra.mxu0 %v1097
      %v1209 = vpop.f32.mrf.mxu0
      %v1210 = vadd.f32 0.0, %v1209
      %v1211 = vpop.f32.mrf.mxu0
      %v1212 = vpop.f32.mrf.mxu0
      %v1213 = vadd.f32 0.0, %v1212
      %v1214 = vpop.f32.mrf.mxu0
      %1215 = vmatprep.mubr.bf16.mxu0 0
      %1216 = vmatmul.mubr.bf16.gmra.mxu0 %v1096
      %v1217 = vpop.f32.mrf.mxu0
      %v1218 = vadd.f32 0.0, %v1217
      %v1219 = vpop.f32.mrf.mxu0
      %v1220 = vpop.f32.mrf.mxu0
      %v1221 = vpop.f32.mrf.mxu0
      %1222 = vdwg.mxu0
      %v1223 = vld [vmem:[#allocation2] sm:$0xff]
      %v1224 = vld [vmem:[#allocation2 + $0x8] sm:$0xff]
      %v1225 = vld [vmem:[#allocation2 + $0x10] sm:$0xff]
      %v1226 = vld [vmem:[#allocation2 + $0x18] sm:$0xff]
      %v1227 = vld [vmem:[#allocation2 + $0x20] sm:$0xff]
      %v1228 = vld [vmem:[#allocation2 + $0x28] sm:$0xff]
      %v1229 = vld [vmem:[#allocation2 + $0x30] sm:$0xff]
      %v1230 = vld [vmem:[#allocation2 + $0x38] sm:$0xff]
      %v1231 = vld [vmem:[#allocation2 + $0x40] sm:$0xff]
      %v1232 = vadd.f32 %v1223, %v1186
      %v1233 = vadd.f32 %v1224, %v1189
      %v1234 = vadd.f32 %v1225, %v1194
      %v1235 = vadd.f32 %v1226, %v1197
      %v1236 = vadd.f32 %v1227, %v1202
      %v1237 = vadd.f32 %v1228, %v1205
      %v1238 = vadd.f32 %v1229, %v1210
      %v1239 = vadd.f32 %v1230, %v1213
      %v1240 = vadd.f32 %v1231, %v1218
      %1241 = vst [vmem:[#allocation2] sm:$0xff] %v1232
      %1242 = vst [vmem:[#allocation2 + $0x8] sm:$0xff] %v1233
      %1243 = vst [vmem:[#allocation2 + $0x10] sm:$0xff] %v1234
      %1244 = vst [vmem:[#allocation2 + $0x18] sm:$0xff] %v1235
      %1245 = vst [vmem:[#allocation2 + $0x20] sm:$0xff] %v1236
      %1246 = vst [vmem:[#allocation2 + $0x28] sm:$0xff] %v1237
      %1247 = vst [vmem:[#allocation2 + $0x30] sm:$0xff] %v1238
      %1248 = vst [vmem:[#allocation2 + $0x38] sm:$0xff] %v1239
      %1249 = vst [vmem:[#allocation2 + $0x40] sm:$0xff] %v1240
      %v1250 = vld [vmem:[%s168 + $0x58] sm:$0xc]
      %v1251 = vld [vmem:[%s168 + $0x5c] sm:$0xf]
      %v1252 = vld [vmem:[%s168 + $0x60] sm:$0xf]
      %v1253 = vld [vmem:[%s168 + $0x64] sm:$0xf]
      %v1254 = vld [vmem:[%s168 + $0x68] sm:$0xf]
      %v1255 = vld [vmem:[%s168 + $0x6c] sm:$0xf]
      %v1256 = vld [vmem:[%s168 + $0x70] sm:$0xf]
      %v1257 = vld [vmem:[%s168 + $0x74] sm:$0xf]
      %v1258 = vld [vmem:[%s168 + $0x78] sm:$0xf]
      %v1259 = vld [vmem:[%s168 + $0x7c] sm:$0x7]
      %s1260 = scalar_lea.vmem %s172, 320
      %v1261 = vld [vmem:[%s1260] sm:$0xf]
      %v1262 = vld [vmem:[%s1260 + $0x4] sm:$0xf]
      %v1263 = vld [vmem:[%s1260 + $0x8] sm:$0xf]
      %v1264 = vld [vmem:[%s1260 + $0xc] sm:$0xf]
      %v1265 = vld [vmem:[%s1260 + $0x10] sm:$0xf]
      %v1266 = vld [vmem:[%s1260 + $0x14] sm:$0xf]
      %v1267 = vld [vmem:[%s1260 + $0x18] sm:$0xf]
      %v1268 = vld [vmem:[%s1260 + $0x1c] sm:$0xf]
      %v1269 = vld [vmem:[%s1260 + $0x20] sm:$0xf]
      %v1270 = vld [vmem:[%s1260 + $0x24] sm:$0xf]
      %v1271 = vld [vmem:[%s1260 + $0x28] sm:$0xf]
      %v1272 = vld [vmem:[%s1260 + $0x2c] sm:$0xf]
      %v1273 = vld [vmem:[%s1260 + $0x30] sm:$0xf]
      %v1274 = vld [vmem:[%s1260 + $0x34] sm:$0xf]
      %v1275 = vld [vmem:[%s1260 + $0x38] sm:$0xf]
      %v1276 = vld [vmem:[%s1260 + $0x3c] sm:$0xf]
      %v1287 = vunpack.c.l.b16 %v1250
      %v1288 = vunpack.c.l.b16 %v1251
      %v1289 = vunpack.c.l.b16 %v1252
      %v1290 = vunpack.c.l.b16 %v1253
      %v1291 = vunpack.c.l.b16 %v1254
      %v1292 = vunpack.c.l.b16 %v1255
      %v1293 = vunpack.c.l.b16 %v1256
      %v1294 = vunpack.c.l.b16 %v1257
      %v1295 = vunpack.c.l.b16 %v1258
      %v1296 = vunpack.c.l.b16 %v1259
      %v1297 = vpack.c.b16 %v1288, %v1287
      %v1298 = vpack.c.b16 %v1290, %v1289
      %v1299 = vpack.c.b16 %v1292, %v1291
      %v1300 = vpack.c.b16 %v1294, %v1293
      %v1301 = vpack.c.b16 %v1296, %v1295
      %vm1302 = vsmask.f32 5376
      %v1304 = vshrl.u32 %v1297, 16
      %v1306 = vrot.slane %v1304, 2
      %v1307 = vshll.u32 %v1297, 16
      %v1309 = vrot.slane %v1307, 3
      %v1310 = vor.u32 %v1306, %v1309
      %v1312 = vshrl.u32 %v1298, 16
      %v1314 = vrot.slane %v1312, 2
      %v1315 = vshll.u32 %v1298, 16
      %v1317 = vrot.slane %v1315, 3
      %v1318 = vor.u32 %v1314, %v1317
      %v1319 = vsel %vm1302, %v1310, %v1318
      %v1321 = vshrl.u32 %v1299, 16
      %v1323 = vrot.slane %v1321, 2
      %v1324 = vshll.u32 %v1299, 16
      %v1326 = vrot.slane %v1324, 3
      %v1327 = vor.u32 %v1323, %v1326
      %v1328 = vsel %vm1302, %v1318, %v1327
      %v1330 = vshrl.u32 %v1300, 16
      %v1332 = vrot.slane %v1330, 2
      %v1333 = vshll.u32 %v1300, 16
      %v1335 = vrot.slane %v1333, 3
      %v1336 = vor.u32 %v1332, %v1335
      %v1337 = vsel %vm1302, %v1327, %v1336
      %v1339 = vshrl.u32 %v1301, 16
      %v1341 = vrot.slane %v1339, 2
      %v1342 = vshll.u32 %v1301, 16
      %v1344 = vrot.slane %v1342, 3
      %v1345 = vor.u32 %v1341, %v1344
      %v1346 = vsel %vm1302, %v1336, %v1345
      %v1368 = vunpack.c.l.b16 %v1261
      %v1369 = vunpack.c.l.b16 %v1262
      %v1370 = vunpack.c.l.b16 %v1263
      %v1371 = vunpack.c.l.b16 %v1264
      %v1372 = vunpack.c.l.b16 %v1265
      %v1373 = vunpack.c.l.b16 %v1266
      %v1374 = vunpack.c.l.b16 %v1267
      %v1375 = vunpack.c.l.b16 %v1268
      %v1376 = vunpack.c.l.b16 %v1269
      %v1377 = vunpack.c.l.b16 %v1270
      %v1378 = vunpack.c.l.b16 %v1271
      %v1379 = vunpack.c.l.b16 %v1272
      %v1380 = vunpack.c.l.b16 %v1273
      %v1381 = vunpack.c.l.b16 %v1274
      %v1382 = vunpack.c.l.b16 %v1275
      %v1383 = vunpack.c.l.b16 %v1276
      %v1384 = vpack.c.b16 %v1369, %v1368
      %v1385 = vpack.c.b16 %v1371, %v1370
      %v1386 = vpack.c.b16 %v1373, %v1372
      %v1387 = vpack.c.b16 %v1375, %v1374
      %v1388 = vpack.c.b16 %v1377, %v1376
      %v1389 = vpack.c.b16 %v1379, %v1378
      %v1390 = vpack.c.b16 %v1381, %v1380
      %v1391 = vpack.c.b16 %v1383, %v1382
      %1400 = vmatprep.subr.bf16.mxu0 0
      %1401 = vmatpush1.bf16.msra.mxu0 %v1391
      %1402 = vmatprep.subr.bf16.mxu0 0
      %1403 = vmatpush1.bf16.msra.mxu0 %v1390
      %1404 = vmatprep.subr.bf16.mxu0 0
      %1405 = vmatpush1.bf16.msra.mxu0 %v1389
      %1406 = vmatprep.subr.bf16.mxu0 0
      %1407 = vmatpush1.bf16.msra.mxu0 %v1388
      %1408 = vmatprep.subr.bf16.mxu0 0
      %1409 = vmatpush1.bf16.msra.mxu0 %v1387
      %1410 = vmatprep.subr.bf16.mxu0 0
      %1411 = vmatpush1.bf16.msra.mxu0 %v1386
      %1412 = vmatprep.subr.bf16.mxu0 0
      %1413 = vmatpush1.bf16.msra.mxu0 %v1385
      %1414 = vmatprep.subr.bf16.mxu0 0
      %1415 = vmatpush1.bf16.msra.mxu0 %v1384
      %1416 = vmatprep.subr.bf16.mxu0 0
      %1417 = vmatpush2.bf16.msra.mxu0 0
      %1418 = vmatprep.subr.bf16.mxu0 0
      %1419 = vmatpush2.bf16.msra.mxu0 0
      %1420 = vmatprep.subr.bf16.mxu0 0
      %1421 = vmatpush2.bf16.msra.mxu0 0
      %1422 = vmatprep.subr.bf16.mxu0 0
      %1423 = vmatpush2.bf16.msra.mxu0 0
      %1424 = vmatprep.subr.bf16.mxu0 0
      %1425 = vmatpush2.bf16.msra.mxu0 0
      %1426 = vmatprep.subr.bf16.mxu0 0
      %1427 = vmatpush2.bf16.msra.mxu0 0
      %1428 = vmatprep.subr.bf16.mxu0 0
      %1429 = vmatpush2.bf16.msra.mxu0 0
      %1430 = vmatprep.subr.bf16.mxu0 0
      %1431 = vmatpush2.bf16.msra.mxu0 0
      %1432 = vmatprep.mubr.bf16.mxu0 0
      %1433 = vmatmul.mubr.bf16.gmra.mxu0 %v1319
      %v1434 = vpop.f32.mrf.mxu0
      %v1435 = vadd.f32 0.0, %v1434
      %v1436 = vpop.f32.mrf.mxu0
      %v1437 = vpop.f32.mrf.mxu0
      %v1438 = vadd.f32 0.0, %v1437
      %v1439 = vpop.f32.mrf.mxu0
      %1440 = vmatprep.mubr.bf16.mxu0 0
      %1441 = vmatmul.mubr.bf16.gmra.mxu0 %v1328
      %v1442 = vpop.f32.mrf.mxu0
      %v1443 = vadd.f32 0.0, %v1442
      %v1444 = vpop.f32.mrf.mxu0
      %v1445 = vpop.f32.mrf.mxu0
      %v1446 = vadd.f32 0.0, %v1445
      %v1447 = vpop.f32.mrf.mxu0
      %1448 = vmatprep.mubr.bf16.mxu0 0
      %1449 = vmatmul.mubr.bf16.gmra.mxu0 %v1337
      %v1450 = vpop.f32.mrf.mxu0
      %v1451 = vadd.f32 0.0, %v1450
      %v1452 = vpop.f32.mrf.mxu0
      %v1453 = vpop.f32.mrf.mxu0
      %v1454 = vadd.f32 0.0, %v1453
      %v1455 = vpop.f32.mrf.mxu0
      %1456 = vmatprep.mubr.bf16.mxu0 0
      %1457 = vmatmul.mubr.bf16.gmra.mxu0 %v1346
      %v1458 = vpop.f32.mrf.mxu0
      %v1459 = vadd.f32 0.0, %v1458
      %v1460 = vpop.f32.mrf.mxu0
      %v1461 = vpop.f32.mrf.mxu0
      %v1462 = vadd.f32 0.0, %v1461
      %v1463 = vpop.f32.mrf.mxu0
      %1464 = vmatprep.mubr.bf16.mxu0 0
      %1465 = vmatmul.mubr.bf16.gmra.mxu0 %v1345
      %v1466 = vpop.f32.mrf.mxu0
      %v1467 = vadd.f32 0.0, %v1466
      %v1468 = vpop.f32.mrf.mxu0
      %v1469 = vpop.f32.mrf.mxu0
      %v1470 = vpop.f32.mrf.mxu0
      %1471 = vdwg.mxu0
      %v1472 = vld [vmem:[#allocation2] sm:$0xff]
      %v1473 = vld [vmem:[#allocation2 + $0x8] sm:$0xff]
      %v1474 = vld [vmem:[#allocation2 + $0x10] sm:$0xff]
      %v1475 = vld [vmem:[#allocation2 + $0x18] sm:$0xff]
      %v1476 = vld [vmem:[#allocation2 + $0x20] sm:$0xff]
      %v1477 = vld [vmem:[#allocation2 + $0x28] sm:$0xff]
      %v1478 = vld [vmem:[#allocation2 + $0x30] sm:$0xff]
      %v1479 = vld [vmem:[#allocation2 + $0x38] sm:$0xff]
      %v1480 = vld [vmem:[#allocation2 + $0x40] sm:$0xff]
      %v1481 = vadd.f32 %v1472, %v1435
      %v1482 = vadd.f32 %v1473, %v1438
      %v1483 = vadd.f32 %v1474, %v1443
      %v1484 = vadd.f32 %v1475, %v1446
      %v1485 = vadd.f32 %v1476, %v1451
      %v1486 = vadd.f32 %v1477, %v1454
      %v1487 = vadd.f32 %v1478, %v1459
      %v1488 = vadd.f32 %v1479, %v1462
      %v1489 = vadd.f32 %v1480, %v1467
      %1490 = vst [vmem:[#allocation2] sm:$0xff] %v1481
      %1491 = vst [vmem:[#allocation2 + $0x8] sm:$0xff] %v1482
      %1492 = vst [vmem:[#allocation2 + $0x10] sm:$0xff] %v1483
      %1493 = vst [vmem:[#allocation2 + $0x18] sm:$0xff] %v1484
      %1494 = vst [vmem:[#allocation2 + $0x20] sm:$0xff] %v1485
      %1495 = vst [vmem:[#allocation2 + $0x28] sm:$0xff] %v1486
      %1496 = vst [vmem:[#allocation2 + $0x30] sm:$0xff] %v1487
      %1497 = vst [vmem:[#allocation2 + $0x38] sm:$0xff] %v1488
      %1498 = vst [vmem:[#allocation2 + $0x40] sm:$0xff] %v1489
      %v1499 = vld [vmem:[%s168 + $0x4] sm:$0xf]
      %v1500 = vld [vmem:[%s168 + $0x8] sm:$0xf]
      %v1501 = vld [vmem:[%s168 + $0xc] sm:$0xf]
      %v1502 = vld [vmem:[%s168 + $0x10] sm:$0xf]
      %v1503 = vld [vmem:[%s168 + $0x14] sm:$0xf]
      %v1504 = vld [vmem:[%s168 + $0x18] sm:$0xf]
      %v1505 = vld [vmem:[%s168 + $0x1c] sm:$0xf]
      %v1506 = vld [vmem:[%s168 + $0x20] sm:$0xf]
      %v1507 = vld [vmem:[%s168 + $0x24] sm:$0xf]
      %v1508 = vld [vmem:[%s168 + $0x28] sm:$0x1]
      %s1509 = scalar_lea.vmem %s172, 384
      %v1510 = vld [vmem:[%s1509] sm:$0xf]
      %v1511 = vld [vmem:[%s1509 + $0x4] sm:$0xf]
      %v1512 = vld [vmem:[%s1509 + $0x8] sm:$0xf]
      %v1513 = vld [vmem:[%s1509 + $0xc] sm:$0xf]
      %v1514 = vld [vmem:[%s1509 + $0x10] sm:$0xf]
      %v1515 = vld [vmem:[%s1509 + $0x14] sm:$0xf]
      %v1516 = vld [vmem:[%s1509 + $0x18] sm:$0xf]
      %v1517 = vld [vmem:[%s1509 + $0x1c] sm:$0xf]
      %v1518 = vld [vmem:[%s1509 + $0x20] sm:$0xf]
      %v1519 = vld [vmem:[%s1509 + $0x24] sm:$0xf]
      %v1520 = vld [vmem:[%s1509 + $0x28] sm:$0xf]
      %v1521 = vld [vmem:[%s1509 + $0x2c] sm:$0xf]
      %v1522 = vld [vmem:[%s1509 + $0x30] sm:$0xf]
      %v1523 = vld [vmem:[%s1509 + $0x34] sm:$0xf]
      %v1524 = vld [vmem:[%s1509 + $0x38] sm:$0xf]
      %v1525 = vld [vmem:[%s1509 + $0x3c] sm:$0xf]
      %v1536 = vunpack.c.l.b16 %v1499
      %v1537 = vunpack.c.l.b16 %v1500
      %v1538 = vunpack.c.l.b16 %v1501
      %v1539 = vunpack.c.l.b16 %v1502
      %v1540 = vunpack.c.l.b16 %v1503
      %v1541 = vunpack.c.l.b16 %v1504
      %v1542 = vunpack.c.l.b16 %v1505
      %v1543 = vunpack.c.l.b16 %v1506
      %v1544 = vunpack.c.l.b16 %v1507
      %v1545 = vunpack.c.l.b16 %v1508
      %v1546 = vpack.c.b16 %v1537, %v1536
      %v1547 = vpack.c.b16 %v1539, %v1538
      %v1548 = vpack.c.b16 %v1541, %v1540
      %v1549 = vpack.c.b16 %v1543, %v1542
      %v1550 = vpack.c.b16 %v1545, %v1544
      %v1552 = vshrl.u32 %v1546, 16
      %v1554 = vshll.u32 %v1546, 16
      %v1556 = vrot.slane %v1554, 1
      %v1557 = vor.u32 %v1552, %v1556
      %v1559 = vshll.u32 %v1547, 16
      %v1561 = vrot.slane %v1559, 1
      %v1562 = vsel %vm630, %v1557, %v1561
      %v1563 = vshrl.u32 %v1547, 16
      %v1565 = vor.u32 %v1563, %v1561
      %v1567 = vshll.u32 %v1548, 16
      %v1569 = vrot.slane %v1567, 1
      %v1570 = vsel %vm630, %v1565, %v1569
      %v1571 = vshrl.u32 %v1548, 16
      %v1573 = vor.u32 %v1571, %v1569
      %v1575 = vshll.u32 %v1549, 16
      %v1577 = vrot.slane %v1575, 1
      %v1578 = vsel %vm630, %v1573, %v1577
      %v1579 = vshrl.u32 %v1549, 16
      %v1581 = vor.u32 %v1579, %v1577
      %v1583 = vshll.u32 %v1550, 16
      %v1585 = vrot.slane %v1583, 1
      %v1586 = vsel %vm630, %v1581, %v1585
      %v1587 = vshrl.u32 %v1550, 16
      %v1589 = vor.u32 %v1587, %v1585
      %v1611 = vunpack.c.l.b16 %v1510
      %v1612 = vunpack.c.l.b16 %v1511
      %v1613 = vunpack.c.l.b16 %v1512
      %v1614 = vunpack.c.l.b16 %v1513
      %v1615 = vunpack.c.l.b16 %v1514
      %v1616 = vunpack.c.l.b16 %v1515
      %v1617 = vunpack.c.l.b16 %v1516
      %v1618 = vunpack.c.l.b16 %v1517
      %v1619 = vunpack.c.l.b16 %v1518
      %v1620 = vunpack.c.l.b16 %v1519
      %v1621 = vunpack.c.l.b16 %v1520
      %v1622 = vunpack.c.l.b16 %v1521
      %v1623 = vunpack.c.l.b16 %v1522
      %v1624 = vunpack.c.l.b16 %v1523
      %v1625 = vunpack.c.l.b16 %v1524
      %v1626 = vunpack.c.l.b16 %v1525
      %v1627 = vpack.c.b16 %v1612, %v1611
      %v1628 = vpack.c.b16 %v1614, %v1613
      %v1629 = vpack.c.b16 %v1616, %v1615
      %v1630 = vpack.c.b16 %v1618, %v1617
      %v1631 = vpack.c.b16 %v1620, %v1619
      %v1632 = vpack.c.b16 %v1622, %v1621
      %v1633 = vpack.c.b16 %v1624, %v1623
      %v1634 = vpack.c.b16 %v1626, %v1625
      %1643 = vmatprep.subr.bf16.mxu0 0
      %1644 = vmatpush1.bf16.msra.mxu0 %v1634
      %1645 = vmatprep.subr.bf16.mxu0 0
      %1646 = vmatpush1.bf16.msra.mxu0 %v1633
      %1647 = vmatprep.subr.bf16.mxu0 0
      %1648 = vmatpush1.bf16.msra.mxu0 %v1632
      %1649 = vmatprep.subr.bf16.mxu0 0
      %1650 = vmatpush1.bf16.msra.mxu0 %v1631
      %1651 = vmatprep.subr.bf16.mxu0 0
      %1652 = vmatpush1.bf16.msra.mxu0 %v1630
      %1653 = vmatprep.subr.bf16.mxu0 0
      %1654 = vmatpush1.bf16.msra.mxu0 %v1629
      %1655 = vmatprep.subr.bf16.mxu0 0
      %1656 = vmatpush1.bf16.msra.mxu0 %v1628
      %1657 = vmatprep.subr.bf16.mxu0 0
      %1658 = vmatpush1.bf16.msra.mxu0 %v1627
      %1659 = vmatprep.subr.bf16.mxu0 0
      %1660 = vmatpush2.bf16.msra.mxu0 0
      %1661 = vmatprep.subr.bf16.mxu0 0
      %1662 = vmatpush2.bf16.msra.mxu0 0
      %1663 = vmatprep.subr.bf16.mxu0 0
      %1664 = vmatpush2.bf16.msra.mxu0 0
      %1665 = vmatprep.subr.bf16.mxu0 0
      %1666 = vmatpush2.bf16.msra.mxu0 0
      %1667 = vmatprep.subr.bf16.mxu0 0
      %1668 = vmatpush2.bf16.msra.mxu0 0
      %1669 = vmatprep.subr.bf16.mxu0 0
      %1670 = vmatpush2.bf16.msra.mxu0 0
      %1671 = vmatprep.subr.bf16.mxu0 0
      %1672 = vmatpush2.bf16.msra.mxu0 0
      %1673 = vmatprep.subr.bf16.mxu0 0
      %1674 = vmatpush2.bf16.msra.mxu0 0
      %1675 = vmatprep.mubr.bf16.mxu0 0
      %1676 = vmatmul.mubr.bf16.gmra.mxu0 %v1562
      %v1677 = vpop.f32.mrf.mxu0
      %v1678 = vadd.f32 0.0, %v1677
      %v1679 = vpop.f32.mrf.mxu0
      %v1680 = vpop.f32.mrf.mxu0
      %v1681 = vadd.f32 0.0, %v1680
      %v1682 = vpop.f32.mrf.mxu0
      %1683 = vmatprep.mubr.bf16.mxu0 0
      %1684 = vmatmul.mubr.bf16.gmra.mxu0 %v1570
      %v1685 = vpop.f32.mrf.mxu0
      %v1686 = vadd.f32 0.0, %v1685
      %v1687 = vpop.f32.mrf.mxu0
      %v1688 = vpop.f32.mrf.mxu0
      %v1689 = vadd.f32 0.0, %v1688
      %v1690 = vpop.f32.mrf.mxu0
      %1691 = vmatprep.mubr.bf16.mxu0 0
      %1692 = vmatmul.mubr.bf16.gmra.mxu0 %v1578
      %v1693 = vpop.f32.mrf.mxu0
      %v1694 = vadd.f32 0.0, %v1693
      %v1695 = vpop.f32.mrf.mxu0
      %v1696 = vpop.f32.mrf.mxu0
      %v1697 = vadd.f32 0.0, %v1696
      %v1698 = vpop.f32.mrf.mxu0
      %1699 = vmatprep.mubr.bf16.mxu0 0
      %1700 = vmatmul.mubr.bf16.gmra.mxu0 %v1586
      %v1701 = vpop.f32.mrf.mxu0
      %v1702 = vadd.f32 0.0, %v1701
      %v1703 = vpop.f32.mrf.mxu0
      %v1704 = vpop.f32.mrf.mxu0
      %v1705 = vadd.f32 0.0, %v1704
      %v1706 = vpop.f32.mrf.mxu0
      %1707 = vmatprep.mubr.bf16.mxu0 0
      %1708 = vmatmul.mubr.bf16.gmra.mxu0 %v1589
      %v1709 = vpop.f32.mrf.mxu0
      %v1710 = vadd.f32 0.0, %v1709
      %v1711 = vpop.f32.mrf.mxu0
      %v1712 = vpop.f32.mrf.mxu0
      %v1713 = vpop.f32.mrf.mxu0
      %1714 = vdwg.mxu0
      %v1715 = vld [vmem:[#allocation2] sm:$0xff]
      %v1716 = vld [vmem:[#allocation2 + $0x8] sm:$0xff]
      %v1717 = vld [vmem:[#allocation2 + $0x10] sm:$0xff]
      %v1718 = vld [vmem:[#allocation2 + $0x18] sm:$0xff]
      %v1719 = vld [vmem:[#allocation2 + $0x20] sm:$0xff]
      %v1720 = vld [vmem:[#allocation2 + $0x28] sm:$0xff]
      %v1721 = vld [vmem:[#allocation2 + $0x30] sm:$0xff]
      %v1722 = vld [vmem:[#allocation2 + $0x38] sm:$0xff]
      %v1723 = vld [vmem:[#allocation2 + $0x40] sm:$0xff]
      %v1724 = vadd.f32 %v1715, %v1678
      %v1725 = vadd.f32 %v1716, %v1681
      %v1726 = vadd.f32 %v1717, %v1686
      %v1727 = vadd.f32 %v1718, %v1689
      %v1728 = vadd.f32 %v1719, %v1694
      %v1729 = vadd.f32 %v1720, %v1697
      %v1730 = vadd.f32 %v1721, %v1702
      %v1731 = vadd.f32 %v1722, %v1705
      %v1732 = vadd.f32 %v1723, %v1710
      %1733 = vst [vmem:[#allocation2] sm:$0xff] %v1724
      %1734 = vst [vmem:[#allocation2 + $0x8] sm:$0xff] %v1725
      %1735 = vst [vmem:[#allocation2 + $0x10] sm:$0xff] %v1726
      %1736 = vst [vmem:[#allocation2 + $0x18] sm:$0xff] %v1727
      %1737 = vst [vmem:[#allocation2 + $0x20] sm:$0xff] %v1728
      %1738 = vst [vmem:[#allocation2 + $0x28] sm:$0xff] %v1729
      %1739 = vst [vmem:[#allocation2 + $0x30] sm:$0xff] %v1730
      %1740 = vst [vmem:[#allocation2 + $0x38] sm:$0xff] %v1731
      %1741 = vst [vmem:[#allocation2 + $0x40] sm:$0xff] %v1732
      %v1742 = vld [vmem:[%s168 + $0x30] sm:$0xe]
      %v1743 = vld [vmem:[%s168 + $0x34] sm:$0xf]
      %v1744 = vld [vmem:[%s168 + $0x38] sm:$0xf]
      %v1745 = vld [vmem:[%s168 + $0x3c] sm:$0xf]
      %v1746 = vld [vmem:[%s168 + $0x40] sm:$0xf]
      %v1747 = vld [vmem:[%s168 + $0x44] sm:$0xf]
      %v1748 = vld [vmem:[%s168 + $0x48] sm:$0xf]
      %v1749 = vld [vmem:[%s168 + $0x4c] sm:$0xf]
      %v1750 = vld [vmem:[%s168 + $0x50] sm:$0xf]
      %v1751 = vld [vmem:[%s168 + $0x54] sm:$0x3]
      %s1752 = scalar_lea.vmem %s172, 448
      %v1753 = vld [vmem:[%s1752] sm:$0xf]
      %v1754 = vld [vmem:[%s1752 + $0x4] sm:$0xf]
      %v1755 = vld [vmem:[%s1752 + $0x8] sm:$0xf]
      %v1756 = vld [vmem:[%s1752 + $0xc] sm:$0xf]
      %v1757 = vld [vmem:[%s1752 + $0x10] sm:$0xf]
      %v1758 = vld [vmem:[%s1752 + $0x14] sm:$0xf]
      %v1759 = vld [vmem:[%s1752 + $0x18] sm:$0xf]
      %v1760 = vld [vmem:[%s1752 + $0x1c] sm:$0xf]
      %v1761 = vld [vmem:[%s1752 + $0x20] sm:$0xf]
      %v1762 = vld [vmem:[%s1752 + $0x24] sm:$0xf]
      %v1763 = vld [vmem:[%s1752 + $0x28] sm:$0xf]
      %v1764 = vld [vmem:[%s1752 + $0x2c] sm:$0xf]
      %v1765 = vld [vmem:[%s1752 + $0x30] sm:$0xf]
      %v1766 = vld [vmem:[%s1752 + $0x34] sm:$0xf]
      %v1767 = vld [vmem:[%s1752 + $0x38] sm:$0xf]
      %v1768 = vld [vmem:[%s1752 + $0x3c] sm:$0xf]
      %v1779 = vunpack.c.l.b16 %v1742
      %v1780 = vunpack.c.l.b16 %v1743
      %v1781 = vunpack.c.l.b16 %v1744
      %v1782 = vunpack.c.l.b16 %v1745
      %v1783 = vunpack.c.l.b16 %v1746
      %v1784 = vunpack.c.l.b16 %v1747
      %v1785 = vunpack.c.l.b16 %v1748
      %v1786 = vunpack.c.l.b16 %v1749
      %v1787 = vunpack.c.l.b16 %v1750
      %v1788 = vunpack.c.l.b16 %v1751
      %v1789 = vpack.c.b16 %v1780, %v1779
      %v1790 = vpack.c.b16 %v1782, %v1781
      %v1791 = vpack.c.b16 %v1784, %v1783
      %v1792 = vpack.c.b16 %v1786, %v1785
      %v1793 = vpack.c.b16 %v1788, %v1787
      %vm1794 = vsmask.f32 6400
      %v1796 = vshrl.u32 %v1789, 16
      %v1798 = vrot.slane %v1796, 1
      %v1799 = vshll.u32 %v1789, 16
      %v1801 = vrot.slane %v1799, 2
      %v1802 = vor.u32 %v1798, %v1801
      %v1804 = vshrl.u32 %v1790, 16
      %v1806 = vrot.slane %v1804, 1
      %v1807 = vshll.u32 %v1790, 16
      %v1809 = vrot.slane %v1807, 2
      %v1810 = vor.u32 %v1806, %v1809
      %v1811 = vsel %vm1794, %v1802, %v1810
      %v1813 = vshrl.u32 %v1791, 16
      %v1815 = vrot.slane %v1813, 1
      %v1816 = vshll.u32 %v1791, 16
      %v1818 = vrot.slane %v1816, 2
      %v1819 = vor.u32 %v1815, %v1818
      %v1820 = vsel %vm1794, %v1810, %v1819
      %v1822 = vshrl.u32 %v1792, 16
      %v1824 = vrot.slane %v1822, 1
      %v1825 = vshll.u32 %v1792, 16
      %v1827 = vrot.slane %v1825, 2
      %v1828 = vor.u32 %v1824, %v1827
      %v1829 = vsel %vm1794, %v1819, %v1828
      %v1831 = vshrl.u32 %v1793, 16
      %v1833 = vrot.slane %v1831, 1
      %v1834 = vshll.u32 %v1793, 16
      %v1836 = vrot.slane %v1834, 2
      %v1837 = vor.u32 %v1833, %v1836
      %v1838 = vsel %vm1794, %v1828, %v1837
      %v1860 = vunpack.c.l.b16 %v1753
      %v1861 = vunpack.c.l.b16 %v1754
      %v1862 = vunpack.c.l.b16 %v1755
      %v1863 = vunpack.c.l.b16 %v1756
      %v1864 = vunpack.c.l.b16 %v1757
      %v1865 = vunpack.c.l.b16 %v1758
      %v1866 = vunpack.c.l.b16 %v1759
      %v1867 = vunpack.c.l.b16 %v1760
      %v1868 = vunpack.c.l.b16 %v1761
      %v1869 = vunpack.c.l.b16 %v1762
      %v1870 = vunpack.c.l.b16 %v1763
      %v1871 = vunpack.c.l.b16 %v1764
      %v1872 = vunpack.c.l.b16 %v1765
      %v1873 = vunpack.c.l.b16 %v1766
      %v1874 = vunpack.c.l.b16 %v1767
      %v1875 = vunpack.c.l.b16 %v1768
      %v1876 = vpack.c.b16 %v1861, %v1860
      %v1877 = vpack.c.b16 %v1863, %v1862
      %v1878 = vpack.c.b16 %v1865, %v1864
      %v1879 = vpack.c.b16 %v1867, %v1866
      %v1880 = vpack.c.b16 %v1869, %v1868
      %v1881 = vpack.c.b16 %v1871, %v1870
      %v1882 = vpack.c.b16 %v1873, %v1872
      %v1883 = vpack.c.b16 %v1875, %v1874
      %1892 = vmatprep.subr.bf16.mxu0 0
      %1893 = vmatpush1.bf16.msra.mxu0 %v1883
      %1894 = vmatprep.subr.bf16.mxu0 0
      %1895 = vmatpush1.bf16.msra.mxu0 %v1882
      %1896 = vmatprep.subr.bf16.mxu0 0
      %1897 = vmatpush1.bf16.msra.mxu0 %v1881
      %1898 = vmatprep.subr.bf16.mxu0 0
      %1899 = vmatpush1.bf16.msra.mxu0 %v1880
      %1900 = vmatprep.subr.bf16.mxu0 0
      %1901 = vmatpush1.bf16.msra.mxu0 %v1879
      %1902 = vmatprep.subr.bf16.mxu0 0
      %1903 = vmatpush1.bf16.msra.mxu0 %v1878
      %1904 = vmatprep.subr.bf16.mxu0 0
      %1905 = vmatpush1.bf16.msra.mxu0 %v1877
      %1906 = vmatprep.subr.bf16.mxu0 0
      %1907 = vmatpush1.bf16.msra.mxu0 %v1876
      %1908 = vmatprep.subr.bf16.mxu0 0
      %1909 = vmatpush2.bf16.msra.mxu0 0
      %1910 = vmatprep.subr.bf16.mxu0 0
      %1911 = vmatpush2.bf16.msra.mxu0 0
      %1912 = vmatprep.subr.bf16.mxu0 0
      %1913 = vmatpush2.bf16.msra.mxu0 0
      %1914 = vmatprep.subr.bf16.mxu0 0
      %1915 = vmatpush2.bf16.msra.mxu0 0
      %1916 = vmatprep.subr.bf16.mxu0 0
      %1917 = vmatpush2.bf16.msra.mxu0 0
      %1918 = vmatprep.subr.bf16.mxu0 0
      %1919 = vmatpush2.bf16.msra.mxu0 0
      %1920 = vmatprep.subr.bf16.mxu0 0
      %1921 = vmatpush2.bf16.msra.mxu0 0
      %1922 = vmatprep.subr.bf16.mxu0 0
      %1923 = vmatpush2.bf16.msra.mxu0 0
      %1924 = vmatprep.mubr.bf16.mxu0 0
      %1925 = vmatmul.mubr.bf16.gmra.mxu0 %v1811
      %v1926 = vpop.f32.mrf.mxu0
      %v1927 = vadd.f32 0.0, %v1926
      %v1928 = vpop.f32.mrf.mxu0
      %v1929 = vpop.f32.mrf.mxu0
      %v1930 = vadd.f32 0.0, %v1929
      %v1931 = vpop.f32.mrf.mxu0
      %1932 = vmatprep.mubr.bf16.mxu0 0
      %1933 = vmatmul.mubr.bf16.gmra.mxu0 %v1820
      %v1934 = vpop.f32.mrf.mxu0
      %v1935 = vadd.f32 0.0, %v1934
      %v1936 = vpop.f32.mrf.mxu0
      %v1937 = vpop.f32.mrf.mxu0
      %v1938 = vadd.f32 0.0, %v1937
      %v1939 = vpop.f32.mrf.mxu0
      %1940 = vmatprep.mubr.bf16.mxu0 0
      %1941 = vmatmul.mubr.bf16.gmra.mxu0 %v1829
      %v1942 = vpop.f32.mrf.mxu0
      %v1943 = vadd.f32 0.0, %v1942
      %v1944 = vpop.f32.mrf.mxu0
      %v1945 = vpop.f32.mrf.mxu0
      %v1946 = vadd.f32 0.0, %v1945
      %v1947 = vpop.f32.mrf.mxu0
      %1948 = vmatprep.mubr.bf16.mxu0 0
      %1949 = vmatmul.mubr.bf16.gmra.mxu0 %v1838
      %v1950 = vpop.f32.mrf.mxu0
      %v1951 = vadd.f32 0.0, %v1950
      %v1952 = vpop.f32.mrf.mxu0
      %v1953 = vpop.f32.mrf.mxu0
      %v1954 = vadd.f32 0.0, %v1953
      %v1955 = vpop.f32.mrf.mxu0
      %1956 = vmatprep.mubr.bf16.mxu0 0
      %1957 = vmatmul.mubr.bf16.gmra.mxu0 %v1837
      %v1958 = vpop.f32.mrf.mxu0
      %v1959 = vadd.f32 0.0, %v1958
      %v1960 = vpop.f32.mrf.mxu0
      %v1961 = vpop.f32.mrf.mxu0
      %v1962 = vpop.f32.mrf.mxu0
      %1963 = vdwg.mxu0
      %v1964 = vld [vmem:[#allocation2] sm:$0xff]
      %v1965 = vld [vmem:[#allocation2 + $0x8] sm:$0xff]
      %v1966 = vld [vmem:[#allocation2 + $0x10] sm:$0xff]
      %v1967 = vld [vmem:[#allocation2 + $0x18] sm:$0xff]
      %v1968 = vld [vmem:[#allocation2 + $0x20] sm:$0xff]
      %v1969 = vld [vmem:[#allocation2 + $0x28] sm:$0xff]
      %v1970 = vld [vmem:[#allocation2 + $0x30] sm:$0xff]
      %v1971 = vld [vmem:[#allocation2 + $0x38] sm:$0xff]
      %v1972 = vld [vmem:[#allocation2 + $0x40] sm:$0xff]
      %v1973 = vadd.f32 %v1964, %v1927
      %v1974 = vadd.f32 %v1965, %v1930
      %v1975 = vadd.f32 %v1966, %v1935
      %v1976 = vadd.f32 %v1967, %v1938
      %v1977 = vadd.f32 %v1968, %v1943
      %v1978 = vadd.f32 %v1969, %v1946
      %v1979 = vadd.f32 %v1970, %v1951
      %v1980 = vadd.f32 %v1971, %v1954
      %v1981 = vadd.f32 %v1972, %v1959
      %1982 = vst [vmem:[#allocation2] sm:$0xff] %v1973
      %1983 = vst [vmem:[#allocation2 + $0x8] sm:$0xff] %v1974
      %1984 = vst [vmem:[#allocation2 + $0x10] sm:$0xff] %v1975
      %1985 = vst [vmem:[#allocation2 + $0x18] sm:$0xff] %v1976
      %1986 = vst [vmem:[#allocation2 + $0x20] sm:$0xff] %v1977
      %1987 = vst [vmem:[#allocation2 + $0x28] sm:$0xff] %v1978
      %1988 = vst [vmem:[#allocation2 + $0x30] sm:$0xff] %v1979
      %1989 = vst [vmem:[#allocation2 + $0x38] sm:$0xff] %v1980
      %1990 = vst [vmem:[#allocation2 + $0x40] sm:$0xff] %v1981
      %v1991 = vld [vmem:[%s168 + $0x4] sm:$0xe]
      %v1992 = vld [vmem:[%s168 + $0x8] sm:$0xf]
      %v1993 = vld [vmem:[%s168 + $0xc] sm:$0xf]
      %v1994 = vld [vmem:[%s168 + $0x10] sm:$0xf]
      %v1995 = vld [vmem:[%s168 + $0x14] sm:$0xf]
      %v1996 = vld [vmem:[%s168 + $0x18] sm:$0xf]
      %v1997 = vld [vmem:[%s168 + $0x1c] sm:$0xf]
      %v1998 = vld [vmem:[%s168 + $0x20] sm:$0xf]
      %v1999 = vld [vmem:[%s168 + $0x24] sm:$0xf]
      %v2000 = vld [vmem:[%s168 + $0x28] sm:$0x1]
      %s2001 = scalar_lea.vmem %s172, 512
      %v2002 = vld [vmem:[%s2001] sm:$0xf]
      %v2003 = vld [vmem:[%s2001 + $0x4] sm:$0xf]
      %v2004 = vld [vmem:[%s2001 + $0x8] sm:$0xf]
      %v2005 = vld [vmem:[%s2001 + $0xc] sm:$0xf]
      %v2006 = vld [vmem:[%s2001 + $0x10] sm:$0xf]
      %v2007 = vld [vmem:[%s2001 + $0x14] sm:$0xf]
      %v2008 = vld [vmem:[%s2001 + $0x18] sm:$0xf]
      %v2009 = vld [vmem:[%s2001 + $0x1c] sm:$0xf]
      %v2010 = vld [vmem:[%s2001 + $0x20] sm:$0xf]
      %v2011 = vld [vmem:[%s2001 + $0x24] sm:$0xf]
      %v2012 = vld [vmem:[%s2001 + $0x28] sm:$0xf]
      %v2013 = vld [vmem:[%s2001 + $0x2c] sm:$0xf]
      %v2014 = vld [vmem:[%s2001 + $0x30] sm:$0xf]
      %v2015 = vld [vmem:[%s2001 + $0x34] sm:$0xf]
      %v2016 = vld [vmem:[%s2001 + $0x38] sm:$0xf]
      %v2017 = vld [vmem:[%s2001 + $0x3c] sm:$0xf]
      %v2028 = vunpack.c.l.b16 %v1991
      %v2029 = vunpack.c.l.b16 %v1992
      %v2030 = vunpack.c.l.b16 %v1993
      %v2031 = vunpack.c.l.b16 %v1994
      %v2032 = vunpack.c.l.b16 %v1995
      %v2033 = vunpack.c.l.b16 %v1996
      %v2034 = vunpack.c.l.b16 %v1997
      %v2035 = vunpack.c.l.b16 %v1998
      %v2036 = vunpack.c.l.b16 %v1999
      %v2037 = vunpack.c.l.b16 %v2000
      %v2038 = vpack.c.b16 %v2029, %v2028
      %v2039 = vpack.c.b16 %v2031, %v2030
      %v2040 = vpack.c.b16 %v2033, %v2032
      %v2041 = vpack.c.b16 %v2035, %v2034
      %v2042 = vpack.c.b16 %v2037, %v2036
      %v2043 = vrot.slane %v2038, 1
      %v2044 = vrot.slane %v2039, 1
      %v2045 = vsel %vm416, %v2043, %v2044
      %v2046 = vrot.slane %v2040, 1
      %v2047 = vsel %vm416, %v2044, %v2046
      %v2048 = vrot.slane %v2041, 1
      %v2049 = vsel %vm416, %v2046, %v2048
      %v2050 = vrot.slane %v2042, 1
      %v2051 = vsel %vm416, %v2048, %v2050
      %v2073 = vunpack.c.l.b16 %v2002
      %v2074 = vunpack.c.l.b16 %v2003
      %v2075 = vunpack.c.l.b16 %v2004
      %v2076 = vunpack.c.l.b16 %v2005
      %v2077 = vunpack.c.l.b16 %v2006
      %v2078 = vunpack.c.l.b16 %v2007
      %v2079 = vunpack.c.l.b16 %v2008
      %v2080 = vunpack.c.l.b16 %v2009
      %v2081 = vunpack.c.l.b16 %v2010
      %v2082 = vunpack.c.l.b16 %v2011
      %v2083 = vunpack.c.l.b16 %v2012
      %v2084 = vunpack.c.l.b16 %v2013
      %v2085 = vunpack.c.l.b16 %v2014
      %v2086 = vunpack.c.l.b16 %v2015
      %v2087 = vunpack.c.l.b16 %v2016
      %v2088 = vunpack.c.l.b16 %v2017
      %v2089 = vpack.c.b16 %v2074, %v2073
      %v2090 = vpack.c.b16 %v2076, %v2075
      %v2091 = vpack.c.b16 %v2078, %v2077
      %v2092 = vpack.c.b16 %v2080, %v2079
      %v2093 = vpack.c.b16 %v2082, %v2081
      %v2094 = vpack.c.b16 %v2084, %v2083
      %v2095 = vpack.c.b16 %v2086, %v2085
      %v2096 = vpack.c.b16 %v2088, %v2087
      %2105 = vmatprep.subr.bf16.mxu0 0
      %2106 = vmatpush1.bf16.msra.mxu0 %v2096
      %2107 = vmatprep.subr.bf16.mxu0 0
      %2108 = vmatpush1.bf16.msra.mxu0 %v2095
      %2109 = vmatprep.subr.bf16.mxu0 0
      %2110 = vmatpush1.bf16.msra.mxu0 %v2094
      %2111 = vmatprep.subr.bf16.mxu0 0
      %2112 = vmatpush1.bf16.msra.mxu0 %v2093
      %2113 = vmatprep.subr.bf16.mxu0 0
      %2114 = vmatpush1.bf16.msra.mxu0 %v2092
      %2115 = vmatprep.subr.bf16.mxu0 0
      %2116 = vmatpush1.bf16.msra.mxu0 %v2091
      %2117 = vmatprep.subr.bf16.mxu0 0
      %2118 = vmatpush1.bf16.msra.mxu0 %v2090
      %2119 = vmatprep.subr.bf16.mxu0 0
      %2120 = vmatpush1.bf16.msra.mxu0 %v2089
      %2121 = vmatprep.subr.bf16.mxu0 0
      %2122 = vmatpush2.bf16.msra.mxu0 0
      %2123 = vmatprep.subr.bf16.mxu0 0
      %2124 = vmatpush2.bf16.msra.mxu0 0
      %2125 = vmatprep.subr.bf16.mxu0 0
      %2126 = vmatpush2.bf16.msra.mxu0 0
      %2127 = vmatprep.subr.bf16.mxu0 0
      %2128 = vmatpush2.bf16.msra.mxu0 0
      %2129 = vmatprep.subr.bf16.mxu0 0
      %2130 = vmatpush2.bf16.msra.mxu0 0
      %2131 = vmatprep.subr.bf16.mxu0 0
      %2132 = vmatpush2.bf16.msra.mxu0 0
      %2133 = vmatprep.subr.bf16.mxu0 0
      %2134 = vmatpush2.bf16.msra.mxu0 0
      %2135 = vmatprep.subr.bf16.mxu0 0
      %2136 = vmatpush2.bf16.msra.mxu0 0
      %2137 = vmatprep.mubr.bf16.mxu0 0
      %2138 = vmatmul.mubr.bf16.gmra.mxu0 %v2045
      %v2139 = vpop.f32.mrf.mxu0
      %v2140 = vadd.f32 0.0, %v2139
      %v2141 = vpop.f32.mrf.mxu0
      %v2142 = vpop.f32.mrf.mxu0
      %v2143 = vadd.f32 0.0, %v2142
      %v2144 = vpop.f32.mrf.mxu0
      %2145 = vmatprep.mubr.bf16.mxu0 0
      %2146 = vmatmul.mubr.bf16.gmra.mxu0 %v2047
      %v2147 = vpop.f32.mrf.mxu0
      %v2148 = vadd.f32 0.0, %v2147
      %v2149 = vpop.f32.mrf.mxu0
      %v2150 = vpop.f32.mrf.mxu0
      %v2151 = vadd.f32 0.0, %v2150
      %v2152 = vpop.f32.mrf.mxu0
      %2153 = vmatprep.mubr.bf16.mxu0 0
      %2154 = vmatmul.mubr.bf16.gmra.mxu0 %v2049
      %v2155 = vpop.f32.mrf.mxu0
      %v2156 = vadd.f32 0.0, %v2155
      %v2157 = vpop.f32.mrf.mxu0
      %v2158 = vpop.f32.mrf.mxu0
      %v2159 = vadd.f32 0.0, %v2158
      %v2160 = vpop.f32.mrf.mxu0
      %2161 = vmatprep.mubr.bf16.mxu0 0
      %2162 = vmatmul.mubr.bf16.gmra.mxu0 %v2051
      %v2163 = vpop.f32.mrf.mxu0
      %v2164 = vadd.f32 0.0, %v2163
      %v2165 = vpop.f32.mrf.mxu0
      %v2166 = vpop.f32.mrf.mxu0
      %v2167 = vadd.f32 0.0, %v2166
      %v2168 = vpop.f32.mrf.mxu0
      %2169 = vmatprep.mubr.bf16.mxu0 0
      %2170 = vmatmul.mubr.bf16.gmra.mxu0 %v2050
      %v2171 = vpop.f32.mrf.mxu0
      %v2172 = vadd.f32 0.0, %v2171
      %v2173 = vpop.f32.mrf.mxu0
      %v2174 = vpop.f32.mrf.mxu0
      %v2175 = vpop.f32.mrf.mxu0
      %2176 = vdwg.mxu0
      %v2177 = vld [vmem:[#allocation2] sm:$0xff]
      %v2178 = vld [vmem:[#allocation2 + $0x8] sm:$0xff]
      %v2179 = vld [vmem:[#allocation2 + $0x10] sm:$0xff]
      %v2180 = vld [vmem:[#allocation2 + $0x18] sm:$0xff]
      %v2181 = vld [vmem:[#allocation2 + $0x20] sm:$0xff]
      %v2182 = vld [vmem:[#allocation2 + $0x28] sm:$0xff]
      %v2183 = vld [vmem:[#allocation2 + $0x30] sm:$0xff]
      %v2184 = vld [vmem:[#allocation2 + $0x38] sm:$0xff]
      %v2185 = vld [vmem:[#allocation2 + $0x40] sm:$0xff]
      %v2186 = vadd.f32 %v2177, %v2140
      %v2187 = vadd.f32 %v2178, %v2143
      %v2188 = vadd.f32 %v2179, %v2148
      %v2189 = vadd.f32 %v2180, %v2151
      %v2190 = vadd.f32 %v2181, %v2156
      %v2191 = vadd.f32 %v2182, %v2159
      %v2192 = vadd.f32 %v2183, %v2164
      %v2193 = vadd.f32 %v2184, %v2167
      %v2194 = vadd.f32 %v2185, %v2172
      %2195 = vst [vmem:[#allocation2] sm:$0xff] %v2186
      %2196 = vst [vmem:[#allocation2 + $0x8] sm:$0xff] %v2187
      %2197 = vst [vmem:[#allocation2 + $0x10] sm:$0xff] %v2188
      %2198 = vst [vmem:[#allocation2 + $0x18] sm:$0xff] %v2189
      %2199 = vst [vmem:[#allocation2 + $0x20] sm:$0xff] %v2190
      %2200 = vst [vmem:[#allocation2 + $0x28] sm:$0xff] %v2191
      %2201 = vst [vmem:[#allocation2 + $0x30] sm:$0xff] %v2192
      %2202 = vst [vmem:[#allocation2 + $0x38] sm:$0xff] %v2193
      %2203 = vst [vmem:[#allocation2 + $0x40] sm:$0xff] %v2194
      %v2204 = vld [vmem:[#allocation2] sm:$0xff]
      %v2205 = vld [vmem:[#allocation2 + $0x8] sm:$0xff]
      %v2206 = vld [vmem:[#allocation2 + $0x10] sm:$0xff]
      %v2207 = vld [vmem:[#allocation2 + $0x18] sm:$0xff]
      %v2208 = vld [vmem:[#allocation2 + $0x20] sm:$0xff]
      %v2209 = vld [vmem:[#allocation2 + $0x28] sm:$0xff]
      %v2210 = vld [vmem:[#allocation2 + $0x30] sm:$0xff]
      %v2211 = vld [vmem:[#allocation2 + $0x38] sm:$0xff]
      %v2212 = vld [vmem:[#allocation2 + $0x40] sm:$0xff]
      %v2213 = vmax.f32 %v2204, 0.0
      %v2214 = vmax.f32 %v2205, 0.0
      %v2215 = vmax.f32 %v2206, 0.0
      %v2216 = vmax.f32 %v2207, 0.0
      %v2217 = vmax.f32 %v2208, 0.0
      %v2218 = vmax.f32 %v2209, 0.0
      %v2219 = vmax.f32 %v2210, 0.0
      %v2220 = vmax.f32 %v2211, 0.0
      %v2221 = vmax.f32 %v2212, 0.0
      %v2222 = vpack.c.bf16 %v2214, %v2213
      %v2223 = vpack.c.bf16 %v2216, %v2215
      %v2224 = vpack.c.bf16 %v2218, %v2217
      %v2225 = vpack.c.bf16 %v2220, %v2219
      %v2226 = vpack.c.bf16 %v2221, %v2221
      %v2232 = vunpack.c.l.b16 %v2222
      %v2233 = vunpack.c.h.b16 %v2222
      %v2234 = vunpack.c.l.b16 %v2223
      %v2235 = vunpack.c.h.b16 %v2223
      %v2236 = vunpack.c.l.b16 %v2224
      %v2237 = vunpack.c.h.b16 %v2224
      %v2238 = vunpack.c.l.b16 %v2225
      %v2239 = vunpack.c.h.b16 %v2225
      %v2240 = vunpack.c.l.b16 %v2226
      %v2241 = vpack.c.b16 %v2232, %v2232
      %v2242 = vpack.c.b16 %v2233, %v2233
      %v2243 = vpack.c.b16 %v2234, %v2234
      %v2244 = vpack.c.b16 %v2235, %v2235
      %v2245 = vpack.c.b16 %v2236, %v2236
      %v2246 = vpack.c.b16 %v2237, %v2237
      %v2247 = vpack.c.b16 %v2238, %v2238
      %v2248 = vpack.c.b16 %v2239, %v2239
      %v2249 = vpack.c.b16 %v2240, %v2240
      %2259 = vst [vmem:[%s180] sm:$0xf] %v2241
      %2260 = vst [vmem:[%s180 + $0x4] sm:$0xf] %v2242
      %2261 = vst [vmem:[%s180 + $0x8] sm:$0xf] %v2243
      %2262 = vst [vmem:[%s180 + $0xc] sm:$0xf] %v2244
      %2263 = vst [vmem:[%s180 + $0x10] sm:$0xf] %v2245
      %2264 = vst [vmem:[%s180 + $0x14] sm:$0xf] %v2246
      %2265 = vst [vmem:[%s180 + $0x18] sm:$0xf] %v2247
      %2266 = vst [vmem:[%s180 + $0x1c] sm:$0xf] %v2248
      %2267 = vst [vmem:[%s180 + $0x20] sm:$0xf] %v2249
      %p2268 = scmp.lt.s32.totalorder %s17, 1
      %s2269 = scalar_select %p2268, %s17, 1
      %p2270 = scmp.lt.s32.totalorder %s18, 0
      %s2271 = scalar_select %p2270, %s18, 0
      %s2272 = smul.addr %s2269, 9
      %s2273 = sadd.s32 %s2271, %s2272
      %s2274 = smul.addr %s2273, 4
      %s2275 = scalar_lea.vmem %s2, %s2274
      // Predicated region
      $region29: #{basic_block_forward.2} parent=27 // pred_check
        %p2276 = pneg %p97
      $region30: #{basic_block_forward.2} parent=27 // pred_check_branch
        %2278 = sbr.rel (%p2276) target = $region32
      $region31: #{basic_block_forward.2} parent=27 // pred_region
        _
      $region32: #{basic_block_forward.2} parent=27 // pred_fallthru
        _
    $region28: #{basic_block_forward.2} parent=5 // pred_fallthru
      _
    %p2279 = scmp.le.s32.totalorder 2, %s8
    // Predicated region
    $region33: #{basic_block_forward.2} parent=5 // pred_check
      %p2280 = pneg %p2279
    $region34: #{basic_block_forward.2} parent=5 // pred_check_branch
      %2282 = sbr.rel (%p2280) target = $region36
    $region35: #{basic_block_forward.2} parent=5 // pred_region
      %s2283 = ssub.s32 %s8, 2
      // Predicated region
      $region37: #{basic_block_forward.2} parent=35 // pred_check
        %p2284 = pneg %p103
      $region38: #{basic_block_forward.2} parent=35 // pred_check_branch
        %2286 = sbr.rel (%p2284) target = $region40
      $region39: #{basic_block_forward.2} parent=35 // pred_region
        %p2287 = scmp.lt.s32.totalorder %s19, 1
        %s2288 = scalar_select %p2287, %s19, 1
        %p2289 = scmp.lt.s32.totalorder %s20, 0
        %s2290 = scalar_select %p2289, %s20, 0
        %s2291 = smul.addr %s2288, 9
        %s2292 = sadd.s32 %s2290, %s2291
        %s2293 = smul.addr %s2292, 4
        %s2294 = scalar_lea.vmem %s2, %s2293
      $region40: #{basic_block_forward.2} parent=35 // pred_fallthru
        _
    $region36: #{basic_block_forward.2} parent=5 // pred_fallthru
      _
  $region6: #{basic_block_forward.2} parent=0 // loop_footer
    %s12 = sadd.s32 1, %s8
  $region7: #{basic_block_forward.2} parent=0 // loop_footer_branch
    %7 = sbr.rel target = $region3
  $region8: #{basic_block_forward.2} parent=0 // loop_exit
    _

// kernel: basic_block_forward.3
$region0: #{basic_block_forward.3}
  #allocation0 [shape = 'u32[]', space=smem, size = 0x4, offset = 0x4, fixed_abs, tag = 'smem constant byte address 0x4 - core index']
  #allocation1 [shape = 'u32[144,128]{1,0:T(1,128)}', space=vmem, size = 0x12000, scoped, tag = 'internal scratch']
  #allocation2 [shape = 'f32[80,128]{1,0:T(8,128)}', space=vmem, size = 0xa000, scoped, tag = 'scratch operand']
  %s0 = inlined_call_operand.vmem [shape: bf16[2,110,128], index: 0, kind: input, shape index: {}]
  %s1 = inlined_call_operand.vmem [shape: bf16[9,128,128], index: 1, kind: input, shape index: {}]
  %s2 = inlined_call_operand.vmem [shape: bf16[2,80,128], index: 2, kind: input, shape index: {}]
  %s3 = inlined_call_operand.vmem [shape: bf16[128,128], index: 3, kind: input, shape index: {}]
  %s4 = inlined_call_operand.vmem [shape: f32[2,80,128], index: 4, kind: output, shape index: {}]
  %s5 = sld [smem:[#allocation0]]
  $region49: #{basic_block_forward.3} parent=0
    _
  %s7 = ssub.s32 1, %s5
  %s8 = scalar_select 0, %s7, %s5
  loop: start=0, step=1, limit=4
  $region2: #{basic_block_forward.3} parent=0 // loop_pre_header
    _
  $region3: #{basic_block_forward.3} parent=0 // loop_header
    %s10 = sphi 0, %s14
    %p11 = scmp.ge.s32.totalorder %s10, 4
    %s17 = sphi 0, %s29
    %s18 = sphi 0, %s25
    %s19 = sphi 0, %s17
    %s20 = sphi 0, %s18
    %s21 = sphi 0, %s19
    %s22 = sphi 0, %s20
    %s32 = sphi 0, %s34
    %s35 = sphi 0, %s32
    %s36 = sphi 0, %s35
    %s52 = sphi 0, %s36
    %s58 = sphi 0, %s60
    %s61 = sphi 0, %s58
    %s62 = sphi 0, %s61
    %s78 = sphi 0, %s62
    %s84 = sphi 0, %s86
    %s87 = sphi 0, %s84
    %s88 = sphi 0, %s87
    %s104 = sphi 0, %s88
    %s110 = sphi 0, %s112
    %s113 = sphi 0, %s110
    %s114 = sphi 0, %s113
    %s130 = sphi 0, %s114
    %s138 = sphi 0, %s140
    %s141 = sphi 0, %s138
    %s142 = sphi 0, %s141
    %s158 = sphi 0, %s142
  $region4: #{basic_block_forward.3} parent=0 // loop_header_branch
    %13 = sbr.rel (%p11) target = $region8
  $region5: #{basic_block_forward.3} parent=0 // loop_body
    %s15 = ssub.s32 %s10, 1
    %s16 = ssub.s32 %s10, 2
    %s23 = sadd.s32 1, %s18
    %p24 = scmp.ge.s32.totalorder %s23, 1
    %s25 = scalar_select %p24, 0, %s23
    %s26 = sadd.s32 1, %s17
    %s27 = scalar_select %p24, %s26, %s17
    %p28 = scmp.ge.s32.totalorder %s27, 2
    %s29 = scalar_select %p28, 0, %s27
    %s30 = ssub.s32 %s17, %s29
    %p31 = scmp.eq.s32.totalorder %s30, 0
    %s33 = sadd.s32 %s32, 1
    %s34 = scalar_select %p31, %s32, %s33
    %p37 = pneg %p31
    %p38 = scmp.eq.s32.totalorder %s10, 1
    %p39 = por %p37, %p38
    %p40 = scmp.ne.s32.totalorder %s32, %s35
    %p41 = scmp.eq.s32.totalorder %s10, 0
    %p42 = por %p40, %p41
    %p43 = scmp.ne.s32.totalorder %s32, %s35
    %p44 = scmp.eq.s32.totalorder %s15, 1
    %p45 = por %p43, %p44
    %p46 = scmp.ne.s32.totalorder %s35, %s36
    %p47 = scmp.eq.s32.totalorder %s15, 0
    %p48 = por %p46, %p47
    %p49 = scmp.ne.s32.totalorder %s35, %s36
    %p50 = scmp.eq.s32.totalorder %s16, 1
    %p51 = por %p49, %p50
    %p53 = scmp.ne.s32.totalorder %s36, %s52
    %p54 = scmp.eq.s32.totalorder %s16, 0
    %p55 = por %p53, %p54
    %s56 = ssub.s32 %s18, %s25
    %p57 = scmp.eq.s32.totalorder %s56, 0
    %s59 = sadd.s32 %s58, 1
    %s60 = scalar_select %p57, %s58, %s59
    %p63 = pneg %p57
    %p64 = scmp.eq.s32.totalorder %s10, 1
    %p65 = por %p63, %p64
    %p66 = scmp.ne.s32.totalorder %s58, %s61
    %p67 = scmp.eq.s32.totalorder %s10, 0
    %p68 = por %p66, %p67
    %p69 = scmp.ne.s32.totalorder %s58, %s61
    %p70 = scmp.eq.s32.totalorder %s15, 1
    %p71 = por %p69, %p70
    %p72 = scmp.ne.s32.totalorder %s61, %s62
    %p73 = scmp.eq.s32.totalorder %s15, 0
    %p74 = por %p72, %p73
    %p75 = scmp.ne.s32.totalorder %s61, %s62
    %p76 = scmp.eq.s32.totalorder %s16, 1
    %p77 = por %p75, %p76
    %p79 = scmp.ne.s32.totalorder %s62, %s78
    %p80 = scmp.eq.s32.totalorder %s16, 0
    %p81 = por %p79, %p80
    %s82 = ssub.s32 %s17, %s29
    %p83 = scmp.eq.s32.totalorder %s82, 0
    %s85 = sadd.s32 %s84, 1
    %s86 = scalar_select %p83, %s84, %s85
    %p89 = pneg %p83
    %p90 = scmp.eq.s32.totalorder %s10, 1
    %p91 = por %p89, %p90
    %p92 = scmp.ne.s32.totalorder %s84, %s87
    %p93 = scmp.eq.s32.totalorder %s10, 0
    %p94 = por %p92, %p93
    %p95 = scmp.ne.s32.totalorder %s84, %s87
    %p96 = scmp.eq.s32.totalorder %s15, 1
    %p97 = por %p95, %p96
    %p98 = scmp.ne.s32.totalorder %s87, %s88
    %p99 = scmp.eq.s32.totalorder %s15, 0
    %p100 = por %p98, %p99
    %p101 = scmp.ne.s32.totalorder %s87, %s88
    %p102 = scmp.eq.s32.totalorder %s16, 1
    %p103 = por %p101, %p102
    %p105 = scmp.ne.s32.totalorder %s88, %s104
    %p106 = scmp.eq.s32.totalorder %s16, 0
    %p107 = por %p105, %p106
    %s108 = ssub.s32 %s18, %s25
    %p109 = scmp.eq.s32.totalorder %s108, 0
    %s111 = sadd.s32 %s110, 1
    %s112 = scalar_select %p109, %s110, %s111
    %p115 = pneg %p109
    %p116 = scmp.eq.s32.totalorder %s10, 1
    %p117 = por %p115, %p116
    %p118 = scmp.ne.s32.totalorder %s110, %s113
    %p119 = scmp.eq.s32.totalorder %s10, 0
    %p120 = por %p118, %p119
    %p121 = scmp.ne.s32.totalorder %s110, %s113
    %p122 = scmp.eq.s32.totalorder %s15, 1
    %p123 = por %p121, %p122
    %p124 = scmp.ne.s32.totalorder %s113, %s114
    %p125 = scmp.eq.s32.totalorder %s15, 0
    %p126 = por %p124, %p125
    %p127 = scmp.ne.s32.totalorder %s113, %s114
    %p128 = scmp.eq.s32.totalorder %s16, 1
    %p129 = por %p127, %p128
    %p131 = scmp.ne.s32.totalorder %s114, %s130
    %p132 = scmp.eq.s32.totalorder %s16, 0
    %p133 = por %p131, %p132
    %s134 = ssub.s32 %s17, %s29
    %s135 = ssub.s32 %s18, %s25
    %s136 = sor.u32 %s134, %s135
    %p137 = scmp.eq.s32.totalorder %s136, 0
    %s139 = sadd.s32 %s138, 1
    %s140 = scalar_select %p137, %s138, %s139
    %p143 = pneg %p137
    %p144 = scmp.eq.s32.totalorder %s10, 1
    %p145 = por %p143, %p144
    %p146 = scmp.ne.s32.totalorder %s138, %s141
    %p147 = scmp.eq.s32.totalorder %s10, 0
    %p148 = por %p146, %p147
    %p149 = scmp.ne.s32.totalorder %s138, %s141
    %p150 = scmp.eq.s32.totalorder %s15, 1
    %p151 = por %p149, %p150
    %p152 = scmp.ne.s32.totalorder %s141, %s142
    %p153 = scmp.eq.s32.totalorder %s15, 0
    %p154 = por %p152, %p153
    %p155 = scmp.ne.s32.totalorder %s141, %s142
    %p156 = scmp.eq.s32.totalorder %s16, 1
    %p157 = por %p155, %p156
    %p159 = scmp.ne.s32.totalorder %s142, %s158
    %p160 = scmp.eq.s32.totalorder %s16, 0
    %p161 = por %p159, %p160
    %p162 = scmp.le.s32.totalorder 1, %s10
    %p163 = scmp.lt.s32.totalorder %s10, 3
    %p164 = pnand %p162, %p163
    %p165 = pneg %p164
    // Predicated region
    $region9: #{basic_block_forward.3} parent=5 // pred_check
      _
    $region10: #{basic_block_forward.3} parent=5 // pred_check_branch
      %167 = sbr.rel (%p164) target = $region12
    $region11: #{basic_block_forward.3} parent=5 // pred_region
      %s168 = ssub.s32 %s10, 1
      // Predicated region
      $region13: #{basic_block_forward.3} parent=11 // pred_check
        %p169 = pneg %p74
      $region14: #{basic_block_forward.3} parent=11 // pred_check_branch
        %171 = sbr.rel (%p169) target = $region16
      $region15: #{basic_block_forward.3} parent=11 // pred_region
        %p172 = scmp.lt.s32.totalorder %s20, 0
        %s173 = scalar_select %p172, %s20, 0
        %s174 = smul.addr %s173, 4
        %s175 = scalar_lea.vmem %s1, %s174
      $region16: #{basic_block_forward.3} parent=11 // pred_fallthru
        _
      // Predicated region
      $region17: #{basic_block_forward.3} parent=11 // pred_check
        %p176 = pneg %p126
      $region18: #{basic_block_forward.3} parent=11 // pred_check_branch
        %178 = sbr.rel (%p176) target = $region20
      $region19: #{basic_block_forward.3} parent=11 // pred_region
        %p179 = scmp.lt.s32.totalorder %s20, 0
        %s180 = scalar_select %p179, %s20, 0
        %s181 = smul.addr %s180, 4
        %s182 = scalar_lea.vmem %s3, %s181
      $region20: #{basic_block_forward.3} parent=11 // pred_fallthru
        _
    $region12: #{basic_block_forward.3} parent=5 // pred_fallthru
      _
    %p183 = scmp.lt.s32.totalorder %s10, 2
    // Predicated region
    $region21: #{basic_block_forward.3} parent=5 // pred_check
      %p184 = pneg %p183
    $region22: #{basic_block_forward.3} parent=5 // pred_check_branch
      %186 = sbr.rel (%p184) target = $region24
    $region23: #{basic_block_forward.3} parent=5 // pred_region
      // Predicated region
      $region25: #{basic_block_forward.3} parent=23 // pred_check
        %p187 = pneg %p42
      $region26: #{basic_block_forward.3} parent=23 // pred_check_branch
        %189 = sbr.rel (%p187) target = $region28
      $region27: #{basic_block_forward.3} parent=23 // pred_region
        %p190 = scmp.lt.s32.totalorder %s17, 1
        %s191 = scalar_select %p190, %s17, 1
        %s192 = smul.addr %s191, 14
        %s193 = smul.addr %s192, 4
        %s194 = scalar_lea.vmem %s0, %s193
      $region28: #{basic_block_forward.3} parent=23 // pred_fallthru
        _
      // Predicated region
      $region29: #{basic_block_forward.3} parent=23 // pred_check
        %p195 = pneg %p94
      $region30: #{basic_block_forward.3} parent=23 // pred_check_branch
        %197 = sbr.rel (%p195) target = $region32
      $region31: #{basic_block_forward.3} parent=23 // pred_region
        %p198 = scmp.lt.s32.totalorder %s17, 1
        %s199 = scalar_select %p198, %s17, 1
        %s200 = smul.addr %s199, 10
        %s201 = smul.addr %s200, 4
        %s202 = scalar_lea.vmem %s2, %s201
      $region32: #{basic_block_forward.3} parent=23 // pred_fallthru
        _
    $region24: #{basic_block_forward.3} parent=5 // pred_fallthru
      _
    %p203 = scmp.le.s32.totalorder 1, %s10
    %p204 = scmp.lt.s32.totalorder %s10, 3
    %p205 = pnand %p203, %p204
    %p206 = pneg %p205
    // Predicated region
    $region33: #{basic_block_forward.3} parent=5 // pred_check
      _
    $region34: #{basic_block_forward.3} parent=5 // pred_check_branch
      %208 = sbr.rel (%p205) target = $region36
    $region35: #{basic_block_forward.3} parent=5 // pred_region
      %s209 = ssub.s32 %s10, 1
      %p210 = scmp.lt.s32.totalorder %s19, 1
      %s211 = scalar_select %p210, %s19, 1
      %s212 = smul.addr %s211, 14
      %s213 = smul.addr %s212, 4
      %s214 = scalar_lea.vmem %s0, %s213
      %p215 = pneg %p48
      %p216 = pneg %p45
      %p217 = scmp.lt.s32.totalorder %s20, 0
      %s218 = scalar_select %p217, %s20, 0
      %s219 = smul.addr %s218, 4
      %s220 = scalar_lea.vmem %s1, %s219
      %p221 = pneg %p74
      %p222 = pneg %p71
      %p223 = scmp.lt.s32.totalorder %s19, 1
      %s224 = scalar_select %p223, %s19, 1
      %s225 = smul.addr %s224, 10
      %s226 = smul.addr %s225, 4
      %s227 = scalar_lea.vmem %s2, %s226
      %p228 = pneg %p100
      %p229 = pneg %p97
      %p230 = scmp.lt.s32.totalorder %s20, 0
      %s231 = scalar_select %p230, %s20, 0
      %s232 = smul.addr %s231, 4
      %s233 = scalar_lea.vmem %s3, %s232
      %p234 = pneg %p126
      %p235 = pneg %p123
      %p236 = pneg %p154
      %p237 = pneg %p151
      %p238 = scmp.lt.s32.totalorder %s19, 1
      %s239 = scalar_select %p238, %s19, 1
      %p240 = scmp.lt.s32.totalorder %s20, 0
      %s241 = scalar_select %p240, %s20, 0
      %s242 = smul.addr %s239, 10
      %s243 = sadd.s32 %s241, %s242
      %s244 = smul.addr %s243, 8
      %s245 = scalar_lea.vmem %s4, %s244
      %p246 = scmp.lt.s32.totalorder %s19, 1
      %s247 = scalar_select %p246, %s19, 1
      %s248 = smul.addr %s247, 14
      %s249 = smul.addr %s248, 4
      %s250 = scalar_lea.vmem %s0, %s249
      %p251 = scmp.lt.s32.totalorder %s20, 0
      %s252 = scalar_select %p251, %s20, 0
      %s253 = smul.addr %s252, 4
      %s254 = scalar_lea.vmem %s1, %s253
      %p255 = scmp.lt.s32.totalorder %s19, 1
      %s256 = scalar_select %p255, %s19, 1
      %s257 = smul.addr %s256, 10
      %s258 = smul.addr %s257, 4
      %s259 = scalar_lea.vmem %s2, %s258
      %p260 = scmp.lt.s32.totalorder %s20, 0
      %s261 = scalar_select %p260, %s20, 0
      %s262 = smul.addr %s261, 4
      %s263 = scalar_lea.vmem %s3, %s262
      %p264 = scmp.lt.s32.totalorder %s19, 1
      %s265 = scalar_select %p264, %s19, 1
      %p266 = scmp.lt.s32.totalorder %s20, 0
      %s267 = scalar_select %p266, %s20, 0
      %s268 = smul.addr %s265, 10
      %s269 = sadd.s32 %s267, %s268
      %s270 = smul.addr %s269, 8
      %s271 = scalar_lea.vmem %s4, %s270
      %v273 = vld [vmem:[%s250] sm:$0xf]
      %v274 = vld [vmem:[%s250 + $0x4] sm:$0xf]
      %v275 = vld [vmem:[%s250 + $0x8] sm:$0xf]
      %v276 = vld [vmem:[%s250 + $0xc] sm:$0xf]
      %v277 = vld [vmem:[%s250 + $0x10] sm:$0xf]
      %v278 = vld [vmem:[%s250 + $0x14] sm:$0xf]
      %v279 = vld [vmem:[%s250 + $0x18] sm:$0xf]
      %v280 = vld [vmem:[%s250 + $0x1c] sm:$0xf]
      %v281 = vld [vmem:[%s250 + $0x20] sm:$0xf]
      %v282 = vld [vmem:[%s250 + $0x24] sm:$0xf]
      %v283 = vld [vmem:[%s254] sm:$0xf]
      %v284 = vld [vmem:[%s254 + $0x4] sm:$0xf]
      %v285 = vld [vmem:[%s254 + $0x8] sm:$0xf]
      %v286 = vld [vmem:[%s254 + $0xc] sm:$0xf]
      %v287 = vld [vmem:[%s254 + $0x10] sm:$0xf]
      %v288 = vld [vmem:[%s254 + $0x14] sm:$0xf]
      %v289 = vld [vmem:[%s254 + $0x18] sm:$0xf]
      %v290 = vld [vmem:[%s254 + $0x1c] sm:$0xf]
      %v291 = vld [vmem:[%s254 + $0x20] sm:$0xf]
      %v292 = vld [vmem:[%s254 + $0x24] sm:$0xf]
      %v293 = vld [vmem:[%s254 + $0x28] sm:$0xf]
      %v294 = vld [vmem:[%s254 + $0x2c] sm:$0xf]
      %v295 = vld [vmem:[%s254 + $0x30] sm:$0xf]
      %v296 = vld [vmem:[%s254 + $0x34] sm:$0xf]
      %v297 = vld [vmem:[%s254 + $0x38] sm:$0xf]
      %v298 = vld [vmem:[%s254 + $0x3c] sm:$0xf]
      %v309 = vunpack.c.l.b16 %v273
      %v310 = vunpack.c.l.b16 %v274
      %v311 = vunpack.c.l.b16 %v275
      %v312 = vunpack.c.l.b16 %v276
      %v313 = vunpack.c.l.b16 %v277
      %v314 = vunpack.c.l.b16 %v278
      %v315 = vunpack.c.l.b16 %v279
      %v316 = vunpack.c.l.b16 %v280
      %v317 = vunpack.c.l.b16 %v281
      %v318 = vunpack.c.l.b16 %v282
      %v319 = vpack.c.b16 %v310, %v309
      %v320 = vpack.c.b16 %v312, %v311
      %v321 = vpack.c.b16 %v314, %v313
      %v322 = vpack.c.b16 %v316, %v315
      %v323 = vpack.c.b16 %v318, %v317
      %v345 = vunpack.c.l.b16 %v283
      %v346 = vunpack.c.l.b16 %v284
      %v347 = vunpack.c.l.b16 %v285
      %v348 = vunpack.c.l.b16 %v286
      %v349 = vunpack.c.l.b16 %v287
      %v350 = vunpack.c.l.b16 %v288
      %v351 = vunpack.c.l.b16 %v289
      %v352 = vunpack.c.l.b16 %v290
      %v353 = vunpack.c.l.b16 %v291
      %v354 = vunpack.c.l.b16 %v292
      %v355 = vunpack.c.l.b16 %v293
      %v356 = vunpack.c.l.b16 %v294
      %v357 = vunpack.c.l.b16 %v295
      %v358 = vunpack.c.l.b16 %v296
      %v359 = vunpack.c.l.b16 %v297
      %v360 = vunpack.c.l.b16 %v298
      %v361 = vpack.c.b16 %v346, %v345
      %v362 = vpack.c.b16 %v348, %v347
      %v363 = vpack.c.b16 %v350, %v349
      %v364 = vpack.c.b16 %v352, %v351
      %v365 = vpack.c.b16 %v354, %v353
      %v366 = vpack.c.b16 %v356, %v355
      %v367 = vpack.c.b16 %v358, %v357
      %v368 = vpack.c.b16 %v360, %v359
      %377 = vmatprep.subr.bf16.mxu0 0
      %378 = vmatpush1.bf16.msra.mxu0 %v368
      %379 = vmatprep.subr.bf16.mxu0 0
      %380 = vmatpush1.bf16.msra.mxu0 %v367
      %381 = vmatprep.subr.bf16.mxu0 0
      %382 = vmatpush1.bf16.msra.mxu0 %v366
      %383 = vmatprep.subr.bf16.mxu0 0
      %384 = vmatpush1.bf16.msra.mxu0 %v365
      %385 = vmatprep.subr.bf16.mxu0 0
      %386 = vmatpush1.bf16.msra.mxu0 %v364
      %387 = vmatprep.subr.bf16.mxu0 0
      %388 = vmatpush1.bf16.msra.mxu0 %v363
      %389 = vmatprep.subr.bf16.mxu0 0
      %390 = vmatpush1.bf16.msra.mxu0 %v362
      %391 = vmatprep.subr.bf16.mxu0 0
      %392 = vmatpush1.bf16.msra.mxu0 %v361
      %393 = vmatprep.subr.bf16.mxu0 0
      %394 = vmatpush2.bf16.msra.mxu0 0
      %395 = vmatprep.subr.bf16.mxu0 0
      %396 = vmatpush2.bf16.msra.mxu0 0
      %397 = vmatprep.subr.bf16.mxu0 0
      %398 = vmatpush2.bf16.msra.mxu0 0
      %399 = vmatprep.subr.bf16.mxu0 0
      %400 = vmatpush2.bf16.msra.mxu0 0
      %401 = vmatprep.subr.bf16.mxu0 0
      %402 = vmatpush2.bf16.msra.mxu0 0
      %403 = vmatprep.subr.bf16.mxu0 0
      %404 = vmatpush2.bf16.msra.mxu0 0
      %405 = vmatprep.subr.bf16.mxu0 0
      %406 = vmatpush2.bf16.msra.mxu0 0
      %407 = vmatprep.subr.bf16.mxu0 0
      %408 = vmatpush2.bf16.msra.mxu0 0
      %409 = vmatprep.mubr.bf16.mxu0 0
      %410 = vmatmul.mubr.bf16.gmra.mxu0 %v319
      %v411 = vpop.f32.mrf.mxu0
      %v412 = vadd.f32 0.0, %v411
      %v413 = vpop.f32.mrf.mxu0
      %v414 = vpop.f32.mrf.mxu0
      %v415 = vadd.f32 0.0, %v414
      %v416 = vpop.f32.mrf.mxu0
      %417 = vmatprep.mubr.bf16.mxu0 0
      %418 = vmatmul.mubr.bf16.gmra.mxu0 %v320
      %v419 = vpop.f32.mrf.mxu0
      %v420 = vadd.f32 0.0, %v419
      %v421 = vpop.f32.mrf.mxu0
      %v422 = vpop.f32.mrf.mxu0
      %v423 = vadd.f32 0.0, %v422
      %v424 = vpop.f32.mrf.mxu0
      %425 = vmatprep.mubr.bf16.mxu0 0
      %426 = vmatmul.mubr.bf16.gmra.mxu0 %v321
      %v427 = vpop.f32.mrf.mxu0
      %v428 = vadd.f32 0.0, %v427
      %v429 = vpop.f32.mrf.mxu0
      %v430 = vpop.f32.mrf.mxu0
      %v431 = vadd.f32 0.0, %v430
      %v432 = vpop.f32.mrf.mxu0
      %433 = vmatprep.mubr.bf16.mxu0 0
      %434 = vmatmul.mubr.bf16.gmra.mxu0 %v322
      %v435 = vpop.f32.mrf.mxu0
      %v436 = vadd.f32 0.0, %v435
      %v437 = vpop.f32.mrf.mxu0
      %v438 = vpop.f32.mrf.mxu0
      %v439 = vadd.f32 0.0, %v438
      %v440 = vpop.f32.mrf.mxu0
      %441 = vmatprep.mubr.bf16.mxu0 0
      %442 = vmatmul.mubr.bf16.gmra.mxu0 %v323
      %v443 = vpop.f32.mrf.mxu0
      %v444 = vadd.f32 0.0, %v443
      %v445 = vpop.f32.mrf.mxu0
      %v446 = vpop.f32.mrf.mxu0
      %v447 = vadd.f32 0.0, %v446
      %v448 = vpop.f32.mrf.mxu0
      %449 = vdwg.mxu0
      %450 = vst [vmem:[#allocation2] sm:$0xff] %v412
      %451 = vst [vmem:[#allocation2 + $0x8] sm:$0xff] %v415
      %452 = vst [vmem:[#allocation2 + $0x10] sm:$0xff] %v420
      %453 = vst [vmem:[#allocation2 + $0x18] sm:$0xff] %v423
      %454 = vst [vmem:[#allocation2 + $0x20] sm:$0xff] %v428
      %455 = vst [vmem:[#allocation2 + $0x28] sm:$0xff] %v431
      %456 = vst [vmem:[#allocation2 + $0x30] sm:$0xff] %v436
      %457 = vst [vmem:[#allocation2 + $0x38] sm:$0xff] %v439
      %458 = vst [vmem:[#allocation2 + $0x40] sm:$0xff] %v444
      %459 = vst [vmem:[#allocation2 + $0x48] sm:$0xff] %v447
      %v460 = vld [vmem:[%s250] sm:$0xf]
      %v461 = vld [vmem:[%s250 + $0x4] sm:$0xf]
      %v462 = vld [vmem:[%s250 + $0x8] sm:$0xf]
      %v463 = vld [vmem:[%s250 + $0xc] sm:$0xf]
      %v464 = vld [vmem:[%s250 + $0x10] sm:$0xf]
      %v465 = vld [vmem:[%s250 + $0x14] sm:$0xf]
      %v466 = vld [vmem:[%s250 + $0x18] sm:$0xf]
      %v467 = vld [vmem:[%s250 + $0x1c] sm:$0xf]
      %v468 = vld [vmem:[%s250 + $0x20] sm:$0xf]
      %v469 = vld [vmem:[%s250 + $0x24] sm:$0xf]
      %v470 = vld [vmem:[%s250 + $0x28] sm:$0x1]
      %s471 = scalar_lea.vmem %s254, 64
      %v472 = vld [vmem:[%s471] sm:$0xf]
      %v473 = vld [vmem:[%s471 + $0x4] sm:$0xf]
      %v474 = vld [vmem:[%s471 + $0x8] sm:$0xf]
      %v475 = vld [vmem:[%s471 + $0xc] sm:$0xf]
      %v476 = vld [vmem:[%s471 + $0x10] sm:$0xf]
      %v477 = vld [vmem:[%s471 + $0x14] sm:$0xf]
      %v478 = vld [vmem:[%s471 + $0x18] sm:$0xf]
      %v479 = vld [vmem:[%s471 + $0x1c] sm:$0xf]
      %v480 = vld [vmem:[%s471 + $0x20] sm:$0xf]
      %v481 = vld [vmem:[%s471 + $0x24] sm:$0xf]
      %v482 = vld [vmem:[%s471 + $0x28] sm:$0xf]
      %v483 = vld [vmem:[%s471 + $0x2c] sm:$0xf]
      %v484 = vld [vmem:[%s471 + $0x30] sm:$0xf]
      %v485 = vld [vmem:[%s471 + $0x34] sm:$0xf]
      %v486 = vld [vmem:[%s471 + $0x38] sm:$0xf]
      %v487 = vld [vmem:[%s471 + $0x3c] sm:$0xf]
      %v499 = vunpack.c.l.b16 %v460
      %v500 = vunpack.c.l.b16 %v461
      %v501 = vunpack.c.l.b16 %v462
      %v502 = vunpack.c.l.b16 %v463
      %v503 = vunpack.c.l.b16 %v464
      %v504 = vunpack.c.l.b16 %v465
      %v505 = vunpack.c.l.b16 %v466
      %v506 = vunpack.c.l.b16 %v467
      %v507 = vunpack.c.l.b16 %v468
      %v508 = vunpack.c.l.b16 %v469
      %v509 = vunpack.c.l.b16 %v470
      %v510 = vpack.c.b16 %v500, %v499
      %v511 = vpack.c.b16 %v502, %v501
      %v512 = vpack.c.b16 %v504, %v503
      %v513 = vpack.c.b16 %v506, %v505
      %v514 = vpack.c.b16 %v508, %v507
      %v515 = vpack.c.b16 %v509, %v509
      %vm516 = vsmask.f32 7424
      %v518 = vshrl.u32 %v510, 16
      %v520 = vshll.u32 %v510, 16
      %v522 = vrot.slane %v520, 1
      %v523 = vor.u32 %v518, %v522
      %v525 = vshll.u32 %v511, 16
      %v527 = vrot.slane %v525, 1
      %v528 = vsel %vm516, %v523, %v527
      %v529 = vshrl.u32 %v511, 16
      %v531 = vor.u32 %v529, %v527
      %v533 = vshll.u32 %v512, 16
      %v535 = vrot.slane %v533, 1
      %v536 = vsel %vm516, %v531, %v535
      %v537 = vshrl.u32 %v512, 16
      %v539 = vor.u32 %v537, %v535
      %v541 = vshll.u32 %v513, 16
      %v543 = vrot.slane %v541, 1
      %v544 = vsel %vm516, %v539, %v543
      %v545 = vshrl.u32 %v513, 16
      %v547 = vor.u32 %v545, %v543
      %v549 = vshll.u32 %v514, 16
      %v551 = vrot.slane %v549, 1
      %v552 = vsel %vm516, %v547, %v551
      %v553 = vshrl.u32 %v514, 16
      %v555 = vor.u32 %v553, %v551
      %v557 = vshll.u32 %v515, 16
      %v559 = vrot.slane %v557, 1
      %v560 = vsel %vm516, %v555, %v559
      %v582 = vunpack.c.l.b16 %v472
      %v583 = vunpack.c.l.b16 %v473
      %v584 = vunpack.c.l.b16 %v474
      %v585 = vunpack.c.l.b16 %v475
      %v586 = vunpack.c.l.b16 %v476
      %v587 = vunpack.c.l.b16 %v477
      %v588 = vunpack.c.l.b16 %v478
      %v589 = vunpack.c.l.b16 %v479
      %v590 = vunpack.c.l.b16 %v480
      %v591 = vunpack.c.l.b16 %v481
      %v592 = vunpack.c.l.b16 %v482
      %v593 = vunpack.c.l.b16 %v483
      %v594 = vunpack.c.l.b16 %v484
      %v595 = vunpack.c.l.b16 %v485
      %v596 = vunpack.c.l.b16 %v486
      %v597 = vunpack.c.l.b16 %v487
      %v598 = vpack.c.b16 %v583, %v582
      %v599 = vpack.c.b16 %v585, %v584
      %v600 = vpack.c.b16 %v587, %v586
      %v601 = vpack.c.b16 %v589, %v588
      %v602 = vpack.c.b16 %v591, %v590
      %v603 = vpack.c.b16 %v593, %v592
      %v604 = vpack.c.b16 %v595, %v594
      %v605 = vpack.c.b16 %v597, %v596
      %614 = vmatprep.subr.bf16.mxu0 0
      %615 = vmatpush1.bf16.msra.mxu0 %v605
      %616 = vmatprep.subr.bf16.mxu0 0
      %617 = vmatpush1.bf16.msra.mxu0 %v604
      %618 = vmatprep.subr.bf16.mxu0 0
      %619 = vmatpush1.bf16.msra.mxu0 %v603
      %620 = vmatprep.subr.bf16.mxu0 0
      %621 = vmatpush1.bf16.msra.mxu0 %v602
      %622 = vmatprep.subr.bf16.mxu0 0
      %623 = vmatpush1.bf16.msra.mxu0 %v601
      %624 = vmatprep.subr.bf16.mxu0 0
      %625 = vmatpush1.bf16.msra.mxu0 %v600
      %626 = vmatprep.subr.bf16.mxu0 0
      %627 = vmatpush1.bf16.msra.mxu0 %v599
      %628 = vmatprep.subr.bf16.mxu0 0
      %629 = vmatpush1.bf16.msra.mxu0 %v598
      %630 = vmatprep.subr.bf16.mxu0 0
      %631 = vmatpush2.bf16.msra.mxu0 0
      %632 = vmatprep.subr.bf16.mxu0 0
      %633 = vmatpush2.bf16.msra.mxu0 0
      %634 = vmatprep.subr.bf16.mxu0 0
      %635 = vmatpush2.bf16.msra.mxu0 0
      %636 = vmatprep.subr.bf16.mxu0 0
      %637 = vmatpush2.bf16.msra.mxu0 0
      %638 = vmatprep.subr.bf16.mxu0 0
      %639 = vmatpush2.bf16.msra.mxu0 0
      %640 = vmatprep.subr.bf16.mxu0 0
      %641 = vmatpush2.bf16.msra.mxu0 0
      %642 = vmatprep.subr.bf16.mxu0 0
      %643 = vmatpush2.bf16.msra.mxu0 0
      %644 = vmatprep.subr.bf16.mxu0 0
      %645 = vmatpush2.bf16.msra.mxu0 0
      %646 = vmatprep.mubr.bf16.mxu0 0
      %647 = vmatmul.mubr.bf16.gmra.mxu0 %v528
      %v648 = vpop.f32.mrf.mxu0
      %v649 = vadd.f32 0.0, %v648
      %v650 = vpop.f32.mrf.mxu0
      %v651 = vpop.f32.mrf.mxu0
      %v652 = vadd.f32 0.0, %v651
      %v653 = vpop.f32.mrf.mxu0
      %654 = vmatprep.mubr.bf16.mxu0 0
      %655 = vmatmul.mubr.bf16.gmra.mxu0 %v536
      %v656 = vpop.f32.mrf.mxu0
      %v657 = vadd.f32 0.0, %v656
      %v658 = vpop.f32.mrf.mxu0
      %v659 = vpop.f32.mrf.mxu0
      %v660 = vadd.f32 0.0, %v659
      %v661 = vpop.f32.mrf.mxu0
      %662 = vmatprep.mubr.bf16.mxu0 0
      %663 = vmatmul.mubr.bf16.gmra.mxu0 %v544
      %v664 = vpop.f32.mrf.mxu0
      %v665 = vadd.f32 0.0, %v664
      %v666 = vpop.f32.mrf.mxu0
      %v667 = vpop.f32.mrf.mxu0
      %v668 = vadd.f32 0.0, %v667
      %v669 = vpop.f32.mrf.mxu0
      %670 = vmatprep.mubr.bf16.mxu0 0
      %671 = vmatmul.mubr.bf16.gmra.mxu0 %v552
      %v672 = vpop.f32.mrf.mxu0
      %v673 = vadd.f32 0.0, %v672
      %v674 = vpop.f32.mrf.mxu0
      %v675 = vpop.f32.mrf.mxu0
      %v676 = vadd.f32 0.0, %v675
      %v677 = vpop.f32.mrf.mxu0
      %678 = vmatprep.mubr.bf16.mxu0 0
      %679 = vmatmul.mubr.bf16.gmra.mxu0 %v560
      %v680 = vpop.f32.mrf.mxu0
      %v681 = vadd.f32 0.0, %v680
      %v682 = vpop.f32.mrf.mxu0
      %v683 = vpop.f32.mrf.mxu0
      %v684 = vadd.f32 0.0, %v683
      %v685 = vpop.f32.mrf.mxu0
      %686 = vdwg.mxu0
      %v687 = vld [vmem:[#allocation2] sm:$0xff]
      %v688 = vld [vmem:[#allocation2 + $0x8] sm:$0xff]
      %v689 = vld [vmem:[#allocation2 + $0x10] sm:$0xff]
      %v690 = vld [vmem:[#allocation2 + $0x18] sm:$0xff]
      %v691 = vld [vmem:[#allocation2 + $0x20] sm:$0xff]
      %v692 = vld [vmem:[#allocation2 + $0x28] sm:$0xff]
      %v693 = vld [vmem:[#allocation2 + $0x30] sm:$0xff]
      %v694 = vld [vmem:[#allocation2 + $0x38] sm:$0xff]
      %v695 = vld [vmem:[#allocation2 + $0x40] sm:$0xff]
      %v696 = vld [vmem:[#allocation2 + $0x48] sm:$0xff]
      %v697 = vadd.f32 %v687, %v649
      %v698 = vadd.f32 %v688, %v652
      %v699 = vadd.f32 %v689, %v657
      %v700 = vadd.f32 %v690, %v660
      %v701 = vadd.f32 %v691, %v665
      %v702 = vadd.f32 %v692, %v668
      %v703 = vadd.f32 %v693, %v673
      %v704 = vadd.f32 %v694, %v676
      %v705 = vadd.f32 %v695, %v681
      %v706 = vadd.f32 %v696, %v684
      %707 = vst [vmem:[#allocation2] sm:$0xff] %v697
      %708 = vst [vmem:[#allocation2 + $0x8] sm:$0xff] %v698
      %709 = vst [vmem:[#allocation2 + $0x10] sm:$0xff] %v699
      %710 = vst [vmem:[#allocation2 + $0x18] sm:$0xff] %v700
      %711 = vst [vmem:[#allocation2 + $0x20] sm:$0xff] %v701
      %712 = vst [vmem:[#allocation2 + $0x28] sm:$0xff] %v702
      %713 = vst [vmem:[#allocation2 + $0x30] sm:$0xff] %v703
      %714 = vst [vmem:[#allocation2 + $0x38] sm:$0xff] %v704
      %715 = vst [vmem:[#allocation2 + $0x40] sm:$0xff] %v705
      %716 = vst [vmem:[#allocation2 + $0x48] sm:$0xff] %v706
      %v717 = vld [vmem:[%s250] sm:$0xe]
      %v718 = vld [vmem:[%s250 + $0x4] sm:$0xf]
      %v719 = vld [vmem:[%s250 + $0x8] sm:$0xf]
      %v720 = vld [vmem:[%s250 + $0xc] sm:$0xf]
      %v721 = vld [vmem:[%s250 + $0x10] sm:$0xf]
      %v722 = vld [vmem:[%s250 + $0x14] sm:$0xf]
      %v723 = vld [vmem:[%s250 + $0x18] sm:$0xf]
      %v724 = vld [vmem:[%s250 + $0x1c] sm:$0xf]
      %v725 = vld [vmem:[%s250 + $0x20] sm:$0xf]
      %v726 = vld [vmem:[%s250 + $0x24] sm:$0xf]
      %v727 = vld [vmem:[%s250 + $0x28] sm:$0x1]
      %s728 = scalar_lea.vmem %s254, 128
      %v729 = vld [vmem:[%s728] sm:$0xf]
      %v730 = vld [vmem:[%s728 + $0x4] sm:$0xf]
      %v731 = vld [vmem:[%s728 + $0x8] sm:$0xf]
      %v732 = vld [vmem:[%s728 + $0xc] sm:$0xf]
      %v733 = vld [vmem:[%s728 + $0x10] sm:$0xf]
      %v734 = vld [vmem:[%s728 + $0x14] sm:$0xf]
      %v735 = vld [vmem:[%s728 + $0x18] sm:$0xf]
      %v736 = vld [vmem:[%s728 + $0x1c] sm:$0xf]
      %v737 = vld [vmem:[%s728 + $0x20] sm:$0xf]
      %v738 = vld [vmem:[%s728 + $0x24] sm:$0xf]
      %v739 = vld [vmem:[%s728 + $0x28] sm:$0xf]
      %v740 = vld [vmem:[%s728 + $0x2c] sm:$0xf]
      %v741 = vld [vmem:[%s728 + $0x30] sm:$0xf]
      %v742 = vld [vmem:[%s728 + $0x34] sm:$0xf]
      %v743 = vld [vmem:[%s728 + $0x38] sm:$0xf]
      %v744 = vld [vmem:[%s728 + $0x3c] sm:$0xf]
      %v756 = vunpack.c.l.b16 %v717
      %v757 = vunpack.c.l.b16 %v718
      %v758 = vunpack.c.l.b16 %v719
      %v759 = vunpack.c.l.b16 %v720
      %v760 = vunpack.c.l.b16 %v721
      %v761 = vunpack.c.l.b16 %v722
      %v762 = vunpack.c.l.b16 %v723
      %v763 = vunpack.c.l.b16 %v724
      %v764 = vunpack.c.l.b16 %v725
      %v765 = vunpack.c.l.b16 %v726
      %v766 = vunpack.c.l.b16 %v727
      %v767 = vpack.c.b16 %v757, %v756
      %v768 = vpack.c.b16 %v759, %v758
      %v769 = vpack.c.b16 %v761, %v760
      %v770 = vpack.c.b16 %v763, %v762
      %v771 = vpack.c.b16 %v765, %v764
      %v772 = vpack.c.b16 %v766, %v766
      %vm773 = vcmask 1046528
      %v774 = vrot.slane %v767, 1
      %v775 = vrot.slane %v768, 1
      %v776 = vsel %vm773, %v774, %v775
      %v777 = vrot.slane %v769, 1
      %v778 = vsel %vm773, %v775, %v777
      %v779 = vrot.slane %v770, 1
      %v780 = vsel %vm773, %v777, %v779
      %v781 = vrot.slane %v771, 1
      %v782 = vsel %vm773, %v779, %v781
      %v783 = vrot.slane %v772, 1
      %v784 = vsel %vm773, %v781, %v783
      %v806 = vunpack.c.l.b16 %v729
      %v807 = vunpack.c.l.b16 %v730
      %v808 = vunpack.c.l.b16 %v731
      %v809 = vunpack.c.l.b16 %v732
      %v810 = vunpack.c.l.b16 %v733
      %v811 = vunpack.c.l.b16 %v734
      %v812 = vunpack.c.l.b16 %v735
      %v813 = vunpack.c.l.b16 %v736
      %v814 = vunpack.c.l.b16 %v737
      %v815 = vunpack.c.l.b16 %v738
      %v816 = vunpack.c.l.b16 %v739
      %v817 = vunpack.c.l.b16 %v740
      %v818 = vunpack.c.l.b16 %v741
      %v819 = vunpack.c.l.b16 %v742
      %v820 = vunpack.c.l.b16 %v743
      %v821 = vunpack.c.l.b16 %v744
      %v822 = vpack.c.b16 %v807, %v806
      %v823 = vpack.c.b16 %v809, %v808
      %v824 = vpack.c.b16 %v811, %v810
      %v825 = vpack.c.b16 %v813, %v812
      %v826 = vpack.c.b16 %v815, %v814
      %v827 = vpack.c.b16 %v817, %v816
      %v828 = vpack.c.b16 %v819, %v818
      %v829 = vpack.c.b16 %v821, %v820
      %838 = vmatprep.subr.bf16.mxu0 0
      %839 = vmatpush1.bf16.msra.mxu0 %v829
      %840 = vmatprep.subr.bf16.mxu0 0
      %841 = vmatpush1.bf16.msra.mxu0 %v828
      %842 = vmatprep.subr.bf16.mxu0 0
      %843 = vmatpush1.bf16.msra.mxu0 %v827
      %844 = vmatprep.subr.bf16.mxu0 0
      %845 = vmatpush1.bf16.msra.mxu0 %v826
      %846 = vmatprep.subr.bf16.mxu0 0
      %847 = vmatpush1.bf16.msra.mxu0 %v825
      %848 = vmatprep.subr.bf16.mxu0 0
      %849 = vmatpush1.bf16.msra.mxu0 %v824
      %850 = vmatprep.subr.bf16.mxu0 0
      %851 = vmatpush1.bf16.msra.mxu0 %v823
      %852 = vmatprep.subr.bf16.mxu0 0
      %853 = vmatpush1.bf16.msra.mxu0 %v822
      %854 = vmatprep.subr.bf16.mxu0 0
      %855 = vmatpush2.bf16.msra.mxu0 0
      %856 = vmatprep.subr.bf16.mxu0 0
      %857 = vmatpush2.bf16.msra.mxu0 0
      %858 = vmatprep.subr.bf16.mxu0 0
      %859 = vmatpush2.bf16.msra.mxu0 0
      %860 = vmatprep.subr.bf16.mxu0 0
      %861 = vmatpush2.bf16.msra.mxu0 0
      %862 = vmatprep.subr.bf16.mxu0 0
      %863 = vmatpush2.bf16.msra.mxu0 0
      %864 = vmatprep.subr.bf16.mxu0 0
      %865 = vmatpush2.bf16.msra.mxu0 0
      %866 = vmatprep.subr.bf16.mxu0 0
      %867 = vmatpush2.bf16.msra.mxu0 0
      %868 = vmatprep.subr.bf16.mxu0 0
      %869 = vmatpush2.bf16.msra.mxu0 0
      %870 = vmatprep.mubr.bf16.mxu0 0
      %871 = vmatmul.mubr.bf16.gmra.mxu0 %v776
      %v872 = vpop.f32.mrf.mxu0
      %v873 = vadd.f32 0.0, %v872
      %v874 = vpop.f32.mrf.mxu0
      %v875 = vpop.f32.mrf.mxu0
      %v876 = vadd.f32 0.0, %v875
      %v877 = vpop.f32.mrf.mxu0
      %878 = vmatprep.mubr.bf16.mxu0 0
      %879 = vmatmul.mubr.bf16.gmra.mxu0 %v778
      %v880 = vpop.f32.mrf.mxu0
      %v881 = vadd.f32 0.0, %v880
      %v882 = vpop.f32.mrf.mxu0
      %v883 = vpop.f32.mrf.mxu0
      %v884 = vadd.f32 0.0, %v883
      %v885 = vpop.f32.mrf.mxu0
      %886 = vmatprep.mubr.bf16.mxu0 0
      %887 = vmatmul.mubr.bf16.gmra.mxu0 %v780
      %v888 = vpop.f32.mrf.mxu0
      %v889 = vadd.f32 0.0, %v888
      %v890 = vpop.f32.mrf.mxu0
      %v891 = vpop.f32.mrf.mxu0
      %v892 = vadd.f32 0.0, %v891
      %v893 = vpop.f32.mrf.mxu0
      %894 = vmatprep.mubr.bf16.mxu0 0
      %895 = vmatmul.mubr.bf16.gmra.mxu0 %v782
      %v896 = vpop.f32.mrf.mxu0
      %v897 = vadd.f32 0.0, %v896
      %v898 = vpop.f32.mrf.mxu0
      %v899 = vpop.f32.mrf.mxu0
      %v900 = vadd.f32 0.0, %v899
      %v901 = vpop.f32.mrf.mxu0
      %902 = vmatprep.mubr.bf16.mxu0 0
      %903 = vmatmul.mubr.bf16.gmra.mxu0 %v784
      %v904 = vpop.f32.mrf.mxu0
      %v905 = vadd.f32 0.0, %v904
      %v906 = vpop.f32.mrf.mxu0
      %v907 = vpop.f32.mrf.mxu0
      %v908 = vadd.f32 0.0, %v907
      %v909 = vpop.f32.mrf.mxu0
      %910 = vdwg.mxu0
      %v911 = vld [vmem:[#allocation2] sm:$0xff]
      %v912 = vld [vmem:[#allocation2 + $0x8] sm:$0xff]
      %v913 = vld [vmem:[#allocation2 + $0x10] sm:$0xff]
      %v914 = vld [vmem:[#allocation2 + $0x18] sm:$0xff]
      %v915 = vld [vmem:[#allocation2 + $0x20] sm:$0xff]
      %v916 = vld [vmem:[#allocation2 + $0x28] sm:$0xff]
      %v917 = vld [vmem:[#allocation2 + $0x30] sm:$0xff]
      %v918 = vld [vmem:[#allocation2 + $0x38] sm:$0xff]
      %v919 = vld [vmem:[#allocation2 + $0x40] sm:$0xff]
      %v920 = vld [vmem:[#allocation2 + $0x48] sm:$0xff]
      %v921 = vadd.f32 %v911, %v873
      %v922 = vadd.f32 %v912, %v876
      %v923 = vadd.f32 %v913, %v881
      %v924 = vadd.f32 %v914, %v884
      %v925 = vadd.f32 %v915, %v889
      %v926 = vadd.f32 %v916, %v892
      %v927 = vadd.f32 %v917, %v897
      %v928 = vadd.f32 %v918, %v900
      %v929 = vadd.f32 %v919, %v905
      %v930 = vadd.f32 %v920, %v908
      %931 = vst [vmem:[#allocation2] sm:$0xff] %v921
      %932 = vst [vmem:[#allocation2 + $0x8] sm:$0xff] %v922
      %933 = vst [vmem:[#allocation2 + $0x10] sm:$0xff] %v923
      %934 = vst [vmem:[#allocation2 + $0x18] sm:$0xff] %v924
      %935 = vst [vmem:[#allocation2 + $0x20] sm:$0xff] %v925
      %936 = vst [vmem:[#allocation2 + $0x28] sm:$0xff] %v926
      %937 = vst [vmem:[#allocation2 + $0x30] sm:$0xff] %v927
      %938 = vst [vmem:[#allocation2 + $0x38] sm:$0xff] %v928
      %939 = vst [vmem:[#allocation2 + $0x40] sm:$0xff] %v929
      %940 = vst [vmem:[#allocation2 + $0x48] sm:$0xff] %v930
      %v941 = vld [vmem:[%s250 + $0x4] sm:$0xe]
      %v942 = vld [vmem:[%s250 + $0x8] sm:$0xf]
      %v943 = vld [vmem:[%s250 + $0xc] sm:$0xf]
      %v944 = vld [vmem:[%s250 + $0x10] sm:$0xf]
      %v945 = vld [vmem:[%s250 + $0x14] sm:$0xf]
      %v946 = vld [vmem:[%s250 + $0x18] sm:$0xf]
      %v947 = vld [vmem:[%s250 + $0x1c] sm:$0xf]
      %v948 = vld [vmem:[%s250 + $0x20] sm:$0xf]
      %v949 = vld [vmem:[%s250 + $0x24] sm:$0xf]
      %v950 = vld [vmem:[%s250 + $0x28] sm:$0xf]
      %v951 = vld [vmem:[%s250 + $0x2c] sm:$0x1]
      %s952 = scalar_lea.vmem %s254, 192
      %v953 = vld [vmem:[%s952] sm:$0xf]
      %v954 = vld [vmem:[%s952 + $0x4] sm:$0xf]
      %v955 = vld [vmem:[%s952 + $0x8] sm:$0xf]
      %v956 = vld [vmem:[%s952 + $0xc] sm:$0xf]
      %v957 = vld [vmem:[%s952 + $0x10] sm:$0xf]
      %v958 = vld [vmem:[%s952 + $0x14] sm:$0xf]
      %v959 = vld [vmem:[%s952 + $0x18] sm:$0xf]
      %v960 = vld [vmem:[%s952 + $0x1c] sm:$0xf]
      %v961 = vld [vmem:[%s952 + $0x20] sm:$0xf]
      %v962 = vld [vmem:[%s952 + $0x24] sm:$0xf]
      %v963 = vld [vmem:[%s952 + $0x28] sm:$0xf]
      %v964 = vld [vmem:[%s952 + $0x2c] sm:$0xf]
      %v965 = vld [vmem:[%s952 + $0x30] sm:$0xf]
      %v966 = vld [vmem:[%s952 + $0x34] sm:$0xf]
      %v967 = vld [vmem:[%s952 + $0x38] sm:$0xf]
      %v968 = vld [vmem:[%s952 + $0x3c] sm:$0xf]
      %v980 = vunpack.c.l.b16 %v941
      %v981 = vunpack.c.l.b16 %v942
      %v982 = vunpack.c.l.b16 %v943
      %v983 = vunpack.c.l.b16 %v944
      %v984 = vunpack.c.l.b16 %v945
      %v985 = vunpack.c.l.b16 %v946
      %v986 = vunpack.c.l.b16 %v947
      %v987 = vunpack.c.l.b16 %v948
      %v988 = vunpack.c.l.b16 %v949
      %v989 = vunpack.c.l.b16 %v950
      %v990 = vunpack.c.l.b16 %v951
      %v991 = vpack.c.b16 %v981, %v980
      %v992 = vpack.c.b16 %v983, %v982
      %v993 = vpack.c.b16 %v985, %v984
      %v994 = vpack.c.b16 %v987, %v986
      %v995 = vpack.c.b16 %v989, %v988
      %v996 = vpack.c.b16 %v990, %v990
      %v997 = vrot.slane %v991, 1
      %v998 = vrot.slane %v992, 1
      %v999 = vsel %vm773, %v997, %v998
      %v1000 = vrot.slane %v993, 1
      %v1001 = vsel %vm773, %v998, %v1000
      %v1002 = vrot.slane %v994, 1
      %v1003 = vsel %vm773, %v1000, %v1002
      %v1004 = vrot.slane %v995, 1
      %v1005 = vsel %vm773, %v1002, %v1004
      %v1006 = vrot.slane %v996, 1
      %v1007 = vsel %vm773, %v1004, %v1006
      %v1029 = vunpack.c.l.b16 %v953
      %v1030 = vunpack.c.l.b16 %v954
      %v1031 = vunpack.c.l.b16 %v955
      %v1032 = vunpack.c.l.b16 %v956
      %v1033 = vunpack.c.l.b16 %v957
      %v1034 = vunpack.c.l.b16 %v958
      %v1035 = vunpack.c.l.b16 %v959
      %v1036 = vunpack.c.l.b16 %v960
      %v1037 = vunpack.c.l.b16 %v961
      %v1038 = vunpack.c.l.b16 %v962
      %v1039 = vunpack.c.l.b16 %v963
      %v1040 = vunpack.c.l.b16 %v964
      %v1041 = vunpack.c.l.b16 %v965
      %v1042 = vunpack.c.l.b16 %v966
      %v1043 = vunpack.c.l.b16 %v967
      %v1044 = vunpack.c.l.b16 %v968
      %v1045 = vpack.c.b16 %v1030, %v1029
      %v1046 = vpack.c.b16 %v1032, %v1031
      %v1047 = vpack.c.b16 %v1034, %v1033
      %v1048 = vpack.c.b16 %v1036, %v1035
      %v1049 = vpack.c.b16 %v1038, %v1037
      %v1050 = vpack.c.b16 %v1040, %v1039
      %v1051 = vpack.c.b16 %v1042, %v1041
      %v1052 = vpack.c.b16 %v1044, %v1043
      %1061 = vmatprep.subr.bf16.mxu0 0
      %1062 = vmatpush1.bf16.msra.mxu0 %v1052
      %1063 = vmatprep.subr.bf16.mxu0 0
      %1064 = vmatpush1.bf16.msra.mxu0 %v1051
      %1065 = vmatprep.subr.bf16.mxu0 0
      %1066 = vmatpush1.bf16.msra.mxu0 %v1050
      %1067 = vmatprep.subr.bf16.mxu0 0
      %1068 = vmatpush1.bf16.msra.mxu0 %v1049
      %1069 = vmatprep.subr.bf16.mxu0 0
      %1070 = vmatpush1.bf16.msra.mxu0 %v1048
      %1071 = vmatprep.subr.bf16.mxu0 0
      %1072 = vmatpush1.bf16.msra.mxu0 %v1047
      %1073 = vmatprep.subr.bf16.mxu0 0
      %1074 = vmatpush1.bf16.msra.mxu0 %v1046
      %1075 = vmatprep.subr.bf16.mxu0 0
      %1076 = vmatpush1.bf16.msra.mxu0 %v1045
      %1077 = vmatprep.subr.bf16.mxu0 0
      %1078 = vmatpush2.bf16.msra.mxu0 0
      %1079 = vmatprep.subr.bf16.mxu0 0
      %1080 = vmatpush2.bf16.msra.mxu0 0
      %1081 = vmatprep.subr.bf16.mxu0 0
      %1082 = vmatpush2.bf16.msra.mxu0 0
      %1083 = vmatprep.subr.bf16.mxu0 0
      %1084 = vmatpush2.bf16.msra.mxu0 0
      %1085 = vmatprep.subr.bf16.mxu0 0
      %1086 = vmatpush2.bf16.msra.mxu0 0
      %1087 = vmatprep.subr.bf16.mxu0 0
      %1088 = vmatpush2.bf16.msra.mxu0 0
      %1089 = vmatprep.subr.bf16.mxu0 0
      %1090 = vmatpush2.bf16.msra.mxu0 0
      %1091 = vmatprep.subr.bf16.mxu0 0
      %1092 = vmatpush2.bf16.msra.mxu0 0
      %1093 = vmatprep.mubr.bf16.mxu0 0
      %1094 = vmatmul.mubr.bf16.gmra.mxu0 %v999
      %v1095 = vpop.f32.mrf.mxu0
      %v1096 = vadd.f32 0.0, %v1095
      %v1097 = vpop.f32.mrf.mxu0
      %v1098 = vpop.f32.mrf.mxu0
      %v1099 = vadd.f32 0.0, %v1098
      %v1100 = vpop.f32.mrf.mxu0
      %1101 = vmatprep.mubr.bf16.mxu0 0
      %1102 = vmatmul.mubr.bf16.gmra.mxu0 %v1001
      %v1103 = vpop.f32.mrf.mxu0
      %v1104 = vadd.f32 0.0, %v1103
      %v1105 = vpop.f32.mrf.mxu0
      %v1106 = vpop.f32.mrf.mxu0
      %v1107 = vadd.f32 0.0, %v1106
      %v1108 = vpop.f32.mrf.mxu0
      %1109 = vmatprep.mubr.bf16.mxu0 0
      %1110 = vmatmul.mubr.bf16.gmra.mxu0 %v1003
      %v1111 = vpop.f32.mrf.mxu0
      %v1112 = vadd.f32 0.0, %v1111
      %v1113 = vpop.f32.mrf.mxu0
      %v1114 = vpop.f32.mrf.mxu0
      %v1115 = vadd.f32 0.0, %v1114
      %v1116 = vpop.f32.mrf.mxu0
      %1117 = vmatprep.mubr.bf16.mxu0 0
      %1118 = vmatmul.mubr.bf16.gmra.mxu0 %v1005
      %v1119 = vpop.f32.mrf.mxu0
      %v1120 = vadd.f32 0.0, %v1119
      %v1121 = vpop.f32.mrf.mxu0
      %v1122 = vpop.f32.mrf.mxu0
      %v1123 = vadd.f32 0.0, %v1122
      %v1124 = vpop.f32.mrf.mxu0
      %1125 = vmatprep.mubr.bf16.mxu0 0
      %1126 = vmatmul.mubr.bf16.gmra.mxu0 %v1007
      %v1127 = vpop.f32.mrf.mxu0
      %v1128 = vadd.f32 0.0, %v1127
      %v1129 = vpop.f32.mrf.mxu0
      %v1130 = vpop.f32.mrf.mxu0
      %v1131 = vadd.f32 0.0, %v1130
      %v1132 = vpop.f32.mrf.mxu0
      %1133 = vdwg.mxu0
      %v1134 = vld [vmem:[#allocation2] sm:$0xff]
      %v1135 = vld [vmem:[#allocation2 + $0x8] sm:$0xff]
      %v1136 = vld [vmem:[#allocation2 + $0x10] sm:$0xff]
      %v1137 = vld [vmem:[#allocation2 + $0x18] sm:$0xff]
      %v1138 = vld [vmem:[#allocation2 + $0x20] sm:$0xff]
      %v1139 = vld [vmem:[#allocation2 + $0x28] sm:$0xff]
      %v1140 = vld [vmem:[#allocation2 + $0x30] sm:$0xff]
      %v1141 = vld [vmem:[#allocation2 + $0x38] sm:$0xff]
      %v1142 = vld [vmem:[#allocation2 + $0x40] sm:$0xff]
      %v1143 = vld [vmem:[#allocation2 + $0x48] sm:$0xff]
      %v1144 = vadd.f32 %v1134, %v1096
      %v1145 = vadd.f32 %v1135, %v1099
      %v1146 = vadd.f32 %v1136, %v1104
      %v1147 = vadd.f32 %v1137, %v1107
      %v1148 = vadd.f32 %v1138, %v1112
      %v1149 = vadd.f32 %v1139, %v1115
      %v1150 = vadd.f32 %v1140, %v1120
      %v1151 = vadd.f32 %v1141, %v1123
      %v1152 = vadd.f32 %v1142, %v1128
      %v1153 = vadd.f32 %v1143, %v1131
      %1154 = vst [vmem:[#allocation2] sm:$0xff] %v1144
      %1155 = vst [vmem:[#allocation2 + $0x8] sm:$0xff] %v1145
      %1156 = vst [vmem:[#allocation2 + $0x10] sm:$0xff] %v1146
      %1157 = vst [vmem:[#allocation2 + $0x18] sm:$0xff] %v1147
      %1158 = vst [vmem:[#allocation2 + $0x20] sm:$0xff] %v1148
      %1159 = vst [vmem:[#allocation2 + $0x28] sm:$0xff] %v1149
      %1160 = vst [vmem:[#allocation2 + $0x30] sm:$0xff] %v1150
      %1161 = vst [vmem:[#allocation2 + $0x38] sm:$0xff] %v1151
      %1162 = vst [vmem:[#allocation2 + $0x40] sm:$0xff] %v1152
      %1163 = vst [vmem:[#allocation2 + $0x48] sm:$0xff] %v1153
      %v1164 = vld [vmem:[%s250 + $0x4] sm:$0xe]
      %v1165 = vld [vmem:[%s250 + $0x8] sm:$0xf]
      %v1166 = vld [vmem:[%s250 + $0xc] sm:$0xf]
      %v1167 = vld [vmem:[%s250 + $0x10] sm:$0xf]
      %v1168 = vld [vmem:[%s250 + $0x14] sm:$0xf]
      %v1169 = vld [vmem:[%s250 + $0x18] sm:$0xf]
      %v1170 = vld [vmem:[%s250 + $0x1c] sm:$0xf]
      %v1171 = vld [vmem:[%s250 + $0x20] sm:$0xf]
      %v1172 = vld [vmem:[%s250 + $0x24] sm:$0xf]
      %v1173 = vld [vmem:[%s250 + $0x28] sm:$0xf]
      %v1174 = vld [vmem:[%s250 + $0x2c] sm:$0x3]
      %s1175 = scalar_lea.vmem %s254, 256
      %v1176 = vld [vmem:[%s1175] sm:$0xf]
      %v1177 = vld [vmem:[%s1175 + $0x4] sm:$0xf]
      %v1178 = vld [vmem:[%s1175 + $0x8] sm:$0xf]
      %v1179 = vld [vmem:[%s1175 + $0xc] sm:$0xf]
      %v1180 = vld [vmem:[%s1175 + $0x10] sm:$0xf]
      %v1181 = vld [vmem:[%s1175 + $0x14] sm:$0xf]
      %v1182 = vld [vmem:[%s1175 + $0x18] sm:$0xf]
      %v1183 = vld [vmem:[%s1175 + $0x1c] sm:$0xf]
      %v1184 = vld [vmem:[%s1175 + $0x20] sm:$0xf]
      %v1185 = vld [vmem:[%s1175 + $0x24] sm:$0xf]
      %v1186 = vld [vmem:[%s1175 + $0x28] sm:$0xf]
      %v1187 = vld [vmem:[%s1175 + $0x2c] sm:$0xf]
      %v1188 = vld [vmem:[%s1175 + $0x30] sm:$0xf]
      %v1189 = vld [vmem:[%s1175 + $0x34] sm:$0xf]
      %v1190 = vld [vmem:[%s1175 + $0x38] sm:$0xf]
      %v1191 = vld [vmem:[%s1175 + $0x3c] sm:$0xf]
      %v1203 = vunpack.c.l.b16 %v1164
      %v1204 = vunpack.c.l.b16 %v1165
      %v1205 = vunpack.c.l.b16 %v1166
      %v1206 = vunpack.c.l.b16 %v1167
      %v1207 = vunpack.c.l.b16 %v1168
      %v1208 = vunpack.c.l.b16 %v1169
      %v1209 = vunpack.c.l.b16 %v1170
      %v1210 = vunpack.c.l.b16 %v1171
      %v1211 = vunpack.c.l.b16 %v1172
      %v1212 = vunpack.c.l.b16 %v1173
      %v1213 = vunpack.c.l.b16 %v1174
      %v1214 = vpack.c.b16 %v1204, %v1203
      %v1215 = vpack.c.b16 %v1206, %v1205
      %v1216 = vpack.c.b16 %v1208, %v1207
      %v1217 = vpack.c.b16 %v1210, %v1209
      %v1218 = vpack.c.b16 %v1212, %v1211
      %v1219 = vpack.c.b16 %v1213, %v1213
      %vm1220 = vsmask.f32 6400
      %v1222 = vshrl.u32 %v1214, 16
      %v1224 = vrot.slane %v1222, 1
      %v1225 = vshll.u32 %v1214, 16
      %v1227 = vrot.slane %v1225, 2
      %v1228 = vor.u32 %v1224, %v1227
      %v1230 = vshrl.u32 %v1215, 16
      %v1232 = vrot.slane %v1230, 1
      %v1233 = vshll.u32 %v1215, 16
      %v1235 = vrot.slane %v1233, 2
      %v1236 = vor.u32 %v1232, %v1235
      %v1237 = vsel %vm1220, %v1228, %v1236
      %v1239 = vshrl.u32 %v1216, 16
      %v1241 = vrot.slane %v1239, 1
      %v1242 = vshll.u32 %v1216, 16
      %v1244 = vrot.slane %v1242, 2
      %v1245 = vor.u32 %v1241, %v1244
      %v1246 = vsel %vm1220, %v1236, %v1245
      %v1248 = vshrl.u32 %v1217, 16
      %v1250 = vrot.slane %v1248, 1
      %v1251 = vshll.u32 %v1217, 16
      %v1253 = vrot.slane %v1251, 2
      %v1254 = vor.u32 %v1250, %v1253
      %v1255 = vsel %vm1220, %v1245, %v1254
      %v1257 = vshrl.u32 %v1218, 16
      %v1259 = vrot.slane %v1257, 1
      %v1260 = vshll.u32 %v1218, 16
      %v1262 = vrot.slane %v1260, 2
      %v1263 = vor.u32 %v1259, %v1262
      %v1264 = vsel %vm1220, %v1254, %v1263
      %v1266 = vshrl.u32 %v1219, 16
      %v1268 = vrot.slane %v1266, 1
      %v1269 = vshll.u32 %v1219, 16
      %v1271 = vrot.slane %v1269, 2
      %v1272 = vor.u32 %v1268, %v1271
      %v1273 = vsel %vm1220, %v1263, %v1272
      %v1295 = vunpack.c.l.b16 %v1176
      %v1296 = vunpack.c.l.b16 %v1177
      %v1297 = vunpack.c.l.b16 %v1178
      %v1298 = vunpack.c.l.b16 %v1179
      %v1299 = vunpack.c.l.b16 %v1180
      %v1300 = vunpack.c.l.b16 %v1181
      %v1301 = vunpack.c.l.b16 %v1182
      %v1302 = vunpack.c.l.b16 %v1183
      %v1303 = vunpack.c.l.b16 %v1184
      %v1304 = vunpack.c.l.b16 %v1185
      %v1305 = vunpack.c.l.b16 %v1186
      %v1306 = vunpack.c.l.b16 %v1187
      %v1307 = vunpack.c.l.b16 %v1188
      %v1308 = vunpack.c.l.b16 %v1189
      %v1309 = vunpack.c.l.b16 %v1190
      %v1310 = vunpack.c.l.b16 %v1191
      %v1311 = vpack.c.b16 %v1296, %v1295
      %v1312 = vpack.c.b16 %v1298, %v1297
      %v1313 = vpack.c.b16 %v1300, %v1299
      %v1314 = vpack.c.b16 %v1302, %v1301
      %v1315 = vpack.c.b16 %v1304, %v1303
      %v1316 = vpack.c.b16 %v1306, %v1305
      %v1317 = vpack.c.b16 %v1308, %v1307
      %v1318 = vpack.c.b16 %v1310, %v1309
      %1327 = vmatprep.subr.bf16.mxu0 0
      %1328 = vmatpush1.bf16.msra.mxu0 %v1318
      %1329 = vmatprep.subr.bf16.mxu0 0
      %1330 = vmatpush1.bf16.msra.mxu0 %v1317
      %1331 = vmatprep.subr.bf16.mxu0 0
      %1332 = vmatpush1.bf16.msra.mxu0 %v1316
      %1333 = vmatprep.subr.bf16.mxu0 0
      %1334 = vmatpush1.bf16.msra.mxu0 %v1315
      %1335 = vmatprep.subr.bf16.mxu0 0
      %1336 = vmatpush1.bf16.msra.mxu0 %v1314
      %1337 = vmatprep.subr.bf16.mxu0 0
      %1338 = vmatpush1.bf16.msra.mxu0 %v1313
      %1339 = vmatprep.subr.bf16.mxu0 0
      %1340 = vmatpush1.bf16.msra.mxu0 %v1312
      %1341 = vmatprep.subr.bf16.mxu0 0
      %1342 = vmatpush1.bf16.msra.mxu0 %v1311
      %1343 = vmatprep.subr.bf16.mxu0 0
      %1344 = vmatpush2.bf16.msra.mxu0 0
      %1345 = vmatprep.subr.bf16.mxu0 0
      %1346 = vmatpush2.bf16.msra.mxu0 0
      %1347 = vmatprep.subr.bf16.mxu0 0
      %1348 = vmatpush2.bf16.msra.mxu0 0
      %1349 = vmatprep.subr.bf16.mxu0 0
      %1350 = vmatpush2.bf16.msra.mxu0 0
      %1351 = vmatprep.subr.bf16.mxu0 0
      %1352 = vmatpush2.bf16.msra.mxu0 0
      %1353 = vmatprep.subr.bf16.mxu0 0
      %1354 = vmatpush2.bf16.msra.mxu0 0
      %1355 = vmatprep.subr.bf16.mxu0 0
      %1356 = vmatpush2.bf16.msra.mxu0 0
      %1357 = vmatprep.subr.bf16.mxu0 0
      %1358 = vmatpush2.bf16.msra.mxu0 0
      %1359 = vmatprep.mubr.bf16.mxu0 0
      %1360 = vmatmul.mubr.bf16.gmra.mxu0 %v1237
      %v1361 = vpop.f32.mrf.mxu0
      %v1362 = vadd.f32 0.0, %v1361
      %v1363 = vpop.f32.mrf.mxu0
      %v1364 = vpop.f32.mrf.mxu0
      %v1365 = vadd.f32 0.0, %v1364
      %v1366 = vpop.f32.mrf.mxu0
      %1367 = vmatprep.mubr.bf16.mxu0 0
      %1368 = vmatmul.mubr.bf16.gmra.mxu0 %v1246
      %v1369 = vpop.f32.mrf.mxu0
      %v1370 = vadd.f32 0.0, %v1369
      %v1371 = vpop.f32.mrf.mxu0
      %v1372 = vpop.f32.mrf.mxu0
      %v1373 = vadd.f32 0.0, %v1372
      %v1374 = vpop.f32.mrf.mxu0
      %1375 = vmatprep.mubr.bf16.mxu0 0
      %1376 = vmatmul.mubr.bf16.gmra.mxu0 %v1255
      %v1377 = vpop.f32.mrf.mxu0
      %v1378 = vadd.f32 0.0, %v1377
      %v1379 = vpop.f32.mrf.mxu0
      %v1380 = vpop.f32.mrf.mxu0
      %v1381 = vadd.f32 0.0, %v1380
      %v1382 = vpop.f32.mrf.mxu0
      %1383 = vmatprep.mubr.bf16.mxu0 0
      %1384 = vmatmul.mubr.bf16.gmra.mxu0 %v1264
      %v1385 = vpop.f32.mrf.mxu0
      %v1386 = vadd.f32 0.0, %v1385
      %v1387 = vpop.f32.mrf.mxu0
      %v1388 = vpop.f32.mrf.mxu0
      %v1389 = vadd.f32 0.0, %v1388
      %v1390 = vpop.f32.mrf.mxu0
      %1391 = vmatprep.mubr.bf16.mxu0 0
      %1392 = vmatmul.mubr.bf16.gmra.mxu0 %v1273
      %v1393 = vpop.f32.mrf.mxu0
      %v1394 = vadd.f32 0.0, %v1393
      %v1395 = vpop.f32.mrf.mxu0
      %v1396 = vpop.f32.mrf.mxu0
      %v1397 = vadd.f32 0.0, %v1396
      %v1398 = vpop.f32.mrf.mxu0
      %1399 = vdwg.mxu0
      %v1400 = vld [vmem:[#allocation2] sm:$0xff]
      %v1401 = vld [vmem:[#allocation2 + $0x8] sm:$0xff]
      %v1402 = vld [vmem:[#allocation2 + $0x10] sm:$0xff]
      %v1403 = vld [vmem:[#allocation2 + $0x18] sm:$0xff]
      %v1404 = vld [vmem:[#allocation2 + $0x20] sm:$0xff]
      %v1405 = vld [vmem:[#allocation2 + $0x28] sm:$0xff]
      %v1406 = vld [vmem:[#allocation2 + $0x30] sm:$0xff]
      %v1407 = vld [vmem:[#allocation2 + $0x38] sm:$0xff]
      %v1408 = vld [vmem:[#allocation2 + $0x40] sm:$0xff]
      %v1409 = vld [vmem:[#allocation2 + $0x48] sm:$0xff]
      %v1410 = vadd.f32 %v1400, %v1362
      %v1411 = vadd.f32 %v1401, %v1365
      %v1412 = vadd.f32 %v1402, %v1370
      %v1413 = vadd.f32 %v1403, %v1373
      %v1414 = vadd.f32 %v1404, %v1378
      %v1415 = vadd.f32 %v1405, %v1381
      %v1416 = vadd.f32 %v1406, %v1386
      %v1417 = vadd.f32 %v1407, %v1389
      %v1418 = vadd.f32 %v1408, %v1394
      %v1419 = vadd.f32 %v1409, %v1397
      %1420 = vst [vmem:[#allocation2] sm:$0xff] %v1410
      %1421 = vst [vmem:[#allocation2 + $0x8] sm:$0xff] %v1411
      %1422 = vst [vmem:[#allocation2 + $0x10] sm:$0xff] %v1412
      %1423 = vst [vmem:[#allocation2 + $0x18] sm:$0xff] %v1413
      %1424 = vst [vmem:[#allocation2 + $0x20] sm:$0xff] %v1414
      %1425 = vst [vmem:[#allocation2 + $0x28] sm:$0xff] %v1415
      %1426 = vst [vmem:[#allocation2 + $0x30] sm:$0xff] %v1416
      %1427 = vst [vmem:[#allocation2 + $0x38] sm:$0xff] %v1417
      %1428 = vst [vmem:[#allocation2 + $0x40] sm:$0xff] %v1418
      %1429 = vst [vmem:[#allocation2 + $0x48] sm:$0xff] %v1419
      %v1430 = vld [vmem:[%s250 + $0x4] sm:$0xc]
      %v1431 = vld [vmem:[%s250 + $0x8] sm:$0xf]
      %v1432 = vld [vmem:[%s250 + $0xc] sm:$0xf]
      %v1433 = vld [vmem:[%s250 + $0x10] sm:$0xf]
      %v1434 = vld [vmem:[%s250 + $0x14] sm:$0xf]
      %v1435 = vld [vmem:[%s250 + $0x18] sm:$0xf]
      %v1436 = vld [vmem:[%s250 + $0x1c] sm:$0xf]
      %v1437 = vld [vmem:[%s250 + $0x20] sm:$0xf]
      %v1438 = vld [vmem:[%s250 + $0x24] sm:$0xf]
      %v1439 = vld [vmem:[%s250 + $0x28] sm:$0xf]
      %v1440 = vld [vmem:[%s250 + $0x2c] sm:$0x3]
      %s1441 = scalar_lea.vmem %s254, 320
      %v1442 = vld [vmem:[%s1441] sm:$0xf]
      %v1443 = vld [vmem:[%s1441 + $0x4] sm:$0xf]
      %v1444 = vld [vmem:[%s1441 + $0x8] sm:$0xf]
      %v1445 = vld [vmem:[%s1441 + $0xc] sm:$0xf]
      %v1446 = vld [vmem:[%s1441 + $0x10] sm:$0xf]
      %v1447 = vld [vmem:[%s1441 + $0x14] sm:$0xf]
      %v1448 = vld [vmem:[%s1441 + $0x18] sm:$0xf]
      %v1449 = vld [vmem:[%s1441 + $0x1c] sm:$0xf]
      %v1450 = vld [vmem:[%s1441 + $0x20] sm:$0xf]
      %v1451 = vld [vmem:[%s1441 + $0x24] sm:$0xf]
      %v1452 = vld [vmem:[%s1441 + $0x28] sm:$0xf]
      %v1453 = vld [vmem:[%s1441 + $0x2c] sm:$0xf]
      %v1454 = vld [vmem:[%s1441 + $0x30] sm:$0xf]
      %v1455 = vld [vmem:[%s1441 + $0x34] sm:$0xf]
      %v1456 = vld [vmem:[%s1441 + $0x38] sm:$0xf]
      %v1457 = vld [vmem:[%s1441 + $0x3c] sm:$0xf]
      %v1469 = vunpack.c.l.b16 %v1430
      %v1470 = vunpack.c.l.b16 %v1431
      %v1471 = vunpack.c.l.b16 %v1432
      %v1472 = vunpack.c.l.b16 %v1433
      %v1473 = vunpack.c.l.b16 %v1434
      %v1474 = vunpack.c.l.b16 %v1435
      %v1475 = vunpack.c.l.b16 %v1436
      %v1476 = vunpack.c.l.b16 %v1437
      %v1477 = vunpack.c.l.b16 %v1438
      %v1478 = vunpack.c.l.b16 %v1439
      %v1479 = vunpack.c.l.b16 %v1440
      %v1480 = vpack.c.b16 %v1470, %v1469
      %v1481 = vpack.c.b16 %v1472, %v1471
      %v1482 = vpack.c.b16 %v1474, %v1473
      %v1483 = vpack.c.b16 %v1476, %v1475
      %v1484 = vpack.c.b16 %v1478, %v1477
      %v1485 = vpack.c.b16 %v1479, %v1479
      %vm1486 = vcmask 1045504
      %v1487 = vrot.slane %v1480, 2
      %v1488 = vrot.slane %v1481, 2
      %v1489 = vsel %vm1486, %v1487, %v1488
      %v1490 = vrot.slane %v1482, 2
      %v1491 = vsel %vm1486, %v1488, %v1490
      %v1492 = vrot.slane %v1483, 2
      %v1493 = vsel %vm1486, %v1490, %v1492
      %v1494 = vrot.slane %v1484, 2
      %v1495 = vsel %vm1486, %v1492, %v1494
      %v1496 = vrot.slane %v1485, 2
      %v1497 = vsel %vm1486, %v1494, %v1496
      %v1519 = vunpack.c.l.b16 %v1442
      %v1520 = vunpack.c.l.b16 %v1443
      %v1521 = vunpack.c.l.b16 %v1444
      %v1522 = vunpack.c.l.b16 %v1445
      %v1523 = vunpack.c.l.b16 %v1446
      %v1524 = vunpack.c.l.b16 %v1447
      %v1525 = vunpack.c.l.b16 %v1448
      %v1526 = vunpack.c.l.b16 %v1449
      %v1527 = vunpack.c.l.b16 %v1450
      %v1528 = vunpack.c.l.b16 %v1451
      %v1529 = vunpack.c.l.b16 %v1452
      %v1530 = vunpack.c.l.b16 %v1453
      %v1531 = vunpack.c.l.b16 %v1454
      %v1532 = vunpack.c.l.b16 %v1455
      %v1533 = vunpack.c.l.b16 %v1456
      %v1534 = vunpack.c.l.b16 %v1457
      %v1535 = vpack.c.b16 %v1520, %v1519
      %v1536 = vpack.c.b16 %v1522, %v1521
      %v1537 = vpack.c.b16 %v1524, %v1523
      %v1538 = vpack.c.b16 %v1526, %v1525
      %v1539 = vpack.c.b16 %v1528, %v1527
      %v1540 = vpack.c.b16 %v1530, %v1529
      %v1541 = vpack.c.b16 %v1532, %v1531
      %v1542 = vpack.c.b16 %v1534, %v1533
      %1551 = vmatprep.subr.bf16.mxu0 0
      %1552 = vmatpush1.bf16.msra.mxu0 %v1542
      %1553 = vmatprep.subr.bf16.mxu0 0
      %1554 = vmatpush1.bf16.msra.mxu0 %v1541
      %1555 = vmatprep.subr.bf16.mxu0 0
      %1556 = vmatpush1.bf16.msra.mxu0 %v1540
      %1557 = vmatprep.subr.bf16.mxu0 0
      %1558 = vmatpush1.bf16.msra.mxu0 %v1539
      %1559 = vmatprep.subr.bf16.mxu0 0
      %1560 = vmatpush1.bf16.msra.mxu0 %v1538
      %1561 = vmatprep.subr.bf16.mxu0 0
      %1562 = vmatpush1.bf16.msra.mxu0 %v1537
      %1563 = vmatprep.subr.bf16.mxu0 0
      %1564 = vmatpush1.bf16.msra.mxu0 %v1536
      %1565 = vmatprep.subr.bf16.mxu0 0
      %1566 = vmatpush1.bf16.msra.mxu0 %v1535
      %1567 = vmatprep.subr.bf16.mxu0 0
      %1568 = vmatpush2.bf16.msra.mxu0 0
      %1569 = vmatprep.subr.bf16.mxu0 0
      %1570 = vmatpush2.bf16.msra.mxu0 0
      %1571 = vmatprep.subr.bf16.mxu0 0
      %1572 = vmatpush2.bf16.msra.mxu0 0
      %1573 = vmatprep.subr.bf16.mxu0 0
      %1574 = vmatpush2.bf16.msra.mxu0 0
      %1575 = vmatprep.subr.bf16.mxu0 0
      %1576 = vmatpush2.bf16.msra.mxu0 0
      %1577 = vmatprep.subr.bf16.mxu0 0
      %1578 = vmatpush2.bf16.msra.mxu0 0
      %1579 = vmatprep.subr.bf16.mxu0 0
      %1580 = vmatpush2.bf16.msra.mxu0 0
      %1581 = vmatprep.subr.bf16.mxu0 0
      %1582 = vmatpush2.bf16.msra.mxu0 0
      %1583 = vmatprep.mubr.bf16.mxu0 0
      %1584 = vmatmul.mubr.bf16.gmra.mxu0 %v1489
      %v1585 = vpop.f32.mrf.mxu0
      %v1586 = vadd.f32 0.0, %v1585
      %v1587 = vpop.f32.mrf.mxu0
      %v1588 = vpop.f32.mrf.mxu0
      %v1589 = vadd.f32 0.0, %v1588
      %v1590 = vpop.f32.mrf.mxu0
      %1591 = vmatprep.mubr.bf16.mxu0 0
      %1592 = vmatmul.mubr.bf16.gmra.mxu0 %v1491
      %v1593 = vpop.f32.mrf.mxu0
      %v1594 = vadd.f32 0.0, %v1593
      %v1595 = vpop.f32.mrf.mxu0
      %v1596 = vpop.f32.mrf.mxu0
      %v1597 = vadd.f32 0.0, %v1596
      %v1598 = vpop.f32.mrf.mxu0
      %1599 = vmatprep.mubr.bf16.mxu0 0
      %1600 = vmatmul.mubr.bf16.gmra.mxu0 %v1493
      %v1601 = vpop.f32.mrf.mxu0
      %v1602 = vadd.f32 0.0, %v1601
      %v1603 = vpop.f32.mrf.mxu0
      %v1604 = vpop.f32.mrf.mxu0
      %v1605 = vadd.f32 0.0, %v1604
      %v1606 = vpop.f32.mrf.mxu0
      %1607 = vmatprep.mubr.bf16.mxu0 0
      %1608 = vmatmul.mubr.bf16.gmra.mxu0 %v1495
      %v1609 = vpop.f32.mrf.mxu0
      %v1610 = vadd.f32 0.0, %v1609
      %v1611 = vpop.f32.mrf.mxu0
      %v1612 = vpop.f32.mrf.mxu0
      %v1613 = vadd.f32 0.0, %v1612
      %v1614 = vpop.f32.mrf.mxu0
      %1615 = vmatprep.mubr.bf16.mxu0 0
      %1616 = vmatmul.mubr.bf16.gmra.mxu0 %v1497
      %v1617 = vpop.f32.mrf.mxu0
      %v1618 = vadd.f32 0.0, %v1617
      %v1619 = vpop.f32.mrf.mxu0
      %v1620 = vpop.f32.mrf.mxu0
      %v1621 = vadd.f32 0.0, %v1620
      %v1622 = vpop.f32.mrf.mxu0
      %1623 = vdwg.mxu0
      %v1624 = vld [vmem:[#allocation2] sm:$0xff]
      %v1625 = vld [vmem:[#allocation2 + $0x8] sm:$0xff]
      %v1626 = vld [vmem:[#allocation2 + $0x10] sm:$0xff]
      %v1627 = vld [vmem:[#allocation2 + $0x18] sm:$0xff]
      %v1628 = vld [vmem:[#allocation2 + $0x20] sm:$0xff]
      %v1629 = vld [vmem:[#allocation2 + $0x28] sm:$0xff]
      %v1630 = vld [vmem:[#allocation2 + $0x30] sm:$0xff]
      %v1631 = vld [vmem:[#allocation2 + $0x38] sm:$0xff]
      %v1632 = vld [vmem:[#allocation2 + $0x40] sm:$0xff]
      %v1633 = vld [vmem:[#allocation2 + $0x48] sm:$0xff]
      %v1634 = vadd.f32 %v1624, %v1586
      %v1635 = vadd.f32 %v1625, %v1589
      %v1636 = vadd.f32 %v1626, %v1594
      %v1637 = vadd.f32 %v1627, %v1597
      %v1638 = vadd.f32 %v1628, %v1602
      %v1639 = vadd.f32 %v1629, %v1605
      %v1640 = vadd.f32 %v1630, %v1610
      %v1641 = vadd.f32 %v1631, %v1613
      %v1642 = vadd.f32 %v1632, %v1618
      %v1643 = vadd.f32 %v1633, %v1621
      %1644 = vst [vmem:[#allocation2] sm:$0xff] %v1634
      %1645 = vst [vmem:[#allocation2 + $0x8] sm:$0xff] %v1635
      %1646 = vst [vmem:[#allocation2 + $0x10] sm:$0xff] %v1636
      %1647 = vst [vmem:[#allocation2 + $0x18] sm:$0xff] %v1637
      %1648 = vst [vmem:[#allocation2 + $0x20] sm:$0xff] %v1638
      %1649 = vst [vmem:[#allocation2 + $0x28] sm:$0xff] %v1639
      %1650 = vst [vmem:[#allocation2 + $0x30] sm:$0xff] %v1640
      %1651 = vst [vmem:[#allocation2 + $0x38] sm:$0xff] %v1641
      %1652 = vst [vmem:[#allocation2 + $0x40] sm:$0xff] %v1642
      %1653 = vst [vmem:[#allocation2 + $0x48] sm:$0xff] %v1643
      %v1654 = vld [vmem:[%s250 + $0x8] sm:$0xc]
      %v1655 = vld [vmem:[%s250 + $0xc] sm:$0xf]
      %v1656 = vld [vmem:[%s250 + $0x10] sm:$0xf]
      %v1657 = vld [vmem:[%s250 + $0x14] sm:$0xf]
      %v1658 = vld [vmem:[%s250 + $0x18] sm:$0xf]
      %v1659 = vld [vmem:[%s250 + $0x1c] sm:$0xf]
      %v1660 = vld [vmem:[%s250 + $0x20] sm:$0xf]
      %v1661 = vld [vmem:[%s250 + $0x24] sm:$0xf]
      %v1662 = vld [vmem:[%s250 + $0x28] sm:$0xf]
      %v1663 = vld [vmem:[%s250 + $0x2c] sm:$0xf]
      %v1664 = vld [vmem:[%s250 + $0x30] sm:$0x3]
      %s1665 = scalar_lea.vmem %s254, 384
      %v1666 = vld [vmem:[%s1665] sm:$0xf]
      %v1667 = vld [vmem:[%s1665 + $0x4] sm:$0xf]
      %v1668 = vld [vmem:[%s1665 + $0x8] sm:$0xf]
      %v1669 = vld [vmem:[%s1665 + $0xc] sm:$0xf]
      %v1670 = vld [vmem:[%s1665 + $0x10] sm:$0xf]
      %v1671 = vld [vmem:[%s1665 + $0x14] sm:$0xf]
      %v1672 = vld [vmem:[%s1665 + $0x18] sm:$0xf]
      %v1673 = vld [vmem:[%s1665 + $0x1c] sm:$0xf]
      %v1674 = vld [vmem:[%s1665 + $0x20] sm:$0xf]
      %v1675 = vld [vmem:[%s1665 + $0x24] sm:$0xf]
      %v1676 = vld [vmem:[%s1665 + $0x28] sm:$0xf]
      %v1677 = vld [vmem:[%s1665 + $0x2c] sm:$0xf]
      %v1678 = vld [vmem:[%s1665 + $0x30] sm:$0xf]
      %v1679 = vld [vmem:[%s1665 + $0x34] sm:$0xf]
      %v1680 = vld [vmem:[%s1665 + $0x38] sm:$0xf]
      %v1681 = vld [vmem:[%s1665 + $0x3c] sm:$0xf]
      %v1693 = vunpack.c.l.b16 %v1654
      %v1694 = vunpack.c.l.b16 %v1655
      %v1695 = vunpack.c.l.b16 %v1656
      %v1696 = vunpack.c.l.b16 %v1657
      %v1697 = vunpack.c.l.b16 %v1658
      %v1698 = vunpack.c.l.b16 %v1659
      %v1699 = vunpack.c.l.b16 %v1660
      %v1700 = vunpack.c.l.b16 %v1661
      %v1701 = vunpack.c.l.b16 %v1662
      %v1702 = vunpack.c.l.b16 %v1663
      %v1703 = vunpack.c.l.b16 %v1664
      %v1704 = vpack.c.b16 %v1694, %v1693
      %v1705 = vpack.c.b16 %v1696, %v1695
      %v1706 = vpack.c.b16 %v1698, %v1697
      %v1707 = vpack.c.b16 %v1700, %v1699
      %v1708 = vpack.c.b16 %v1702, %v1701
      %v1709 = vpack.c.b16 %v1703, %v1703
      %v1710 = vrot.slane %v1704, 2
      %v1711 = vrot.slane %v1705, 2
      %v1712 = vsel %vm1486, %v1710, %v1711
      %v1713 = vrot.slane %v1706, 2
      %v1714 = vsel %vm1486, %v1711, %v1713
      %v1715 = vrot.slane %v1707, 2
      %v1716 = vsel %vm1486, %v1713, %v1715
      %v1717 = vrot.slane %v1708, 2
      %v1718 = vsel %vm1486, %v1715, %v1717
      %v1719 = vrot.slane %v1709, 2
      %v1720 = vsel %vm1486, %v1717, %v1719
      %v1742 = vunpack.c.l.b16 %v1666
      %v1743 = vunpack.c.l.b16 %v1667
      %v1744 = vunpack.c.l.b16 %v1668
      %v1745 = vunpack.c.l.b16 %v1669
      %v1746 = vunpack.c.l.b16 %v1670
      %v1747 = vunpack.c.l.b16 %v1671
      %v1748 = vunpack.c.l.b16 %v1672
      %v1749 = vunpack.c.l.b16 %v1673
      %v1750 = vunpack.c.l.b16 %v1674
      %v1751 = vunpack.c.l.b16 %v1675
      %v1752 = vunpack.c.l.b16 %v1676
      %v1753 = vunpack.c.l.b16 %v1677
      %v1754 = vunpack.c.l.b16 %v1678
      %v1755 = vunpack.c.l.b16 %v1679
      %v1756 = vunpack.c.l.b16 %v1680
      %v1757 = vunpack.c.l.b16 %v1681
      %v1758 = vpack.c.b16 %v1743, %v1742
      %v1759 = vpack.c.b16 %v1745, %v1744
      %v1760 = vpack.c.b16 %v1747, %v1746
      %v1761 = vpack.c.b16 %v1749, %v1748
      %v1762 = vpack.c.b16 %v1751, %v1750
      %v1763 = vpack.c.b16 %v1753, %v1752
      %v1764 = vpack.c.b16 %v1755, %v1754
      %v1765 = vpack.c.b16 %v1757, %v1756
      %1774 = vmatprep.subr.bf16.mxu0 0
      %1775 = vmatpush1.bf16.msra.mxu0 %v1765
      %1776 = vmatprep.subr.bf16.mxu0 0
      %1777 = vmatpush1.bf16.msra.mxu0 %v1764
      %1778 = vmatprep.subr.bf16.mxu0 0
      %1779 = vmatpush1.bf16.msra.mxu0 %v1763
      %1780 = vmatprep.subr.bf16.mxu0 0
      %1781 = vmatpush1.bf16.msra.mxu0 %v1762
      %1782 = vmatprep.subr.bf16.mxu0 0
      %1783 = vmatpush1.bf16.msra.mxu0 %v1761
      %1784 = vmatprep.subr.bf16.mxu0 0
      %1785 = vmatpush1.bf16.msra.mxu0 %v1760
      %1786 = vmatprep.subr.bf16.mxu0 0
      %1787 = vmatpush1.bf16.msra.mxu0 %v1759
      %1788 = vmatprep.subr.bf16.mxu0 0
      %1789 = vmatpush1.bf16.msra.mxu0 %v1758
      %1790 = vmatprep.subr.bf16.mxu0 0
      %1791 = vmatpush2.bf16.msra.mxu0 0
      %1792 = vmatprep.subr.bf16.mxu0 0
      %1793 = vmatpush2.bf16.msra.mxu0 0
      %1794 = vmatprep.subr.bf16.mxu0 0
      %1795 = vmatpush2.bf16.msra.mxu0 0
      %1796 = vmatprep.subr.bf16.mxu0 0
      %1797 = vmatpush2.bf16.msra.mxu0 0
      %1798 = vmatprep.subr.bf16.mxu0 0
      %1799 = vmatpush2.bf16.msra.mxu0 0
      %1800 = vmatprep.subr.bf16.mxu0 0
      %1801 = vmatpush2.bf16.msra.mxu0 0
      %1802 = vmatprep.subr.bf16.mxu0 0
      %1803 = vmatpush2.bf16.msra.mxu0 0
      %1804 = vmatprep.subr.bf16.mxu0 0
      %1805 = vmatpush2.bf16.msra.mxu0 0
      %1806 = vmatprep.mubr.bf16.mxu0 0
      %1807 = vmatmul.mubr.bf16.gmra.mxu0 %v1712
      %v1808 = vpop.f32.mrf.mxu0
      %v1809 = vadd.f32 0.0, %v1808
      %v1810 = vpop.f32.mrf.mxu0
      %v1811 = vpop.f32.mrf.mxu0
      %v1812 = vadd.f32 0.0, %v1811
      %v1813 = vpop.f32.mrf.mxu0
      %1814 = vmatprep.mubr.bf16.mxu0 0
      %1815 = vmatmul.mubr.bf16.gmra.mxu0 %v1714
      %v1816 = vpop.f32.mrf.mxu0
      %v1817 = vadd.f32 0.0, %v1816
      %v1818 = vpop.f32.mrf.mxu0
      %v1819 = vpop.f32.mrf.mxu0
      %v1820 = vadd.f32 0.0, %v1819
      %v1821 = vpop.f32.mrf.mxu0
      %1822 = vmatprep.mubr.bf16.mxu0 0
      %1823 = vmatmul.mubr.bf16.gmra.mxu0 %v1716
      %v1824 = vpop.f32.mrf.mxu0
      %v1825 = vadd.f32 0.0, %v1824
      %v1826 = vpop.f32.mrf.mxu0
      %v1827 = vpop.f32.mrf.mxu0
      %v1828 = vadd.f32 0.0, %v1827
      %v1829 = vpop.f32.mrf.mxu0
      %1830 = vmatprep.mubr.bf16.mxu0 0
      %1831 = vmatmul.mubr.bf16.gmra.mxu0 %v1718
      %v1832 = vpop.f32.mrf.mxu0
      %v1833 = vadd.f32 0.0, %v1832
      %v1834 = vpop.f32.mrf.mxu0
      %v1835 = vpop.f32.mrf.mxu0
      %v1836 = vadd.f32 0.0, %v1835
      %v1837 = vpop.f32.mrf.mxu0
      %1838 = vmatprep.mubr.bf16.mxu0 0
      %1839 = vmatmul.mubr.bf16.gmra.mxu0 %v1720
      %v1840 = vpop.f32.mrf.mxu0
      %v1841 = vadd.f32 0.0, %v1840
      %v1842 = vpop.f32.mrf.mxu0
      %v1843 = vpop.f32.mrf.mxu0
      %v1844 = vadd.f32 0.0, %v1843
      %v1845 = vpop.f32.mrf.mxu0
      %1846 = vdwg.mxu0
      %v1847 = vld [vmem:[#allocation2] sm:$0xff]
      %v1848 = vld [vmem:[#allocation2 + $0x8] sm:$0xff]
      %v1849 = vld [vmem:[#allocation2 + $0x10] sm:$0xff]
      %v1850 = vld [vmem:[#allocation2 + $0x18] sm:$0xff]
      %v1851 = vld [vmem:[#allocation2 + $0x20] sm:$0xff]
      %v1852 = vld [vmem:[#allocation2 + $0x28] sm:$0xff]
      %v1853 = vld [vmem:[#allocation2 + $0x30] sm:$0xff]
      %v1854 = vld [vmem:[#allocation2 + $0x38] sm:$0xff]
      %v1855 = vld [vmem:[#allocation2 + $0x40] sm:$0xff]
      %v1856 = vld [vmem:[#allocation2 + $0x48] sm:$0xff]
      %v1857 = vadd.f32 %v1847, %v1809
      %v1858 = vadd.f32 %v1848, %v1812
      %v1859 = vadd.f32 %v1849, %v1817
      %v1860 = vadd.f32 %v1850, %v1820
      %v1861 = vadd.f32 %v1851, %v1825
      %v1862 = vadd.f32 %v1852, %v1828
      %v1863 = vadd.f32 %v1853, %v1833
      %v1864 = vadd.f32 %v1854, %v1836
      %v1865 = vadd.f32 %v1855, %v1841
      %v1866 = vadd.f32 %v1856, %v1844
      %1867 = vst [vmem:[#allocation2] sm:$0xff] %v1857
      %1868 = vst [vmem:[#allocation2 + $0x8] sm:$0xff] %v1858
      %1869 = vst [vmem:[#allocation2 + $0x10] sm:$0xff] %v1859
      %1870 = vst [vmem:[#allocation2 + $0x18] sm:$0xff] %v1860
      %1871 = vst [vmem:[#allocation2 + $0x20] sm:$0xff] %v1861
      %1872 = vst [vmem:[#allocation2 + $0x28] sm:$0xff] %v1862
      %1873 = vst [vmem:[#allocation2 + $0x30] sm:$0xff] %v1863
      %1874 = vst [vmem:[#allocation2 + $0x38] sm:$0xff] %v1864
      %1875 = vst [vmem:[#allocation2 + $0x40] sm:$0xff] %v1865
      %1876 = vst [vmem:[#allocation2 + $0x48] sm:$0xff] %v1866
      %v1877 = vld [vmem:[%s250 + $0x8] sm:$0xc]
      %v1878 = vld [vmem:[%s250 + $0xc] sm:$0xf]
      %v1879 = vld [vmem:[%s250 + $0x10] sm:$0xf]
      %v1880 = vld [vmem:[%s250 + $0x14] sm:$0xf]
      %v1881 = vld [vmem:[%s250 + $0x18] sm:$0xf]
      %v1882 = vld [vmem:[%s250 + $0x1c] sm:$0xf]
      %v1883 = vld [vmem:[%s250 + $0x20] sm:$0xf]
      %v1884 = vld [vmem:[%s250 + $0x24] sm:$0xf]
      %v1885 = vld [vmem:[%s250 + $0x28] sm:$0xf]
      %v1886 = vld [vmem:[%s250 + $0x2c] sm:$0xf]
      %v1887 = vld [vmem:[%s250 + $0x30] sm:$0x7]
      %s1888 = scalar_lea.vmem %s254, 448
      %v1889 = vld [vmem:[%s1888] sm:$0xf]
      %v1890 = vld [vmem:[%s1888 + $0x4] sm:$0xf]
      %v1891 = vld [vmem:[%s1888 + $0x8] sm:$0xf]
      %v1892 = vld [vmem:[%s1888 + $0xc] sm:$0xf]
      %v1893 = vld [vmem:[%s1888 + $0x10] sm:$0xf]
      %v1894 = vld [vmem:[%s1888 + $0x14] sm:$0xf]
      %v1895 = vld [vmem:[%s1888 + $0x18] sm:$0xf]
      %v1896 = vld [vmem:[%s1888 + $0x1c] sm:$0xf]
      %v1897 = vld [vmem:[%s1888 + $0x20] sm:$0xf]
      %v1898 = vld [vmem:[%s1888 + $0x24] sm:$0xf]
      %v1899 = vld [vmem:[%s1888 + $0x28] sm:$0xf]
      %v1900 = vld [vmem:[%s1888 + $0x2c] sm:$0xf]
      %v1901 = vld [vmem:[%s1888 + $0x30] sm:$0xf]
      %v1902 = vld [vmem:[%s1888 + $0x34] sm:$0xf]
      %v1903 = vld [vmem:[%s1888 + $0x38] sm:$0xf]
      %v1904 = vld [vmem:[%s1888 + $0x3c] sm:$0xf]
      %v1916 = vunpack.c.l.b16 %v1877
      %v1917 = vunpack.c.l.b16 %v1878
      %v1918 = vunpack.c.l.b16 %v1879
      %v1919 = vunpack.c.l.b16 %v1880
      %v1920 = vunpack.c.l.b16 %v1881
      %v1921 = vunpack.c.l.b16 %v1882
      %v1922 = vunpack.c.l.b16 %v1883
      %v1923 = vunpack.c.l.b16 %v1884
      %v1924 = vunpack.c.l.b16 %v1885
      %v1925 = vunpack.c.l.b16 %v1886
      %v1926 = vunpack.c.l.b16 %v1887
      %v1927 = vpack.c.b16 %v1917, %v1916
      %v1928 = vpack.c.b16 %v1919, %v1918
      %v1929 = vpack.c.b16 %v1921, %v1920
      %v1930 = vpack.c.b16 %v1923, %v1922
      %v1931 = vpack.c.b16 %v1925, %v1924
      %v1932 = vpack.c.b16 %v1926, %v1926
      %vm1933 = vsmask.f32 5376
      %v1935 = vshrl.u32 %v1927, 16
      %v1937 = vrot.slane %v1935, 2
      %v1938 = vshll.u32 %v1927, 16
      %v1940 = vrot.slane %v1938, 3
      %v1941 = vor.u32 %v1937, %v1940
      %v1943 = vshrl.u32 %v1928, 16
      %v1945 = vrot.slane %v1943, 2
      %v1946 = vshll.u32 %v1928, 16
      %v1948 = vrot.slane %v1946, 3
      %v1949 = vor.u32 %v1945, %v1948
      %v1950 = vsel %vm1933, %v1941, %v1949
      %v1952 = vshrl.u32 %v1929, 16
      %v1954 = vrot.slane %v1952, 2
      %v1955 = vshll.u32 %v1929, 16
      %v1957 = vrot.slane %v1955, 3
      %v1958 = vor.u32 %v1954, %v1957
      %v1959 = vsel %vm1933, %v1949, %v1958
      %v1961 = vshrl.u32 %v1930, 16
      %v1963 = vrot.slane %v1961, 2
      %v1964 = vshll.u32 %v1930, 16
      %v1966 = vrot.slane %v1964, 3
      %v1967 = vor.u32 %v1963, %v1966
      %v1968 = vsel %vm1933, %v1958, %v1967
      %v1970 = vshrl.u32 %v1931, 16
      %v1972 = vrot.slane %v1970, 2
      %v1973 = vshll.u32 %v1931, 16
      %v1975 = vrot.slane %v1973, 3
      %v1976 = vor.u32 %v1972, %v1975
      %v1977 = vsel %vm1933, %v1967, %v1976
      %v1979 = vshrl.u32 %v1932, 16
      %v1981 = vrot.slane %v1979, 2
      %v1982 = vshll.u32 %v1932, 16
      %v1984 = vrot.slane %v1982, 3
      %v1985 = vor.u32 %v1981, %v1984
      %v1986 = vsel %vm1933, %v1976, %v1985
      %v2008 = vunpack.c.l.b16 %v1889
      %v2009 = vunpack.c.l.b16 %v1890
      %v2010 = vunpack.c.l.b16 %v1891
      %v2011 = vunpack.c.l.b16 %v1892
      %v2012 = vunpack.c.l.b16 %v1893
      %v2013 = vunpack.c.l.b16 %v1894
      %v2014 = vunpack.c.l.b16 %v1895
      %v2015 = vunpack.c.l.b16 %v1896
      %v2016 = vunpack.c.l.b16 %v1897
      %v2017 = vunpack.c.l.b16 %v1898
      %v2018 = vunpack.c.l.b16 %v1899
      %v2019 = vunpack.c.l.b16 %v1900
      %v2020 = vunpack.c.l.b16 %v1901
      %v2021 = vunpack.c.l.b16 %v1902
      %v2022 = vunpack.c.l.b16 %v1903
      %v2023 = vunpack.c.l.b16 %v1904
      %v2024 = vpack.c.b16 %v2009, %v2008
      %v2025 = vpack.c.b16 %v2011, %v2010
      %v2026 = vpack.c.b16 %v2013, %v2012
      %v2027 = vpack.c.b16 %v2015, %v2014
      %v2028 = vpack.c.b16 %v2017, %v2016
      %v2029 = vpack.c.b16 %v2019, %v2018
      %v2030 = vpack.c.b16 %v2021, %v2020
      %v2031 = vpack.c.b16 %v2023, %v2022
      %2040 = vmatprep.subr.bf16.mxu0 0
      %2041 = vmatpush1.bf16.msra.mxu0 %v2031
      %2042 = vmatprep.subr.bf16.mxu0 0
      %2043 = vmatpush1.bf16.msra.mxu0 %v2030
      %2044 = vmatprep.subr.bf16.mxu0 0
      %2045 = vmatpush1.bf16.msra.mxu0 %v2029
      %2046 = vmatprep.subr.bf16.mxu0 0
      %2047 = vmatpush1.bf16.msra.mxu0 %v2028
      %2048 = vmatprep.subr.bf16.mxu0 0
      %2049 = vmatpush1.bf16.msra.mxu0 %v2027
      %2050 = vmatprep.subr.bf16.mxu0 0
      %2051 = vmatpush1.bf16.msra.mxu0 %v2026
      %2052 = vmatprep.subr.bf16.mxu0 0
      %2053 = vmatpush1.bf16.msra.mxu0 %v2025
      %2054 = vmatprep.subr.bf16.mxu0 0
      %2055 = vmatpush1.bf16.msra.mxu0 %v2024
      %2056 = vmatprep.subr.bf16.mxu0 0
      %2057 = vmatpush2.bf16.msra.mxu0 0
      %2058 = vmatprep.subr.bf16.mxu0 0
      %2059 = vmatpush2.bf16.msra.mxu0 0
      %2060 = vmatprep.subr.bf16.mxu0 0
      %2061 = vmatpush2.bf16.msra.mxu0 0
      %2062 = vmatprep.subr.bf16.mxu0 0
      %2063 = vmatpush2.bf16.msra.mxu0 0
      %2064 = vmatprep.subr.bf16.mxu0 0
      %2065 = vmatpush2.bf16.msra.mxu0 0
      %2066 = vmatprep.subr.bf16.mxu0 0
      %2067 = vmatpush2.bf16.msra.mxu0 0
      %2068 = vmatprep.subr.bf16.mxu0 0
      %2069 = vmatpush2.bf16.msra.mxu0 0
      %2070 = vmatprep.subr.bf16.mxu0 0
      %2071 = vmatpush2.bf16.msra.mxu0 0
      %2072 = vmatprep.mubr.bf16.mxu0 0
      %2073 = vmatmul.mubr.bf16.gmra.mxu0 %v1950
      %v2074 = vpop.f32.mrf.mxu0
      %v2075 = vadd.f32 0.0, %v2074
      %v2076 = vpop.f32.mrf.mxu0
      %v2077 = vpop.f32.mrf.mxu0
      %v2078 = vadd.f32 0.0, %v2077
      %v2079 = vpop.f32.mrf.mxu0
      %2080 = vmatprep.mubr.bf16.mxu0 0
      %2081 = vmatmul.mubr.bf16.gmra.mxu0 %v1959
      %v2082 = vpop.f32.mrf.mxu0
      %v2083 = vadd.f32 0.0, %v2082
      %v2084 = vpop.f32.mrf.mxu0
      %v2085 = vpop.f32.mrf.mxu0
      %v2086 = vadd.f32 0.0, %v2085
      %v2087 = vpop.f32.mrf.mxu0
      %2088 = vmatprep.mubr.bf16.mxu0 0
      %2089 = vmatmul.mubr.bf16.gmra.mxu0 %v1968
      %v2090 = vpop.f32.mrf.mxu0
      %v2091 = vadd.f32 0.0, %v2090
      %v2092 = vpop.f32.mrf.mxu0
      %v2093 = vpop.f32.mrf.mxu0
      %v2094 = vadd.f32 0.0, %v2093
      %v2095 = vpop.f32.mrf.mxu0
      %2096 = vmatprep.mubr.bf16.mxu0 0
      %2097 = vmatmul.mubr.bf16.gmra.mxu0 %v1977
      %v2098 = vpop.f32.mrf.mxu0
      %v2099 = vadd.f32 0.0, %v2098
      %v2100 = vpop.f32.mrf.mxu0
      %v2101 = vpop.f32.mrf.mxu0
      %v2102 = vadd.f32 0.0, %v2101
      %v2103 = vpop.f32.mrf.mxu0
      %2104 = vmatprep.mubr.bf16.mxu0 0
      %2105 = vmatmul.mubr.bf16.gmra.mxu0 %v1986
      %v2106 = vpop.f32.mrf.mxu0
      %v2107 = vadd.f32 0.0, %v2106
      %v2108 = vpop.f32.mrf.mxu0
      %v2109 = vpop.f32.mrf.mxu0
      %v2110 = vadd.f32 0.0, %v2109
      %v2111 = vpop.f32.mrf.mxu0
      %2112 = vdwg.mxu0
      %v2113 = vld [vmem:[#allocation2] sm:$0xff]
      %v2114 = vld [vmem:[#allocation2 + $0x8] sm:$0xff]
      %v2115 = vld [vmem:[#allocation2 + $0x10] sm:$0xff]
      %v2116 = vld [vmem:[#allocation2 + $0x18] sm:$0xff]
      %v2117 = vld [vmem:[#allocation2 + $0x20] sm:$0xff]
      %v2118 = vld [vmem:[#allocation2 + $0x28] sm:$0xff]
      %v2119 = vld [vmem:[#allocation2 + $0x30] sm:$0xff]
      %v2120 = vld [vmem:[#allocation2 + $0x38] sm:$0xff]
      %v2121 = vld [vmem:[#allocation2 + $0x40] sm:$0xff]
      %v2122 = vld [vmem:[#allocation2 + $0x48] sm:$0xff]
      %v2123 = vadd.f32 %v2113, %v2075
      %v2124 = vadd.f32 %v2114, %v2078
      %v2125 = vadd.f32 %v2115, %v2083
      %v2126 = vadd.f32 %v2116, %v2086
      %v2127 = vadd.f32 %v2117, %v2091
      %v2128 = vadd.f32 %v2118, %v2094
      %v2129 = vadd.f32 %v2119, %v2099
      %v2130 = vadd.f32 %v2120, %v2102
      %v2131 = vadd.f32 %v2121, %v2107
      %v2132 = vadd.f32 %v2122, %v2110
      %2133 = vst [vmem:[#allocation2] sm:$0xff] %v2123
      %2134 = vst [vmem:[#allocation2 + $0x8] sm:$0xff] %v2124
      %2135 = vst [vmem:[#allocation2 + $0x10] sm:$0xff] %v2125
      %2136 = vst [vmem:[#allocation2 + $0x18] sm:$0xff] %v2126
      %2137 = vst [vmem:[#allocation2 + $0x20] sm:$0xff] %v2127
      %2138 = vst [vmem:[#allocation2 + $0x28] sm:$0xff] %v2128
      %2139 = vst [vmem:[#allocation2 + $0x30] sm:$0xff] %v2129
      %2140 = vst [vmem:[#allocation2 + $0x38] sm:$0xff] %v2130
      %2141 = vst [vmem:[#allocation2 + $0x40] sm:$0xff] %v2131
      %2142 = vst [vmem:[#allocation2 + $0x48] sm:$0xff] %v2132
      %v2143 = vld [vmem:[%s250 + $0x8] sm:$0x8]
      %v2144 = vld [vmem:[%s250 + $0xc] sm:$0xf]
      %v2145 = vld [vmem:[%s250 + $0x10] sm:$0xf]
      %v2146 = vld [vmem:[%s250 + $0x14] sm:$0xf]
      %v2147 = vld [vmem:[%s250 + $0x18] sm:$0xf]
      %v2148 = vld [vmem:[%s250 + $0x1c] sm:$0xf]
      %v2149 = vld [vmem:[%s250 + $0x20] sm:$0xf]
      %v2150 = vld [vmem:[%s250 + $0x24] sm:$0xf]
      %v2151 = vld [vmem:[%s250 + $0x28] sm:$0xf]
      %v2152 = vld [vmem:[%s250 + $0x2c] sm:$0xf]
      %v2153 = vld [vmem:[%s250 + $0x30] sm:$0x7]
      %s2154 = scalar_lea.vmem %s254, 512
      %v2155 = vld [vmem:[%s2154] sm:$0xf]
      %v2156 = vld [vmem:[%s2154 + $0x4] sm:$0xf]
      %v2157 = vld [vmem:[%s2154 + $0x8] sm:$0xf]
      %v2158 = vld [vmem:[%s2154 + $0xc] sm:$0xf]
      %v2159 = vld [vmem:[%s2154 + $0x10] sm:$0xf]
      %v2160 = vld [vmem:[%s2154 + $0x14] sm:$0xf]
      %v2161 = vld [vmem:[%s2154 + $0x18] sm:$0xf]
      %v2162 = vld [vmem:[%s2154 + $0x1c] sm:$0xf]
      %v2163 = vld [vmem:[%s2154 + $0x20] sm:$0xf]
      %v2164 = vld [vmem:[%s2154 + $0x24] sm:$0xf]
      %v2165 = vld [vmem:[%s2154 + $0x28] sm:$0xf]
      %v2166 = vld [vmem:[%s2154 + $0x2c] sm:$0xf]
      %v2167 = vld [vmem:[%s2154 + $0x30] sm:$0xf]
      %v2168 = vld [vmem:[%s2154 + $0x34] sm:$0xf]
      %v2169 = vld [vmem:[%s2154 + $0x38] sm:$0xf]
      %v2170 = vld [vmem:[%s2154 + $0x3c] sm:$0xf]
      %v2182 = vunpack.c.l.b16 %v2143
      %v2183 = vunpack.c.l.b16 %v2144
      %v2184 = vunpack.c.l.b16 %v2145
      %v2185 = vunpack.c.l.b16 %v2146
      %v2186 = vunpack.c.l.b16 %v2147
      %v2187 = vunpack.c.l.b16 %v2148
      %v2188 = vunpack.c.l.b16 %v2149
      %v2189 = vunpack.c.l.b16 %v2150
      %v2190 = vunpack.c.l.b16 %v2151
      %v2191 = vunpack.c.l.b16 %v2152
      %v2192 = vunpack.c.l.b16 %v2153
      %v2193 = vpack.c.b16 %v2183, %v2182
      %v2194 = vpack.c.b16 %v2185, %v2184
      %v2195 = vpack.c.b16 %v2187, %v2186
      %v2196 = vpack.c.b16 %v2189, %v2188
      %v2197 = vpack.c.b16 %v2191, %v2190
      %v2198 = vpack.c.b16 %v2192, %v2192
      %vm2199 = vcmask 1044480
      %v2200 = vrot.slane %v2193, 3
      %v2201 = vrot.slane %v2194, 3
      %v2202 = vsel %vm2199, %v2200, %v2201
      %v2203 = vrot.slane %v2195, 3
      %v2204 = vsel %vm2199, %v2201, %v2203
      %v2205 = vrot.slane %v2196, 3
      %v2206 = vsel %vm2199, %v2203, %v2205
      %v2207 = vrot.slane %v2197, 3
      %v2208 = vsel %vm2199, %v2205, %v2207
      %v2209 = vrot.slane %v2198, 3
      %v2210 = vsel %vm2199, %v2207, %v2209
      %v2232 = vunpack.c.l.b16 %v2155
      %v2233 = vunpack.c.l.b16 %v2156
      %v2234 = vunpack.c.l.b16 %v2157
      %v2235 = vunpack.c.l.b16 %v2158
      %v2236 = vunpack.c.l.b16 %v2159
      %v2237 = vunpack.c.l.b16 %v2160
      %v2238 = vunpack.c.l.b16 %v2161
      %v2239 = vunpack.c.l.b16 %v2162
      %v2240 = vunpack.c.l.b16 %v2163
      %v2241 = vunpack.c.l.b16 %v2164
      %v2242 = vunpack.c.l.b16 %v2165
      %v2243 = vunpack.c.l.b16 %v2166
      %v2244 = vunpack.c.l.b16 %v2167
      %v2245 = vunpack.c.l.b16 %v2168
      %v2246 = vunpack.c.l.b16 %v2169
      %v2247 = vunpack.c.l.b16 %v2170
      %v2248 = vpack.c.b16 %v2233, %v2232
      %v2249 = vpack.c.b16 %v2235, %v2234
      %v2250 = vpack.c.b16 %v2237, %v2236
      %v2251 = vpack.c.b16 %v2239, %v2238
      %v2252 = vpack.c.b16 %v2241, %v2240
      %v2253 = vpack.c.b16 %v2243, %v2242
      %v2254 = vpack.c.b16 %v2245, %v2244
      %v2255 = vpack.c.b16 %v2247, %v2246
      %2264 = vmatprep.subr.bf16.mxu0 0
      %2265 = vmatpush1.bf16.msra.mxu0 %v2255
      %2266 = vmatprep.subr.bf16.mxu0 0
      %2267 = vmatpush1.bf16.msra.mxu0 %v2254
      %2268 = vmatprep.subr.bf16.mxu0 0
      %2269 = vmatpush1.bf16.msra.mxu0 %v2253
      %2270 = vmatprep.subr.bf16.mxu0 0
      %2271 = vmatpush1.bf16.msra.mxu0 %v2252
      %2272 = vmatprep.subr.bf16.mxu0 0
      %2273 = vmatpush1.bf16.msra.mxu0 %v2251
      %2274 = vmatprep.subr.bf16.mxu0 0
      %2275 = vmatpush1.bf16.msra.mxu0 %v2250
      %2276 = vmatprep.subr.bf16.mxu0 0
      %2277 = vmatpush1.bf16.msra.mxu0 %v2249
      %2278 = vmatprep.subr.bf16.mxu0 0
      %2279 = vmatpush1.bf16.msra.mxu0 %v2248
      %2280 = vmatprep.subr.bf16.mxu0 0
      %2281 = vmatpush2.bf16.msra.mxu0 0
      %2282 = vmatprep.subr.bf16.mxu0 0
      %2283 = vmatpush2.bf16.msra.mxu0 0
      %2284 = vmatprep.subr.bf16.mxu0 0
      %2285 = vmatpush2.bf16.msra.mxu0 0
      %2286 = vmatprep.subr.bf16.mxu0 0
      %2287 = vmatpush2.bf16.msra.mxu0 0
      %2288 = vmatprep.subr.bf16.mxu0 0
      %2289 = vmatpush2.bf16.msra.mxu0 0
      %2290 = vmatprep.subr.bf16.mxu0 0
      %2291 = vmatpush2.bf16.msra.mxu0 0
      %2292 = vmatprep.subr.bf16.mxu0 0
      %2293 = vmatpush2.bf16.msra.mxu0 0
      %2294 = vmatprep.subr.bf16.mxu0 0
      %2295 = vmatpush2.bf16.msra.mxu0 0
      %2296 = vmatprep.mubr.bf16.mxu0 0
      %2297 = vmatmul.mubr.bf16.gmra.mxu0 %v2202
      %v2298 = vpop.f32.mrf.mxu0
      %v2299 = vadd.f32 0.0, %v2298
      %v2300 = vpop.f32.mrf.mxu0
      %v2301 = vpop.f32.mrf.mxu0
      %v2302 = vadd.f32 0.0, %v2301
      %v2303 = vpop.f32.mrf.mxu0
      %2304 = vmatprep.mubr.bf16.mxu0 0
      %2305 = vmatmul.mubr.bf16.gmra.mxu0 %v2204
      %v2306 = vpop.f32.mrf.mxu0
      %v2307 = vadd.f32 0.0, %v2306
      %v2308 = vpop.f32.mrf.mxu0
      %v2309 = vpop.f32.mrf.mxu0
      %v2310 = vadd.f32 0.0, %v2309
      %v2311 = vpop.f32.mrf.mxu0
      %2312 = vmatprep.mubr.bf16.mxu0 0
      %2313 = vmatmul.mubr.bf16.gmra.mxu0 %v2206
      %v2314 = vpop.f32.mrf.mxu0
      %v2315 = vadd.f32 0.0, %v2314
      %v2316 = vpop.f32.mrf.mxu0
      %v2317 = vpop.f32.mrf.mxu0
      %v2318 = vadd.f32 0.0, %v2317
      %v2319 = vpop.f32.mrf.mxu0
      %2320 = vmatprep.mubr.bf16.mxu0 0
      %2321 = vmatmul.mubr.bf16.gmra.mxu0 %v2208
      %v2322 = vpop.f32.mrf.mxu0
      %v2323 = vadd.f32 0.0, %v2322
      %v2324 = vpop.f32.mrf.mxu0
      %v2325 = vpop.f32.mrf.mxu0
      %v2326 = vadd.f32 0.0, %v2325
      %v2327 = vpop.f32.mrf.mxu0
      %2328 = vmatprep.mubr.bf16.mxu0 0
      %2329 = vmatmul.mubr.bf16.gmra.mxu0 %v2210
      %v2330 = vpop.f32.mrf.mxu0
      %v2331 = vadd.f32 0.0, %v2330
      %v2332 = vpop.f32.mrf.mxu0
      %v2333 = vpop.f32.mrf.mxu0
      %v2334 = vadd.f32 0.0, %v2333
      %v2335 = vpop.f32.mrf.mxu0
      %2336 = vdwg.mxu0
      %v2337 = vld [vmem:[#allocation2] sm:$0xff]
      %v2338 = vld [vmem:[#allocation2 + $0x8] sm:$0xff]
      %v2339 = vld [vmem:[#allocation2 + $0x10] sm:$0xff]
      %v2340 = vld [vmem:[#allocation2 + $0x18] sm:$0xff]
      %v2341 = vld [vmem:[#allocation2 + $0x20] sm:$0xff]
      %v2342 = vld [vmem:[#allocation2 + $0x28] sm:$0xff]
      %v2343 = vld [vmem:[#allocation2 + $0x30] sm:$0xff]
      %v2344 = vld [vmem:[#allocation2 + $0x38] sm:$0xff]
      %v2345 = vld [vmem:[#allocation2 + $0x40] sm:$0xff]
      %v2346 = vld [vmem:[#allocation2 + $0x48] sm:$0xff]
      %v2347 = vadd.f32 %v2337, %v2299
      %v2348 = vadd.f32 %v2338, %v2302
      %v2349 = vadd.f32 %v2339, %v2307
      %v2350 = vadd.f32 %v2340, %v2310
      %v2351 = vadd.f32 %v2341, %v2315
      %v2352 = vadd.f32 %v2342, %v2318
      %v2353 = vadd.f32 %v2343, %v2323
      %v2354 = vadd.f32 %v2344, %v2326
      %v2355 = vadd.f32 %v2345, %v2331
      %v2356 = vadd.f32 %v2346, %v2334
      %2357 = vst [vmem:[#allocation2] sm:$0xff] %v2347
      %2358 = vst [vmem:[#allocation2 + $0x8] sm:$0xff] %v2348
      %2359 = vst [vmem:[#allocation2 + $0x10] sm:$0xff] %v2349
      %2360 = vst [vmem:[#allocation2 + $0x18] sm:$0xff] %v2350
      %2361 = vst [vmem:[#allocation2 + $0x20] sm:$0xff] %v2351
      %2362 = vst [vmem:[#allocation2 + $0x28] sm:$0xff] %v2352
      %2363 = vst [vmem:[#allocation2 + $0x30] sm:$0xff] %v2353
      %2364 = vst [vmem:[#allocation2 + $0x38] sm:$0xff] %v2354
      %2365 = vst [vmem:[#allocation2 + $0x40] sm:$0xff] %v2355
      %2366 = vst [vmem:[#allocation2 + $0x48] sm:$0xff] %v2356
      %v2367 = vld [vmem:[#allocation2] sm:$0xff]
      %v2368 = vld [vmem:[#allocation2 + $0x8] sm:$0xff]
      %v2369 = vld [vmem:[#allocation2 + $0x10] sm:$0xff]
      %v2370 = vld [vmem:[#allocation2 + $0x18] sm:$0xff]
      %v2371 = vld [vmem:[#allocation2 + $0x20] sm:$0xff]
      %v2372 = vld [vmem:[#allocation2 + $0x28] sm:$0xff]
      %v2373 = vld [vmem:[#allocation2 + $0x30] sm:$0xff]
      %v2374 = vld [vmem:[#allocation2 + $0x38] sm:$0xff]
      %v2375 = vld [vmem:[#allocation2 + $0x40] sm:$0xff]
      %v2376 = vld [vmem:[#allocation2 + $0x48] sm:$0xff]
      %v2377 = vld [vmem:[%s259] sm:$0xf]
      %v2378 = vld [vmem:[%s259 + $0x4] sm:$0xf]
      %v2379 = vld [vmem:[%s259 + $0x8] sm:$0xf]
      %v2380 = vld [vmem:[%s259 + $0xc] sm:$0xf]
      %v2381 = vld [vmem:[%s259 + $0x10] sm:$0xf]
      %v2382 = vld [vmem:[%s259 + $0x14] sm:$0xf]
      %v2383 = vld [vmem:[%s259 + $0x18] sm:$0xf]
      %v2384 = vld [vmem:[%s259 + $0x1c] sm:$0xf]
      %v2385 = vld [vmem:[%s259 + $0x20] sm:$0xf]
      %v2386 = vld [vmem:[%s259 + $0x24] sm:$0xf]
      %v2387 = vld [vmem:[%s263] sm:$0xf]
      %v2388 = vld [vmem:[%s263 + $0x4] sm:$0xf]
      %v2389 = vld [vmem:[%s263 + $0x8] sm:$0xf]
      %v2390 = vld [vmem:[%s263 + $0xc] sm:$0xf]
      %v2391 = vld [vmem:[%s263 + $0x10] sm:$0xf]
      %v2392 = vld [vmem:[%s263 + $0x14] sm:$0xf]
      %v2393 = vld [vmem:[%s263 + $0x18] sm:$0xf]
      %v2394 = vld [vmem:[%s263 + $0x1c] sm:$0xf]
      %v2395 = vld [vmem:[%s263 + $0x20] sm:$0xf]
      %v2396 = vld [vmem:[%s263 + $0x24] sm:$0xf]
      %v2397 = vld [vmem:[%s263 + $0x28] sm:$0xf]
      %v2398 = vld [vmem:[%s263 + $0x2c] sm:$0xf]
      %v2399 = vld [vmem:[%s263 + $0x30] sm:$0xf]
      %v2400 = vld [vmem:[%s263 + $0x34] sm:$0xf]
      %v2401 = vld [vmem:[%s263 + $0x38] sm:$0xf]
      %v2402 = vld [vmem:[%s263 + $0x3c] sm:$0xf]
      %v2413 = vunpack.c.l.b16 %v2377
      %v2414 = vunpack.c.l.b16 %v2378
      %v2415 = vunpack.c.l.b16 %v2379
      %v2416 = vunpack.c.l.b16 %v2380
      %v2417 = vunpack.c.l.b16 %v2381
      %v2418 = vunpack.c.l.b16 %v2382
      %v2419 = vunpack.c.l.b16 %v2383
      %v2420 = vunpack.c.l.b16 %v2384
      %v2421 = vunpack.c.l.b16 %v2385
      %v2422 = vunpack.c.l.b16 %v2386
      %v2423 = vpack.c.b16 %v2414, %v2413
      %v2424 = vpack.c.b16 %v2416, %v2415
      %v2425 = vpack.c.b16 %v2418, %v2417
      %v2426 = vpack.c.b16 %v2420, %v2419
      %v2427 = vpack.c.b16 %v2422, %v2421
      %v2449 = vunpack.c.l.b16 %v2387
      %v2450 = vunpack.c.l.b16 %v2388
      %v2451 = vunpack.c.l.b16 %v2389
      %v2452 = vunpack.c.l.b16 %v2390
      %v2453 = vunpack.c.l.b16 %v2391
      %v2454 = vunpack.c.l.b16 %v2392
      %v2455 = vunpack.c.l.b16 %v2393
      %v2456 = vunpack.c.l.b16 %v2394
      %v2457 = vunpack.c.l.b16 %v2395
      %v2458 = vunpack.c.l.b16 %v2396
      %v2459 = vunpack.c.l.b16 %v2397
      %v2460 = vunpack.c.l.b16 %v2398
      %v2461 = vunpack.c.l.b16 %v2399
      %v2462 = vunpack.c.l.b16 %v2400
      %v2463 = vunpack.c.l.b16 %v2401
      %v2464 = vunpack.c.l.b16 %v2402
      %v2465 = vpack.c.b16 %v2450, %v2449
      %v2466 = vpack.c.b16 %v2452, %v2451
      %v2467 = vpack.c.b16 %v2454, %v2453
      %v2468 = vpack.c.b16 %v2456, %v2455
      %v2469 = vpack.c.b16 %v2458, %v2457
      %v2470 = vpack.c.b16 %v2460, %v2459
      %v2471 = vpack.c.b16 %v2462, %v2461
      %v2472 = vpack.c.b16 %v2464, %v2463
      %2481 = vmatprep.subr.bf16.mxu0 0
      %2482 = vmatpush1.bf16.msra.mxu0 %v2472
      %2483 = vmatprep.subr.bf16.mxu0 0
      %2484 = vmatpush1.bf16.msra.mxu0 %v2471
      %2485 = vmatprep.subr.bf16.mxu0 0
      %2486 = vmatpush1.bf16.msra.mxu0 %v2470
      %2487 = vmatprep.subr.bf16.mxu0 0
      %2488 = vmatpush1.bf16.msra.mxu0 %v2469
      %2489 = vmatprep.subr.bf16.mxu0 0
      %2490 = vmatpush1.bf16.msra.mxu0 %v2468
      %2491 = vmatprep.subr.bf16.mxu0 0
      %2492 = vmatpush1.bf16.msra.mxu0 %v2467
      %2493 = vmatprep.subr.bf16.mxu0 0
      %2494 = vmatpush1.bf16.msra.mxu0 %v2466
      %2495 = vmatprep.subr.bf16.mxu0 0
      %2496 = vmatpush1.bf16.msra.mxu0 %v2465
      %2497 = vmatprep.subr.bf16.mxu0 0
      %2498 = vmatpush2.bf16.msra.mxu0 0
      %2499 = vmatprep.subr.bf16.mxu0 0
      %2500 = vmatpush2.bf16.msra.mxu0 0
      %2501 = vmatprep.subr.bf16.mxu0 0
      %2502 = vmatpush2.bf16.msra.mxu0 0
      %2503 = vmatprep.subr.bf16.mxu0 0
      %2504 = vmatpush2.bf16.msra.mxu0 0
      %2505 = vmatprep.subr.bf16.mxu0 0
      %2506 = vmatpush2.bf16.msra.mxu0 0
      %2507 = vmatprep.subr.bf16.mxu0 0
      %2508 = vmatpush2.bf16.msra.mxu0 0
      %2509 = vmatprep.subr.bf16.mxu0 0
      %2510 = vmatpush2.bf16.msra.mxu0 0
      %2511 = vmatprep.subr.bf16.mxu0 0
      %2512 = vmatpush2.bf16.msra.mxu0 0
      %2513 = vmatprep.mubr.bf16.mxu0 0
      %2514 = vmatmul.mubr.bf16.gmra.mxu0 %v2423
      %v2515 = vpop.f32.mrf.mxu0
      %v2516 = vadd.f32 0.0, %v2515
      %v2517 = vpop.f32.mrf.mxu0
      %v2518 = vpop.f32.mrf.mxu0
      %v2519 = vadd.f32 0.0, %v2518
      %v2520 = vpop.f32.mrf.mxu0
      %2521 = vmatprep.mubr.bf16.mxu0 0
      %2522 = vmatmul.mubr.bf16.gmra.mxu0 %v2424
      %v2523 = vpop.f32.mrf.mxu0
      %v2524 = vadd.f32 0.0, %v2523
      %v2525 = vpop.f32.mrf.mxu0
      %v2526 = vpop.f32.mrf.mxu0
      %v2527 = vadd.f32 0.0, %v2526
      %v2528 = vpop.f32.mrf.mxu0
      %2529 = vmatprep.mubr.bf16.mxu0 0
      %2530 = vmatmul.mubr.bf16.gmra.mxu0 %v2425
      %v2531 = vpop.f32.mrf.mxu0
      %v2532 = vadd.f32 0.0, %v2531
      %v2533 = vpop.f32.mrf.mxu0
      %v2534 = vpop.f32.mrf.mxu0
      %v2535 = vadd.f32 0.0, %v2534
      %v2536 = vpop.f32.mrf.mxu0
      %2537 = vmatprep.mubr.bf16.mxu0 0
      %2538 = vmatmul.mubr.bf16.gmra.mxu0 %v2426
      %v2539 = vpop.f32.mrf.mxu0
      %v2540 = vadd.f32 0.0, %v2539
      %v2541 = vpop.f32.mrf.mxu0
      %v2542 = vpop.f32.mrf.mxu0
      %v2543 = vadd.f32 0.0, %v2542
      %v2544 = vpop.f32.mrf.mxu0
      %2545 = vmatprep.mubr.bf16.mxu0 0
      %2546 = vmatmul.mubr.bf16.gmra.mxu0 %v2427
      %v2547 = vpop.f32.mrf.mxu0
      %v2548 = vadd.f32 0.0, %v2547
      %v2549 = vpop.f32.mrf.mxu0
      %v2550 = vpop.f32.mrf.mxu0
      %v2551 = vadd.f32 0.0, %v2550
      %v2552 = vpop.f32.mrf.mxu0
      %2553 = vdwg.mxu0
      %v2554 = vadd.f32 %v2367, %v2516
      %v2555 = vadd.f32 %v2368, %v2519
      %v2556 = vadd.f32 %v2369, %v2524
      %v2557 = vadd.f32 %v2370, %v2527
      %v2558 = vadd.f32 %v2371, %v2532
      %v2559 = vadd.f32 %v2372, %v2535
      %v2560 = vadd.f32 %v2373, %v2540
      %v2561 = vadd.f32 %v2374, %v2543
      %v2562 = vadd.f32 %v2375, %v2548
      %v2563 = vadd.f32 %v2376, %v2551
      %2564 = vst [vmem:[#allocation2] sm:$0xff] %v2554
      %2565 = vst [vmem:[#allocation2 + $0x8] sm:$0xff] %v2555
      %2566 = vst [vmem:[#allocation2 + $0x10] sm:$0xff] %v2556
      %2567 = vst [vmem:[#allocation2 + $0x18] sm:$0xff] %v2557
      %2568 = vst [vmem:[#allocation2 + $0x20] sm:$0xff] %v2558
      %2569 = vst [vmem:[#allocation2 + $0x28] sm:$0xff] %v2559
      %2570 = vst [vmem:[#allocation2 + $0x30] sm:$0xff] %v2560
      %2571 = vst [vmem:[#allocation2 + $0x38] sm:$0xff] %v2561
      %2572 = vst [vmem:[#allocation2 + $0x40] sm:$0xff] %v2562
      %2573 = vst [vmem:[#allocation2 + $0x48] sm:$0xff] %v2563
      %v2574 = vld [vmem:[#allocation2] sm:$0xff]
      %v2575 = vld [vmem:[#allocation2 + $0x8] sm:$0xff]
      %v2576 = vld [vmem:[#allocation2 + $0x10] sm:$0xff]
      %v2577 = vld [vmem:[#allocation2 + $0x18] sm:$0xff]
      %v2578 = vld [vmem:[#allocation2 + $0x20] sm:$0xff]
      %v2579 = vld [vmem:[#allocation2 + $0x28] sm:$0xff]
      %v2580 = vld [vmem:[#allocation2 + $0x30] sm:$0xff]
      %v2581 = vld [vmem:[#allocation2 + $0x38] sm:$0xff]
      %v2582 = vld [vmem:[#allocation2 + $0x40] sm:$0xff]
      %v2583 = vld [vmem:[#allocation2 + $0x48] sm:$0xff]
      %v2584 = vmax.f32 %v2574, 0.0
      %v2585 = vmax.f32 %v2575, 0.0
      %v2586 = vmax.f32 %v2576, 0.0
      %v2587 = vmax.f32 %v2577, 0.0
      %v2588 = vmax.f32 %v2578, 0.0
      %v2589 = vmax.f32 %v2579, 0.0
      %v2590 = vmax.f32 %v2580, 0.0
      %v2591 = vmax.f32 %v2581, 0.0
      %v2592 = vmax.f32 %v2582, 0.0
      %v2593 = vmax.f32 %v2583, 0.0
      %2594 = vst [vmem:[%s271] sm:$0xff] %v2584
      %2595 = vst [vmem:[%s271 + $0x8] sm:$0xff] %v2585
      %2596 = vst [vmem:[%s271 + $0x10] sm:$0xff] %v2586
      %2597 = vst [vmem:[%s271 + $0x18] sm:$0xff] %v2587
      %2598 = vst [vmem:[%s271 + $0x20] sm:$0xff] %v2588
      %2599 = vst [vmem:[%s271 + $0x28] sm:$0xff] %v2589
      %2600 = vst [vmem:[%s271 + $0x30] sm:$0xff] %v2590
      %2601 = vst [vmem:[%s271 + $0x38] sm:$0xff] %v2591
      %2602 = vst [vmem:[%s271 + $0x40] sm:$0xff] %v2592
      %2603 = vst [vmem:[%s271 + $0x48] sm:$0xff] %v2593
      %p2604 = scmp.lt.s32.totalorder %s19, 1
      %s2605 = scalar_select %p2604, %s19, 1
      %p2606 = scmp.lt.s32.totalorder %s20, 0
      %s2607 = scalar_select %p2606, %s20, 0
      %s2608 = smul.addr %s2605, 10
      %s2609 = sadd.s32 %s2607, %s2608
      %s2610 = smul.addr %s2609, 8
      %s2611 = scalar_lea.vmem %s4, %s2610
      // Predicated region
      $region37: #{basic_block_forward.3} parent=35 // pred_check
        %p2612 = pneg %p151
      $region38: #{basic_block_forward.3} parent=35 // pred_check_branch
        %2614 = sbr.rel (%p2612) target = $region40
      $region39: #{basic_block_forward.3} parent=35 // pred_region
        _
      $region40: #{basic_block_forward.3} parent=35 // pred_fallthru
        _
    $region36: #{basic_block_forward.3} parent=5 // pred_fallthru
      _
    %p2615 = scmp.le.s32.totalorder 2, %s10
    // Predicated region
    $region41: #{basic_block_forward.3} parent=5 // pred_check
      %p2616 = pneg %p2615
    $region42: #{basic_block_forward.3} parent=5 // pred_check_branch
      %2618 = sbr.rel (%p2616) target = $region44
    $region43: #{basic_block_forward.3} parent=5 // pred_region
      %s2619 = ssub.s32 %s10, 2
      // Predicated region
      $region45: #{basic_block_forward.3} parent=43 // pred_check
        %p2620 = pneg %p157
      $region46: #{basic_block_forward.3} parent=43 // pred_check_branch
        %2622 = sbr.rel (%p2620) target = $region48
      $region47: #{basic_block_forward.3} parent=43 // pred_region
        %p2623 = scmp.lt.s32.totalorder %s21, 1
        %s2624 = scalar_select %p2623, %s21, 1
        %p2625 = scmp.lt.s32.totalorder %s22, 0
        %s2626 = scalar_select %p2625, %s22, 0
        %s2627 = smul.addr %s2624, 10
        %s2628 = sadd.s32 %s2626, %s2627
        %s2629 = smul.addr %s2628, 8
        %s2630 = scalar_lea.vmem %s4, %s2629
      $region48: #{basic_block_forward.3} parent=43 // pred_fallthru
        _
    $region44: #{basic_block_forward.3} parent=5 // pred_fallthru
      _
  $region6: #{basic_block_forward.3} parent=0 // loop_footer
    %s14 = sadd.s32 1, %s10
  $region7: #{basic_block_forward.3} parent=0 // loop_footer_branch
    %9 = sbr.rel target = $region3
  $region8: #{basic_block_forward.3} parent=0 // loop_exit
    _

</llo_original>
